<compile_context>
chip_gen: v5e
topology: v5e:2x2
jax: 0.10.0
libtpu: 0.0.40
codegen_flags: <defaults>
</compile_context>

<pallas_src>
import math

import numpy as np
import jax
import jax.numpy as jnp
from jax import lax
from jax.experimental import pallas as pl
from jax.experimental.pallas import tpu as pltpu

# ----------------------------- configuration (small) -----------------------------
D_MODEL   = 32
N_HEADS   = 4
HEAD_DIM  = D_MODEL // N_HEADS          # 8
D_FFN     = 64
N_LEVELS  = 2
N_POINTS  = 4
HLP       = N_HEADS * N_LEVELS * N_POINTS   # 32 sampling lanes per query
LP        = N_LEVELS * N_POINTS             # 8  (softmax group size per head)
GP        = N_HEADS * N_POINTS              # 16 (head,point) groups per level

B  = 2
LQ = 8                                   # number of queries
BLQ = B * LQ
NUM_LAYERS = 2

SPATIAL_SHAPES = [(8, 8), (4, 4)]        # (H_l, W_l) per level
LEVEL_START    = [0, 64]
LEN_IN         = sum(h * w for h, w in SPATIAL_SHAPES)   # 80

LN_EPS   = 1e-5
SM_EPS   = 1e-12                          # keeps masked-out softmax groups finite
SA_SCALE = 1.0 / math.sqrt(HEAD_DIM)

LAYER_KEYS = ("w_qk", "b_qk", "w_v", "b_v", "w_o", "b_o", "g2", "be2",
              "w_oa", "b_oa", "w_vp", "b_vp", "w_op", "b_op", "g1", "be1",
              "w1", "b1", "w2", "b2", "g3", "be3")


# ----------------------------- static (trace-time) tables -----------------------------
def _build_static_tables():
    f32 = np.float32
    # --- self attention: heads x batches packed block-diagonally ---
    # tiled K/V rows ordered (head, batch, query); channel mask selects head block.
    sa_kv_mask = np.zeros((N_HEADS * BLQ, D_MODEL), f32)
    for h in range(N_HEADS):
        sa_kv_mask[h * BLQ:(h + 1) * BLQ, h * HEAD_DIM:(h + 1) * HEAD_DIM] = 1.0
    grp = np.arange(N_HEADS * BLQ) // LQ                      # (head,batch) group id
    sa_gmat = (grp[:, None] == grp[None, :]).astype(f32)      # group-sum matrix
    col_b = (np.arange(N_HEADS * BLQ) % BLQ) // LQ            # batch of each key column
    row_b = np.arange(BLQ) // LQ                              # batch of each query row
    sa_valid = (row_b[:, None] == col_b[None, :]).astype(f32)
    # --- deformable attention-weight softmax: per head over L*P lanes ---
    gd = np.arange(HLP) // LP
    da_gmat = (gd[:, None] == gd[None, :]).astype(f32)
    # --- per-head channel masks (shaped for cheap per-head ref loads) ---
    hmask = np.zeros((N_HEADS, 1, D_MODEL), f32)
    for h in range(N_HEADS):
        hmask[h, 0, h * HEAD_DIM:(h + 1) * HEAD_DIM] = 1.0
    # --- per level: lane expansion matrix + pixel-column grids ---
    exps, colxs, colys = [], [], []
    for l, (Hl, Wl) in enumerate(SPATIAL_SHAPES):
        hw = Hl * Wl
        E = np.zeros((HLP, GP * hw), f32)
        for h in range(N_HEADS):
            for p in range(N_POINTS):
                j = (h * N_LEVELS + l) * N_POINTS + p          # lane in the HLP axis
                g = h * N_POINTS + p                           # (head,point) block
                E[j, g * hw:(g + 1) * hw] = 1.0
        col = np.arange(GP * hw) % hw
        colxs.append((col % Wl).astype(f32)[None, :])
        colys.append((col // Wl).astype(f32)[None, :])
        exps.append(E)
    return (sa_kv_mask, sa_gmat, sa_valid, da_gmat, hmask,
            exps[0], colxs[0], colys[0], exps[1], colxs[1], colys[1])


# ----------------------------- small helpers -----------------------------
def _matmul_nt(x, w):
    """x @ w.T  (x: (M,K), w: (N,K)) -> (M,N), f32 MXU accumulation."""
    return lax.dot_general(x, w, (((1,), (1,)), ((), ())),
                           preferred_element_type=jnp.float32)


def _matmul_nn(x, w):
    return jnp.dot(x, w, preferred_element_type=jnp.float32)


def _layernorm(z, gamma, beta):
    mean = jnp.mean(z, axis=-1, keepdims=True)
    zc = z - mean
    var = jnp.mean(zc * zc, axis=-1, keepdims=True)
    return zc * lax.rsqrt(var + LN_EPS) * gamma + beta


def _group_softmax(logits, gmat):
    """Row-wise softmax within lane groups encoded by the 0/1 block matrix `gmat`."""
    z = logits - jnp.max(logits, axis=-1, keepdims=True)
    ez = jnp.exp(z)
    gsum = _matmul_nn(ez, gmat)
    return ez * pl.reciprocal(gsum + SM_EPS, approx=True)


# ----------------------------- fused whole-decoder kernel -----------------------------
def _decoder_kernel(
    # per-call inputs (constant across the layer grid axis)
    tgt_ref, qpos_ref, basex_ref, basey_ref, src_ref,
    # trace-time constant tables
    sakv_ref, sagm_ref, saval_ref, dagm_ref, hmask_ref,
    exp0_ref, colx0_ref, coly0_ref, exp1_ref, colx1_ref, coly1_ref,
    # stacked per-layer weights (leading layer axis, streamed by BlockSpec)
    wqk_ref, bqk_ref, wv_ref, bv_ref, wo_ref, bo_ref, g2_ref, be2_ref,
    woa_ref, boa_ref, wvp_ref, bvp_ref, wop_ref, bop_ref, g1_ref, be1_ref,
    w1_ref, b1_ref, w2_ref, b2_ref, g3_ref, be3_ref,
    # output
    out_ref,
    # scratch: residual-stream carry + deform-attn assembly buffer
    carry_ref, ms_ref,
):
    f32 = jnp.float32
    layer = pl.program_id(0)

    @pl.when(layer == 0)
    def _():
        carry_ref[...] = tgt_ref[...]

    tgt = carry_ref[...]                                       # (BLQ, D)
    qpos = qpos_ref[...]

    # ================= self attention (q=k=tgt+pos, v=tgt) + add + norm2 =================
    qk = _matmul_nt(tgt + qpos, wqk_ref[0]) + bqk_ref[0]       # fused q|k proj (BLQ, 2D)
    v = _matmul_nt(tgt, wv_ref[0]) + bv_ref[0]                 # (BLQ, D)
    q = qk[:, 0:D_MODEL] * SA_SCALE
    k = qk[:, D_MODEL:2 * D_MODEL]

    sakv = sakv_ref[...]                                       # (H*BLQ, D)
    kexp = jnp.concatenate([k] * N_HEADS, axis=0) * sakv       # head-block-diag K
    vexp = jnp.concatenate([v] * N_HEADS, axis=0) * sakv       # head-block-diag V
    scores = _matmul_nt(q, kexp)                               # (BLQ, H*BLQ) all heads/batches
    prob = _group_softmax(scores, sagm_ref[...]) * saval_ref[...]
    attn = _matmul_nt(_matmul_nn(prob, vexp), wo_ref[0]) + bo_ref[0]
    x1 = _layernorm(tgt + attn, g2_ref[0], be2_ref[0])

    # ================= MSDeformAttn cross attention + add + norm1 =================
    offaw = _matmul_nt(x1 + qpos, woa_ref[0]) + boa_ref[0]     # [off_x | off_y | logits]
    value = _matmul_nt(src_ref[...], wvp_ref[0]) + bvp_ref[0]  # (B*LEN_IN, D)
    # TODO(synk): src_padding_mask masked_fill of `value` not implemented (mask is None).

    X = basex_ref[...] + offaw[:, 0:HLP]                       # pixel x, all (h,l,p) lanes
    Y = basey_ref[...] + offaw[:, HLP:2 * HLP]                 # pixel y
    attnw = _group_softmax(offaw[:, 2 * HLP:3 * HLP], dagm_ref[...])   # (BLQ, HLP)

    hm = [hmask_ref[h] for h in range(N_HEADS)]                # (1, D) head channel masks
    level_tabs = ((exp0_ref, colx0_ref, coly0_ref),
                  (exp1_ref, colx1_ref, coly1_ref))
    acc = [jnp.zeros((LQ, D_MODEL), f32) for _ in range(B)]
    for l, (Hl, Wl) in enumerate(SPATIAL_SHAPES):
        hw = Hl * Wl
        start = LEVEL_START[l]
        exp_ref, colx_ref, coly_ref = level_tabs[l]
        E = exp_ref[...]                                       # (HLP, GP*hw)
        # broadcast every level-l sampling lane across its hw pixel columns
        Xb = _matmul_nn(X, E)                                  # (BLQ, GP*hw)
        Yb = _matmul_nn(Y, E)
        Ab = _matmul_nn(attnw, E)
        # bilinear hat weights * attention weight — one lane-dense VPU pass
        # (== grid_sample bilinear, zeros padding, align_corners=False)
        wx = jnp.maximum(1.0 - jnp.abs(colx_ref[...] - Xb), 0.0)
        wy = jnp.maximum(1.0 - jnp.abs(coly_ref[...] - Yb), 0.0)
        wt = wx * wy * Ab                                      # (BLQ, GP*hw)
        for b in range(B):
            v_slab = value[b * LEN_IN + start:b * LEN_IN + start + hw, :]   # (hw, D)
            vstack = jnp.concatenate([v_slab] * N_POINTS, axis=0)           # (P*hw, D)
            for h in range(N_HEADS):
                w_bh = wt[b * LQ:(b + 1) * LQ,
                          h * N_POINTS * hw:(h + 1) * N_POINTS * hw]        # (LQ, P*hw)
                contrib = _matmul_nn(w_bh, vstack)             # point-sum folded into matmul
                acc[b] = acc[b] + contrib * hm[h]              # keep head h's channel block
    for b in range(B):
        ms_ref[b * LQ:(b + 1) * LQ, :] = acc[b]                # static sublane-slice stores
    tgt2 = _matmul_nt(ms_ref[...], wop_ref[0]) + bop_ref[0]
    x2 = _layernorm(x1 + tgt2, g1_ref[0], be1_ref[0])

    # ================= FFN (linear1 -> relu -> linear2) + add + norm3 =================
    hdn = jnp.maximum(_matmul_nt(x2, w1_ref[0]) + b1_ref[0], 0.0)
    y = _matmul_nt(hdn, w2_ref[0]) + b2_ref[0]
    new_tgt = _layernorm(x2 + y, g3_ref[0], be3_ref[0])

    carry_ref[...] = new_tgt
    out_ref[...] = new_tgt


# ----------------------------- block specs -----------------------------
def _full_spec(shape):
    nd = len(shape)
    if nd == 2:
        return pl.BlockSpec(tuple(shape), lambda layer: (0, 0))
    assert nd == 3
    return pl.BlockSpec(tuple(shape), lambda layer: (0, 0, 0))


def _layer_spec(shape):
    # stacked weights: one layer slab per grid step, pipelined with compute
    return pl.BlockSpec((1,) + tuple(shape[1:]), lambda layer: (layer, 0, 0))


# ----------------------------- full decoder forward -----------------------------
def decoder_forward(stacked_params, tgt, reference_points, src, src_valid_ratios, query_pos):
    """DeformableTransformerDecoder.forward (return_intermediate=False).

    src_spatial_shapes / src_level_start_index are compile-time constants
    (SPATIAL_SHAPES / LEVEL_START).  Returns (output, reference_points).
    """
    # reference_points_input = reference_points[:, :, None] * src_valid_ratios[:, None]
    rpi = reference_points[:, :, None, :] * src_valid_ratios[:, None, :, :]   # (B,LQ,L,2)
    refx = rpi[..., 0].reshape(BLQ, N_LEVELS)
    refy = rpi[..., 1].reshape(BLQ, N_LEVELS)

    # per-(h,l,p) lane pixel-space base:  ref * [W,H] - 0.5   (wrapper-side plumbing)
    lvl_lane = np.array([(j // N_POINTS) % N_LEVELS for j in range(HLP)])
    w_lane = np.array([SPATIAL_SHAPES[l][1] for l in lvl_lane], np.float32)
    h_lane = np.array([SPATIAL_SHAPES[l][0] for l in lvl_lane], np.float32)
    base_x = refx[:, lvl_lane] * w_lane[None, :] - 0.5
    base_y = refy[:, lvl_lane] * h_lane[None, :] - 0.5

    tgt2d = tgt.reshape(BLQ, D_MODEL)
    qpos2d = query_pos.reshape(BLQ, D_MODEL)
    src2d = src.reshape(B * LEN_IN, D_MODEL)

    tables = tuple(jnp.asarray(t) for t in _build_static_tables())
    weights = tuple(stacked_params[k] for k in LAYER_KEYS)

    operands = (tgt2d, qpos2d, base_x, base_y, src2d) + tables + weights
    in_specs = ([_full_spec(x.shape) for x in (tgt2d, qpos2d, base_x, base_y, src2d)]
                + [_full_spec(t.shape) for t in tables]
                + [_layer_spec(w.shape) for w in weights])

    out = pl.pallas_call(
        _decoder_kernel,
        out_shape=jax.ShapeDtypeStruct((BLQ, D_MODEL), jnp.float32),
        grid_spec=pltpu.PrefetchScalarGridSpec(
            num_scalar_prefetch=0,
            grid=(NUM_LAYERS,),
            in_specs=in_specs,
            out_specs=pl.BlockSpec((BLQ, D_MODEL), lambda layer: (0, 0)),
            scratch_shapes=[pltpu.VMEM((BLQ, D_MODEL), jnp.float32),   # residual carry
                            pltpu.VMEM((BLQ, D_MODEL), jnp.float32)],  # deform assembly
        ),
        compiler_params=pltpu.CompilerParams(dimension_semantics=("arbitrary",)),
    )(*operands)

    return out.reshape(B, LQ, D_MODEL), reference_points


# ----------------------------- deterministic parameter init -----------------------------
def init_layer_params(key):
    def lin(k, out_dim, in_dim, scale=0.05):
        kw, kb = jax.random.split(k)
        w = jax.random.normal(kw, (out_dim, in_dim), jnp.float32) * scale
        b = jax.random.normal(kb, (1, out_dim), jnp.float32) * scale
        return w, b

    ks = jax.random.split(key, 13)
    wq, bq = lin(ks[0], D_MODEL, D_MODEL)
    wk, bk = lin(ks[1], D_MODEL, D_MODEL)
    wv, bv = lin(ks[2], D_MODEL, D_MODEL)
    wo, bo = lin(ks[3], D_MODEL, D_MODEL)
    off_w, off_b = lin(ks[4], HLP * 2, D_MODEL)
    aw_w, aw_b = lin(ks[5], HLP, D_MODEL)
    vp_w, vp_b = lin(ks[6], D_MODEL, D_MODEL)
    op_w, op_b = lin(ks[7], D_MODEL, D_MODEL)
    w1, b1 = lin(ks[8], D_FFN, D_MODEL)
    w2, b2 = lin(ks[9], D_MODEL, D_FFN)

    def ln(k):
        kg, kb2 = jax.random.split(k)
        gamma = 1.0 + 0.05 * jax.random.normal(kg, (1, D_MODEL), jnp.float32)
        beta = 0.05 * jax.random.normal(kb2, (1, D_MODEL), jnp.float32)
        return gamma, beta

    g1, be1 = ln(ks[10])   # after cross-attn
    g2, be2 = ln(ks[11])   # after self-attn
    g3, be3 = ln(ks[12])   # after FFN

    # ---- one-time weight packing (wrapper-side layout work) ----
    w_qk = jnp.concatenate([wq, wk], axis=0)                  # (2D, D)
    b_qk = jnp.concatenate([bq, bk], axis=1)                  # (1, 2D)
    off_w_r = off_w.reshape(HLP, 2, D_MODEL)                  # rows: ((h,l,p), xy)
    off_b_r = off_b.reshape(HLP, 2)
    w_oa = jnp.concatenate([off_w_r[:, 0, :], off_w_r[:, 1, :], aw_w], axis=0)        # (3*HLP, D)
    b_oa = jnp.concatenate([off_b_r[:, 0], off_b_r[:, 1], aw_b[0]], axis=0)[None, :]  # (1, 3*HLP)

    return {
        "w_qk": w_qk, "b_qk": b_qk, "w_v": wv, "b_v": bv, "w_o": wo, "b_o": bo,
        "g2": g2, "be2": be2,
        "w_oa": w_oa, "b_oa": b_oa, "w_vp": vp_w, "b_vp": vp_b, "w_op": op_w, "b_op": op_b,
        "g1": g1, "be1": be1,
        "w1": w1, "b1": b1, "w2": w2, "b2": b2, "g3": g3, "be3": be3,
    }


def init_stacked_params(key):
    layer_keys = jax.random.split(key, NUM_LAYERS)
    per_layer = [init_layer_params(k) for k in layer_keys]
    return {k: jnp.stack([p[k] for p in per_layer], axis=0) for k in LAYER_KEYS}


# ----------------------------- main -----------------------------
if __name__ == "__main__":
    key = jax.random.PRNGKey(0)
    k_param, k_tgt, k_pos, k_ref, k_src, k_vr = jax.random.split(key, 6)

    params = init_stacked_params(k_param)

    tgt = jax.random.normal(k_tgt, (B, LQ, D_MODEL), jnp.float32)
    query_pos = jax.random.normal(k_pos, (B, LQ, D_MODEL), jnp.float32)
    reference_points = jax.random.uniform(k_ref, (B, LQ, 2), jnp.float32)
    src = jax.random.normal(k_src, (B, LEN_IN, D_MODEL), jnp.float32)
    src_valid_ratios = jax.random.uniform(k_vr, (B, N_LEVELS, 2), jnp.float32,
                                          minval=0.5, maxval=1.0)

    out, ref_out = jax.jit(decoder_forward)(params, tgt, reference_points, src,
                                            src_valid_ratios, query_pos)
    out = jax.block_until_ready(out)

    assert out.shape == (B, LQ, D_MODEL)
    assert ref_out.shape == (B, LQ, 2)
    assert bool(jnp.all(jnp.isfinite(out)))
    print("KERNEL_OK")
</pallas_src>

<mosaic_0001>
module attributes {stable_mosaic.version = 11 : i64} {
  func.func @_decoder_kernel(%arg0: i32, %arg1: memref<16x32xf32, #tpu.memory_space<vmem>>, %arg2: memref<16x32xf32, #tpu.memory_space<vmem>>, %arg3: memref<16x32xf32, #tpu.memory_space<vmem>>, %arg4: memref<16x32xf32, #tpu.memory_space<vmem>>, %arg5: memref<160x32xf32, #tpu.memory_space<vmem>>, %arg6: memref<64x32xf32, #tpu.memory_space<vmem>>, %arg7: memref<64x64xf32, #tpu.memory_space<vmem>>, %arg8: memref<16x64xf32, #tpu.memory_space<vmem>>, %arg9: memref<32x32xf32, #tpu.memory_space<vmem>>, %arg10: memref<4x1x32xf32, #tpu.memory_space<vmem>>, %arg11: memref<32x1024xf32, #tpu.memory_space<vmem>>, %arg12: memref<1x1024xf32, #tpu.memory_space<vmem>>, %arg13: memref<1x1024xf32, #tpu.memory_space<vmem>>, %arg14: memref<32x256xf32, #tpu.memory_space<vmem>>, %arg15: memref<1x256xf32, #tpu.memory_space<vmem>>, %arg16: memref<1x256xf32, #tpu.memory_space<vmem>>, %arg17: memref<1x64x32xf32, #tpu.memory_space<vmem>>, %arg18: memref<1x1x64xf32, #tpu.memory_space<vmem>>, %arg19: memref<1x32x32xf32, #tpu.memory_space<vmem>>, %arg20: memref<1x1x32xf32, #tpu.memory_space<vmem>>, %arg21: memref<1x32x32xf32, #tpu.memory_space<vmem>>, %arg22: memref<1x1x32xf32, #tpu.memory_space<vmem>>, %arg23: memref<1x1x32xf32, #tpu.memory_space<vmem>>, %arg24: memref<1x1x32xf32, #tpu.memory_space<vmem>>, %arg25: memref<1x96x32xf32, #tpu.memory_space<vmem>>, %arg26: memref<1x1x96xf32, #tpu.memory_space<vmem>>, %arg27: memref<1x32x32xf32, #tpu.memory_space<vmem>>, %arg28: memref<1x1x32xf32, #tpu.memory_space<vmem>>, %arg29: memref<1x32x32xf32, #tpu.memory_space<vmem>>, %arg30: memref<1x1x32xf32, #tpu.memory_space<vmem>>, %arg31: memref<1x1x32xf32, #tpu.memory_space<vmem>>, %arg32: memref<1x1x32xf32, #tpu.memory_space<vmem>>, %arg33: memref<1x64x32xf32, #tpu.memory_space<vmem>>, %arg34: memref<1x1x64xf32, #tpu.memory_space<vmem>>, %arg35: memref<1x32x64xf32, #tpu.memory_space<vmem>>, %arg36: memref<1x1x32xf32, #tpu.memory_space<vmem>>, %arg37: memref<1x1x32xf32, #tpu.memory_space<vmem>>, %arg38: memref<1x1x32xf32, #tpu.memory_space<vmem>>, %arg39: memref<16x32xf32, #tpu.memory_space<vmem>>, %arg40: memref<16x32xf32, #tpu.memory_space<vmem>>, %arg41: memref<16x32xf32, #tpu.memory_space<vmem>>) attributes {dimension_semantics = [#tpu.dimension_semantics<arbitrary>], iteration_bounds = array<i64: 2>, scalar_prefetch = 0 : i64, scratch_operands = 2 : i64, tpu.core_type = #tpu.core_type<tc>, window_params = [{pipeline_mode = #tpu.pipeline_mode<synchronous>, transform_indices = @transform_0, window_bounds = array<i64: 16, 32>}, {pipeline_mode = #tpu.pipeline_mode<synchronous>, transform_indices = @transform_1, window_bounds = array<i64: 16, 32>}, {pipeline_mode = #tpu.pipeline_mode<synchronous>, transform_indices = @transform_2, window_bounds = array<i64: 16, 32>}, {pipeline_mode = #tpu.pipeline_mode<synchronous>, transform_indices = @transform_3, window_bounds = array<i64: 16, 32>}, {pipeline_mode = #tpu.pipeline_mode<synchronous>, transform_indices = @transform_4, window_bounds = array<i64: 160, 32>}, {pipeline_mode = #tpu.pipeline_mode<synchronous>, transform_indices = @transform_5, window_bounds = array<i64: 64, 32>}, {pipeline_mode = #tpu.pipeline_mode<synchronous>, transform_indices = @transform_6, window_bounds = array<i64: 64, 64>}, {pipeline_mode = #tpu.pipeline_mode<synchronous>, transform_indices = @transform_7, window_bounds = array<i64: 16, 64>}, {pipeline_mode = #tpu.pipeline_mode<synchronous>, transform_indices = @transform_8, window_bounds = array<i64: 32, 32>}, {pipeline_mode = #tpu.pipeline_mode<synchronous>, transform_indices = @transform_9, window_bounds = array<i64: 4, 1, 32>}, {pipeline_mode = #tpu.pipeline_mode<synchronous>, transform_indices = @transform_10, window_bounds = array<i64: 32, 1024>}, {pipeline_mode = #tpu.pipeline_mode<synchronous>, transform_indices = @transform_11, window_bounds = array<i64: 1, 1024>}, {pipeline_mode = #tpu.pipeline_mode<synchronous>, transform_indices = @transform_12, window_bounds = array<i64: 1, 1024>}, {pipeline_mode = #tpu.pipeline_mode<synchronous>, transform_indices = @transform_13, window_bounds = array<i64: 32, 256>}, {pipeline_mode = #tpu.pipeline_mode<synchronous>, transform_indices = @transform_14, window_bounds = array<i64: 1, 256>}, {pipeline_mode = #tpu.pipeline_mode<synchronous>, transform_indices = @transform_15, window_bounds = array<i64: 1, 256>}, {transform_indices = @transform_16, window_bounds = array<i64: 1, 64, 32>}, {transform_indices = @transform_17, window_bounds = array<i64: 1, 1, 64>}, {transform_indices = @transform_18, window_bounds = array<i64: 1, 32, 32>}, {transform_indices = @transform_19, window_bounds = array<i64: 1, 1, 32>}, {transform_indices = @transform_20, window_bounds = array<i64: 1, 32, 32>}, {transform_indices = @transform_21, window_bounds = array<i64: 1, 1, 32>}, {transform_indices = @transform_22, window_bounds = array<i64: 1, 1, 32>}, {transform_indices = @transform_23, window_bounds = array<i64: 1, 1, 32>}, {transform_indices = @transform_24, window_bounds = array<i64: 1, 96, 32>}, {transform_indices = @transform_25, window_bounds = array<i64: 1, 1, 96>}, {transform_indices = @transform_26, window_bounds = array<i64: 1, 32, 32>}, {transform_indices = @transform_27, window_bounds = array<i64: 1, 1, 32>}, {transform_indices = @transform_28, window_bounds = array<i64: 1, 32, 32>}, {transform_indices = @transform_29, window_bounds = array<i64: 1, 1, 32>}, {transform_indices = @transform_30, window_bounds = array<i64: 1, 1, 32>}, {transform_indices = @transform_31, window_bounds = array<i64: 1, 1, 32>}, {transform_indices = @transform_32, window_bounds = array<i64: 1, 64, 32>}, {transform_indices = @transform_33, window_bounds = array<i64: 1, 1, 64>}, {transform_indices = @transform_34, window_bounds = array<i64: 1, 32, 64>}, {transform_indices = @transform_35, window_bounds = array<i64: 1, 1, 32>}, {transform_indices = @transform_36, window_bounds = array<i64: 1, 1, 32>}, {transform_indices = @transform_37, window_bounds = array<i64: 1, 1, 32>}, {pipeline_mode = #tpu.pipeline_mode<synchronous>, transform_indices = @transform_38, window_bounds = array<i64: 16, 32>}]} {
    %c0_i32 = arith.constant 0 : i32
    %0 = arith.cmpi eq, %arg0, %c0_i32 : i32
    %1 = arith.extui %0 : i1 to i32
    %c0_i32_0 = arith.constant 0 : i32
    %2 = arith.cmpi ne, %1, %c0_i32_0 : i32
    scf.if %2 {
      %c0_178 = arith.constant 0 : index
      %c0_179 = arith.constant 0 : index
      %330 = vector.load %arg1[%c0_178, %c0_179] : memref<16x32xf32, #tpu.memory_space<vmem>>, vector<16x32xf32>
      %c0_180 = arith.constant 0 : index
      %c0_181 = arith.constant 0 : index
      %331 = vector.load %arg40[%c0_180, %c0_181] : memref<16x32xf32, #tpu.memory_space<vmem>>, vector<16x32xf32>
      tpu.vector_store %arg40[%c0_180, %c0_181], %330 {strides = array<i32>} : memref<16x32xf32, #tpu.memory_space<vmem>>, vector<16x32xf32>,
    } else {
    }
    %c0 = arith.constant 0 : index
    %c0_1 = arith.constant 0 : index
    %3 = vector.load %arg40[%c0, %c0_1] : memref<16x32xf32, #tpu.memory_space<vmem>>, vector<16x32xf32>
    %c0_2 = arith.constant 0 : index
    %c0_3 = arith.constant 0 : index
    %4 = vector.load %arg2[%c0_2, %c0_3] : memref<16x32xf32, #tpu.memory_space<vmem>>, vector<16x32xf32>
    %5 = arith.addf %3, %4 : vector<16x32xf32>
    %c0_4 = arith.constant 0 : index
    %c0_5 = arith.constant 0 : index
    %c0_6 = arith.constant 0 : index
    %6 = vector.load %arg17[%c0_4, %c0_5, %c0_6] : memref<1x64x32xf32, #tpu.memory_space<vmem>>, vector<1x64x32xf32>
    %7 = vector.shape_cast %6 : vector<1x64x32xf32> to vector<64x32xf32>
    %cst = arith.constant dense<0.000000e+00> : vector<16x64xf32>
    %8 = tpu.matmul %5, %7, %cst {dimension_numbers = #tpu.dot_dimension_numbers<[1], [1], [0], [0], [0, 0, 1, 0], [], []>} : vector<16x32xf32>, vector<64x32xf32>, vector<16x64xf32> -> vector<16x64xf32>
    %c0_7 = arith.constant 0 : index
    %c0_8 = arith.constant 0 : index
    %c0_9 = arith.constant 0 : index
    %9 = vector.load %arg18[%c0_7, %c0_8, %c0_9] : memref<1x1x64xf32, #tpu.memory_space<vmem>>, vector<1x1x64xf32>
    %10 = vector.shape_cast %9 : vector<1x1x64xf32> to vector<1x64xf32>
    %11 = vector.broadcast %10 : vector<1x64xf32> to vector<16x64xf32>
    %12 = arith.addf %8, %11 : vector<16x64xf32>
    %c0_10 = arith.constant 0 : index
    %c0_11 = arith.constant 0 : index
    %c0_12 = arith.constant 0 : index
    %13 = vector.load %arg19[%c0_10, %c0_11, %c0_12] : memref<1x32x32xf32, #tpu.memory_space<vmem>>, vector<1x32x32xf32>
    %14 = vector.shape_cast %13 : vector<1x32x32xf32> to vector<32x32xf32>
    %cst_13 = arith.constant dense<0.000000e+00> : vector<16x32xf32>
    %15 = tpu.matmul %3, %14, %cst_13 {dimension_numbers = #tpu.dot_dimension_numbers<[1], [1], [0], [0], [0, 0, 1, 0], [], []>} : vector<16x32xf32>, vector<32x32xf32>, vector<16x32xf32> -> vector<16x32xf32>
    %c0_14 = arith.constant 0 : index
    %c0_15 = arith.constant 0 : index
    %c0_16 = arith.constant 0 : index
    %16 = vector.load %arg20[%c0_14, %c0_15, %c0_16] : memref<1x1x32xf32, #tpu.memory_space<vmem>>, vector<1x1x32xf32>
    %17 = vector.shape_cast %16 : vector<1x1x32xf32> to vector<1x32xf32>
    %18 = vector.broadcast %17 : vector<1x32xf32> to vector<16x32xf32>
    %19 = arith.addf %15, %18 : vector<16x32xf32>
    %20 = vector.extract_strided_slice %12 {offsets = [0, 0], sizes = [16, 32], strides = [1, 1]} : vector<16x64xf32> to vector<16x32xf32>
    %cst_17 = arith.constant 0.353553385 : f32
    %21 = vector.broadcast %cst_17 : f32 to vector<16x32xf32>
    %22 = arith.mulf %20, %21 : vector<16x32xf32>
    %23 = vector.extract_strided_slice %12 {offsets = [0, 32], sizes = [16, 32], strides = [1, 1]} : vector<16x64xf32> to vector<16x32xf32>
    %c0_18 = arith.constant 0 : index
    %c0_19 = arith.constant 0 : index
    %24 = vector.load %arg6[%c0_18, %c0_19] : memref<64x32xf32, #tpu.memory_space<vmem>>, vector<64x32xf32>
    %25 = tpu.concatenate %23, %23, %23, %23 in 0 : vector<16x32xf32>, vector<16x32xf32>, vector<16x32xf32>, vector<16x32xf32> -> vector<64x32xf32>
    %26 = arith.mulf %25, %24 : vector<64x32xf32>
    %27 = tpu.concatenate %19, %19, %19, %19 in 0 : vector<16x32xf32>, vector<16x32xf32>, vector<16x32xf32>, vector<16x32xf32> -> vector<64x32xf32>
    %28 = arith.mulf %27, %24 : vector<64x32xf32>
    %cst_20 = arith.constant dense<0.000000e+00> : vector<16x64xf32>
    %29 = tpu.matmul %22, %26, %cst_20 {dimension_numbers = #tpu.dot_dimension_numbers<[1], [1], [0], [0], [0, 0, 1, 0], [], []>} : vector<16x32xf32>, vector<64x32xf32>, vector<16x64xf32> -> vector<16x64xf32>
    %c0_21 = arith.constant 0 : index
    %c0_22 = arith.constant 0 : index
    %30 = vector.load %arg7[%c0_21, %c0_22] : memref<64x64xf32, #tpu.memory_space<vmem>>, vector<64x64xf32>
    %cst_23 = arith.constant dense<0xFF800000> : vector<16xf32>
    %31 = vector.multi_reduction <maximumf>, %29, %cst_23 [1] : vector<16x64xf32> to vector<16xf32>
    %32 = vector.shape_cast %31 : vector<16xf32> to vector<16x1xf32>
    %33 = vector.broadcast %32 : vector<16x1xf32> to vector<16x64xf32>
    %34 = arith.subf %29, %33 : vector<16x64xf32>
    %35 = math.exp %34 : vector<16x64xf32>
    %cst_24 = arith.constant dense<0.000000e+00> : vector<16x64xf32>
    %36 = tpu.matmul %35, %30, %cst_24 {dimension_numbers = #tpu.dot_dimension_numbers<[1], [0], [0], [1], [0, 0, 1, 1], [], []>} : vector<16x64xf32>, vector<64x64xf32>, vector<16x64xf32> -> vector<16x64xf32>
    %cst_25 = arith.constant 9.99999996E-13 : f32
    %37 = vector.broadcast %cst_25 : f32 to vector<16x64xf32>
    %38 = arith.addf %36, %37 : vector<16x64xf32>
    %39 = tpu.reciprocal %38 {approx = true} : vector<16x64xf32> -> vector<16x64xf32>
    %40 = arith.mulf %35, %39 : vector<16x64xf32>
    %c0_26 = arith.constant 0 : index
    %c0_27 = arith.constant 0 : index
    %41 = vector.load %arg8[%c0_26, %c0_27] : memref<16x64xf32, #tpu.memory_space<vmem>>, vector<16x64xf32>
    %42 = arith.mulf %40, %41 : vector<16x64xf32>
    %cst_28 = arith.constant dense<0.000000e+00> : vector<16x32xf32>
    %43 = tpu.matmul %42, %28, %cst_28 {dimension_numbers = #tpu.dot_dimension_numbers<[1], [0], [0], [1], [0, 0, 1, 1], [], []>} : vector<16x64xf32>, vector<64x32xf32>, vector<16x32xf32> -> vector<16x32xf32>
    %c0_29 = arith.constant 0 : index
    %c0_30 = arith.constant 0 : index
    %c0_31 = arith.constant 0 : index
    %44 = vector.load %arg21[%c0_29, %c0_30, %c0_31] : memref<1x32x32xf32, #tpu.memory_space<vmem>>, vector<1x32x32xf32>
    %45 = vector.shape_cast %44 : vector<1x32x32xf32> to vector<32x32xf32>
    %cst_32 = arith.constant dense<0.000000e+00> : vector<16x32xf32>
    %46 = tpu.matmul %43, %45, %cst_32 {dimension_numbers = #tpu.dot_dimension_numbers<[1], [1], [0], [0], [0, 0, 1, 0], [], []>} : vector<16x32xf32>, vector<32x32xf32>, vector<16x32xf32> -> vector<16x32xf32>
    %c0_33 = arith.constant 0 : index
    %c0_34 = arith.constant 0 : index
    %c0_35 = arith.constant 0 : index
    %47 = vector.load %arg22[%c0_33, %c0_34, %c0_35] : memref<1x1x32xf32, #tpu.memory_space<vmem>>, vector<1x1x32xf32>
    %48 = vector.shape_cast %47 : vector<1x1x32xf32> to vector<1x32xf32>
    %49 = vector.broadcast %48 : vector<1x32xf32> to vector<16x32xf32>
    %50 = arith.addf %46, %49 : vector<16x32xf32>
    %51 = arith.addf %3, %50 : vector<16x32xf32>
    %c0_36 = arith.constant 0 : index
    %c0_37 = arith.constant 0 : index
    %c0_38 = arith.constant 0 : index
    %52 = vector.load %arg23[%c0_36, %c0_37, %c0_38] : memref<1x1x32xf32, #tpu.memory_space<vmem>>, vector<1x1x32xf32>
    %53 = vector.shape_cast %52 : vector<1x1x32xf32> to vector<1x32xf32>
    %c0_39 = arith.constant 0 : index
    %c0_40 = arith.constant 0 : index
    %c0_41 = arith.constant 0 : index
    %54 = vector.load %arg24[%c0_39, %c0_40, %c0_41] : memref<1x1x32xf32, #tpu.memory_space<vmem>>, vector<1x1x32xf32>
    %55 = vector.shape_cast %54 : vector<1x1x32xf32> to vector<1x32xf32>
    %cst_42 = arith.constant dense<0.000000e+00> : vector<16xf32>
    %56 = vector.multi_reduction <add>, %51, %cst_42 [1] : vector<16x32xf32> to vector<16xf32>
    %57 = vector.shape_cast %56 : vector<16xf32> to vector<16x1xf32>
    %cst_43 = arith.constant 3.200000e+01 : f32
    %58 = vector.broadcast %cst_43 : f32 to vector<16x1xf32>
    %59 = arith.divf %57, %58 : vector<16x1xf32>
    %60 = vector.broadcast %59 : vector<16x1xf32> to vector<16x32xf32>
    %61 = arith.subf %51, %60 : vector<16x32xf32>
    %62 = arith.mulf %61, %61 : vector<16x32xf32>
    %cst_44 = arith.constant dense<0.000000e+00> : vector<16xf32>
    %63 = vector.multi_reduction <add>, %62, %cst_44 [1] : vector<16x32xf32> to vector<16xf32>
    %64 = vector.shape_cast %63 : vector<16xf32> to vector<16x1xf32>
    %cst_45 = arith.constant 3.200000e+01 : f32
    %65 = vector.broadcast %cst_45 : f32 to vector<16x1xf32>
    %66 = arith.divf %64, %65 : vector<16x1xf32>
    %cst_46 = arith.constant 9.99999974E-6 : f32
    %67 = vector.broadcast %cst_46 : f32 to vector<16x1xf32>
    %68 = arith.addf %66, %67 : vector<16x1xf32>
    %69 = math.rsqrt %68 : vector<16x1xf32>
    %70 = vector.broadcast %69 : vector<16x1xf32> to vector<16x32xf32>
    %71 = arith.mulf %61, %70 : vector<16x32xf32>
    %72 = vector.broadcast %53 : vector<1x32xf32> to vector<16x32xf32>
    %73 = arith.mulf %71, %72 : vector<16x32xf32>
    %74 = vector.broadcast %55 : vector<1x32xf32> to vector<16x32xf32>
    %75 = arith.addf %73, %74 : vector<16x32xf32>
    %76 = arith.addf %75, %4 : vector<16x32xf32>
    %c0_47 = arith.constant 0 : index
    %c0_48 = arith.constant 0 : index
    %c0_49 = arith.constant 0 : index
    %77 = vector.load %arg25[%c0_47, %c0_48, %c0_49] : memref<1x96x32xf32, #tpu.memory_space<vmem>>, vector<1x96x32xf32>
    %78 = vector.shape_cast %77 : vector<1x96x32xf32> to vector<96x32xf32>
    %cst_50 = arith.constant dense<0.000000e+00> : vector<16x96xf32>
    %79 = tpu.matmul %76, %78, %cst_50 {dimension_numbers = #tpu.dot_dimension_numbers<[1], [1], [0], [0], [0, 0, 1, 0], [], []>} : vector<16x32xf32>, vector<96x32xf32>, vector<16x96xf32> -> vector<16x96xf32>
    %c0_51 = arith.constant 0 : index
    %c0_52 = arith.constant 0 : index
    %c0_53 = arith.constant 0 : index
    %80 = vector.load %arg26[%c0_51, %c0_52, %c0_53] : memref<1x1x96xf32, #tpu.memory_space<vmem>>, vector<1x1x96xf32>
    %81 = vector.shape_cast %80 : vector<1x1x96xf32> to vector<1x96xf32>
    %82 = vector.broadcast %81 : vector<1x96xf32> to vector<16x96xf32>
    %83 = arith.addf %79, %82 : vector<16x96xf32>
    %c0_54 = arith.constant 0 : index
    %c0_55 = arith.constant 0 : index
    %84 = vector.load %arg5[%c0_54, %c0_55] : memref<160x32xf32, #tpu.memory_space<vmem>>, vector<160x32xf32>
    %c0_56 = arith.constant 0 : index
    %c0_57 = arith.constant 0 : index
    %c0_58 = arith.constant 0 : index
    %85 = vector.load %arg27[%c0_56, %c0_57, %c0_58] : memref<1x32x32xf32, #tpu.memory_space<vmem>>, vector<1x32x32xf32>
    %86 = vector.shape_cast %85 : vector<1x32x32xf32> to vector<32x32xf32>
    %cst_59 = arith.constant dense<0.000000e+00> : vector<160x32xf32>
    %87 = tpu.matmul %84, %86, %cst_59 {dimension_numbers = #tpu.dot_dimension_numbers<[1], [1], [0], [0], [0, 0, 1, 0], [], []>} : vector<160x32xf32>, vector<32x32xf32>, vector<160x32xf32> -> vector<160x32xf32>
    %c0_60 = arith.constant 0 : index
    %c0_61 = arith.constant 0 : index
    %c0_62 = arith.constant 0 : index
    %88 = vector.load %arg28[%c0_60, %c0_61, %c0_62] : memref<1x1x32xf32, #tpu.memory_space<vmem>>, vector<1x1x32xf32>
    %89 = vector.shape_cast %88 : vector<1x1x32xf32> to vector<1x32xf32>
    %90 = vector.broadcast %89 : vector<1x32xf32> to vector<160x32xf32>
    %91 = arith.addf %87, %90 : vector<160x32xf32>
    %c0_63 = arith.constant 0 : index
    %c0_64 = arith.constant 0 : index
    %92 = vector.load %arg3[%c0_63, %c0_64] : memref<16x32xf32, #tpu.memory_space<vmem>>, vector<16x32xf32>
    %93 = vector.extract_strided_slice %83 {offsets = [0, 0], sizes = [16, 32], strides = [1, 1]} : vector<16x96xf32> to vector<16x32xf32>
    %94 = arith.addf %92, %93 : vector<16x32xf32>
    %c0_65 = arith.constant 0 : index
    %c0_66 = arith.constant 0 : index
    %95 = vector.load %arg4[%c0_65, %c0_66] : memref<16x32xf32, #tpu.memory_space<vmem>>, vector<16x32xf32>
    %96 = vector.extract_strided_slice %83 {offsets = [0, 32], sizes = [16, 32], strides = [1, 1]} : vector<16x96xf32> to vector<16x32xf32>
    %97 = arith.addf %95, %96 : vector<16x32xf32>
    %98 = vector.extract_strided_slice %83 {offsets = [0, 64], sizes = [16, 32], strides = [1, 1]} : vector<16x96xf32> to vector<16x32xf32>
    %c0_67 = arith.constant 0 : index
    %c0_68 = arith.constant 0 : index
    %99 = vector.load %arg9[%c0_67, %c0_68] : memref<32x32xf32, #tpu.memory_space<vmem>>, vector<32x32xf32>
    %cst_69 = arith.constant dense<0xFF800000> : vector<16xf32>
    %100 = vector.multi_reduction <maximumf>, %98, %cst_69 [1] : vector<16x32xf32> to vector<16xf32>
    %101 = vector.shape_cast %100 : vector<16xf32> to vector<16x1xf32>
    %102 = vector.broadcast %101 : vector<16x1xf32> to vector<16x32xf32>
    %103 = arith.subf %98, %102 : vector<16x32xf32>
    %104 = math.exp %103 : vector<16x32xf32>
    %cst_70 = arith.constant dense<0.000000e+00> : vector<16x32xf32>
    %105 = tpu.matmul %104, %99, %cst_70 {dimension_numbers = #tpu.dot_dimension_numbers<[1], [0], [0], [1], [0, 0, 1, 1], [], []>} : vector<16x32xf32>, vector<32x32xf32>, vector<16x32xf32> -> vector<16x32xf32>
    %cst_71 = arith.constant 9.99999996E-13 : f32
    %106 = vector.broadcast %cst_71 : f32 to vector<16x32xf32>
    %107 = arith.addf %105, %106 : vector<16x32xf32>
    %108 = tpu.reciprocal %107 {approx = true} : vector<16x32xf32> -> vector<16x32xf32>
    %109 = arith.mulf %104, %108 : vector<16x32xf32>
    %c0_72 = arith.constant 0 : index
    %c0_73 = arith.constant 0 : index
    %c0_74 = arith.constant 0 : index
    %110 = vector.load %arg10[%c0_72, %c0_73, %c0_74] : memref<4x1x32xf32, #tpu.memory_space<vmem>>, vector<1x1x32xf32>
    %111 = vector.shape_cast %110 : vector<1x1x32xf32> to vector<1x32xf32>
    %c1 = arith.constant 1 : index
    %c0_75 = arith.constant 0 : index
    %c0_76 = arith.constant 0 : index
    %112 = vector.load %arg10[%c1, %c0_75, %c0_76] : memref<4x1x32xf32, #tpu.memory_space<vmem>>, vector<1x1x32xf32>
    %113 = vector.shape_cast %112 : vector<1x1x32xf32> to vector<1x32xf32>
    %c2 = arith.constant 2 : index
    %c0_77 = arith.constant 0 : index
    %c0_78 = arith.constant 0 : index
    %114 = vector.load %arg10[%c2, %c0_77, %c0_78] : memref<4x1x32xf32, #tpu.memory_space<vmem>>, vector<1x1x32xf32>
    %115 = vector.shape_cast %114 : vector<1x1x32xf32> to vector<1x32xf32>
    %c3 = arith.constant 3 : index
    %c0_79 = arith.constant 0 : index
    %c0_80 = arith.constant 0 : index
    %116 = vector.load %arg10[%c3, %c0_79, %c0_80] : memref<4x1x32xf32, #tpu.memory_space<vmem>>, vector<1x1x32xf32>
    %117 = vector.shape_cast %116 : vector<1x1x32xf32> to vector<1x32xf32>
    %cst_81 = arith.constant 0.000000e+00 : f32
    %118 = vector.broadcast %cst_81 : f32 to vector<8x32xf32>
    %cst_82 = arith.constant 0.000000e+00 : f32
    %119 = vector.broadcast %cst_82 : f32 to vector<8x32xf32>
    %c0_83 = arith.constant 0 : index
    %c0_84 = arith.constant 0 : index
    %120 = vector.load %arg11[%c0_83, %c0_84] : memref<32x1024xf32, #tpu.memory_space<vmem>>, vector<32x1024xf32>
    %cst_85 = arith.constant dense<0.000000e+00> : vector<16x1024xf32>
    %121 = tpu.matmul %94, %120, %cst_85 {dimension_numbers = #tpu.dot_dimension_numbers<[1], [0], [0], [1], [0, 0, 1, 1], [], []>} : vector<16x32xf32>, vector<32x1024xf32>, vector<16x1024xf32> -> vector<16x1024xf32>
    %cst_86 = arith.constant dense<0.000000e+00> : vector<16x1024xf32>
    %122 = tpu.matmul %97, %120, %cst_86 {dimension_numbers = #tpu.dot_dimension_numbers<[1], [0], [0], [1], [0, 0, 1, 1], [], []>} : vector<16x32xf32>, vector<32x1024xf32>, vector<16x1024xf32> -> vector<16x1024xf32>
    %cst_87 = arith.constant dense<0.000000e+00> : vector<16x1024xf32>
    %123 = tpu.matmul %109, %120, %cst_87 {dimension_numbers = #tpu.dot_dimension_numbers<[1], [0], [0], [1], [0, 0, 1, 1], [], []>} : vector<16x32xf32>, vector<32x1024xf32>, vector<16x1024xf32> -> vector<16x1024xf32>
    %c0_88 = arith.constant 0 : index
    %c0_89 = arith.constant 0 : index
    %124 = vector.load %arg12[%c0_88, %c0_89] : memref<1x1024xf32, #tpu.memory_space<vmem>>, vector<1x1024xf32>
    %125 = vector.broadcast %124 : vector<1x1024xf32> to vector<16x1024xf32>
    %126 = arith.subf %125, %121 : vector<16x1024xf32>
    %127 = math.absf %126 : vector<16x1024xf32>
    %cst_90 = arith.constant 1.000000e+00 : f32
    %128 = vector.broadcast %cst_90 : f32 to vector<16x1024xf32>
    %129 = arith.subf %128, %127 : vector<16x1024xf32>
    %cst_91 = arith.constant 0.000000e+00 : f32
    %130 = vector.broadcast %cst_91 : f32 to vector<16x1024xf32>
    %131 = arith.maximumf %129, %130 : vector<16x1024xf32>
    %c0_92 = arith.constant 0 : index
    %c0_93 = arith.constant 0 : index
    %132 = vector.load %arg13[%c0_92, %c0_93] : memref<1x1024xf32, #tpu.memory_space<vmem>>, vector<1x1024xf32>
    %133 = vector.broadcast %132 : vector<1x1024xf32> to vector<16x1024xf32>
    %134 = arith.subf %133, %122 : vector<16x1024xf32>
    %135 = math.absf %134 : vector<16x1024xf32>
    %cst_94 = arith.constant 1.000000e+00 : f32
    %136 = vector.broadcast %cst_94 : f32 to vector<16x1024xf32>
    %137 = arith.subf %136, %135 : vector<16x1024xf32>
    %cst_95 = arith.constant 0.000000e+00 : f32
    %138 = vector.broadcast %cst_95 : f32 to vector<16x1024xf32>
    %139 = arith.maximumf %137, %138 : vector<16x1024xf32>
    %140 = arith.mulf %131, %139 : vector<16x1024xf32>
    %141 = arith.mulf %140, %123 : vector<16x1024xf32>
    %142 = vector.extract_strided_slice %91 {offsets = [0, 0], sizes = [64, 32], strides = [1, 1]} : vector<160x32xf32> to vector<64x32xf32>
    %143 = tpu.concatenate %142, %142, %142, %142 in 0 : vector<64x32xf32>, vector<64x32xf32>, vector<64x32xf32>, vector<64x32xf32> -> vector<256x32xf32>
    %144 = vector.extract_strided_slice %141 {offsets = [0, 0], sizes = [8, 256], strides = [1, 1]} : vector<16x1024xf32> to vector<8x256xf32>
    %cst_96 = arith.constant dense<0.000000e+00> : vector<8x32xf32>
    %145 = tpu.matmul %144, %143, %cst_96 {dimension_numbers = #tpu.dot_dimension_numbers<[1], [0], [0], [1], [0, 0, 1, 1], [], []>} : vector<8x256xf32>, vector<256x32xf32>, vector<8x32xf32> -> vector<8x32xf32>
    %146 = vector.broadcast %111 : vector<1x32xf32> to vector<8x32xf32>
    %147 = arith.mulf %145, %146 : vector<8x32xf32>
    %148 = arith.addf %118, %147 : vector<8x32xf32>
    %149 = vector.extract_strided_slice %141 {offsets = [0, 256], sizes = [8, 256], strides = [1, 1]} : vector<16x1024xf32> to vector<8x256xf32>
    %cst_97 = arith.constant dense<0.000000e+00> : vector<8x32xf32>
    %150 = tpu.matmul %149, %143, %cst_97 {dimension_numbers = #tpu.dot_dimension_numbers<[1], [0], [0], [1], [0, 0, 1, 1], [], []>} : vector<8x256xf32>, vector<256x32xf32>, vector<8x32xf32> -> vector<8x32xf32>
    %151 = vector.broadcast %113 : vector<1x32xf32> to vector<8x32xf32>
    %152 = arith.mulf %150, %151 : vector<8x32xf32>
    %153 = arith.addf %148, %152 : vector<8x32xf32>
    %154 = vector.extract_strided_slice %141 {offsets = [0, 512], sizes = [8, 256], strides = [1, 1]} : vector<16x1024xf32> to vector<8x256xf32>
    %cst_98 = arith.constant dense<0.000000e+00> : vector<8x32xf32>
    %155 = tpu.matmul %154, %143, %cst_98 {dimension_numbers = #tpu.dot_dimension_numbers<[1], [0], [0], [1], [0, 0, 1, 1], [], []>} : vector<8x256xf32>, vector<256x32xf32>, vector<8x32xf32> -> vector<8x32xf32>
    %156 = vector.broadcast %115 : vector<1x32xf32> to vector<8x32xf32>
    %157 = arith.mulf %155, %156 : vector<8x32xf32>
    %158 = arith.addf %153, %157 : vector<8x32xf32>
    %159 = vector.extract_strided_slice %141 {offsets = [0, 768], sizes = [8, 256], strides = [1, 1]} : vector<16x1024xf32> to vector<8x256xf32>
    %cst_99 = arith.constant dense<0.000000e+00> : vector<8x32xf32>
    %160 = tpu.matmul %159, %143, %cst_99 {dimension_numbers = #tpu.dot_dimension_numbers<[1], [0], [0], [1], [0, 0, 1, 1], [], []>} : vector<8x256xf32>, vector<256x32xf32>, vector<8x32xf32> -> vector<8x32xf32>
    %161 = vector.broadcast %117 : vector<1x32xf32> to vector<8x32xf32>
    %162 = arith.mulf %160, %161 : vector<8x32xf32>
    %163 = arith.addf %158, %162 : vector<8x32xf32>
    %164 = vector.extract_strided_slice %91 {offsets = [80, 0], sizes = [64, 32], strides = [1, 1]} : vector<160x32xf32> to vector<64x32xf32>
    %165 = tpu.concatenate %164, %164, %164, %164 in 0 : vector<64x32xf32>, vector<64x32xf32>, vector<64x32xf32>, vector<64x32xf32> -> vector<256x32xf32>
    %166 = vector.extract_strided_slice %141 {offsets = [8, 0], sizes = [8, 256], strides = [1, 1]} : vector<16x1024xf32> to vector<8x256xf32>
    %cst_100 = arith.constant dense<0.000000e+00> : vector<8x32xf32>
    %167 = tpu.matmul %166, %165, %cst_100 {dimension_numbers = #tpu.dot_dimension_numbers<[1], [0], [0], [1], [0, 0, 1, 1], [], []>} : vector<8x256xf32>, vector<256x32xf32>, vector<8x32xf32> -> vector<8x32xf32>
    %168 = vector.broadcast %111 : vector<1x32xf32> to vector<8x32xf32>
    %169 = arith.mulf %167, %168 : vector<8x32xf32>
    %170 = arith.addf %119, %169 : vector<8x32xf32>
    %171 = vector.extract_strided_slice %141 {offsets = [8, 256], sizes = [8, 256], strides = [1, 1]} : vector<16x1024xf32> to vector<8x256xf32>
    %cst_101 = arith.constant dense<0.000000e+00> : vector<8x32xf32>
    %172 = tpu.matmul %171, %165, %cst_101 {dimension_numbers = #tpu.dot_dimension_numbers<[1], [0], [0], [1], [0, 0, 1, 1], [], []>} : vector<8x256xf32>, vector<256x32xf32>, vector<8x32xf32> -> vector<8x32xf32>
    %173 = vector.broadcast %113 : vector<1x32xf32> to vector<8x32xf32>
    %174 = arith.mulf %172, %173 : vector<8x32xf32>
    %175 = arith.addf %170, %174 : vector<8x32xf32>
    %176 = vector.extract_strided_slice %141 {offsets = [8, 512], sizes = [8, 256], strides = [1, 1]} : vector<16x1024xf32> to vector<8x256xf32>
    %cst_102 = arith.constant dense<0.000000e+00> : vector<8x32xf32>
    %177 = tpu.matmul %176, %165, %cst_102 {dimension_numbers = #tpu.dot_dimension_numbers<[1], [0], [0], [1], [0, 0, 1, 1], [], []>} : vector<8x256xf32>, vector<256x32xf32>, vector<8x32xf32> -> vector<8x32xf32>
    %178 = vector.broadcast %115 : vector<1x32xf32> to vector<8x32xf32>
    %179 = arith.mulf %177, %178 : vector<8x32xf32>
    %180 = arith.addf %175, %179 : vector<8x32xf32>
    %181 = vector.extract_strided_slice %141 {offsets = [8, 768], sizes = [8, 256], strides = [1, 1]} : vector<16x1024xf32> to vector<8x256xf32>
    %cst_103 = arith.constant dense<0.000000e+00> : vector<8x32xf32>
    %182 = tpu.matmul %181, %165, %cst_103 {dimension_numbers = #tpu.dot_dimension_numbers<[1], [0], [0], [1], [0, 0, 1, 1], [], []>} : vector<8x256xf32>, vector<256x32xf32>, vector<8x32xf32> -> vector<8x32xf32>
    %183 = vector.broadcast %117 : vector<1x32xf32> to vector<8x32xf32>
    %184 = arith.mulf %182, %183 : vector<8x32xf32>
    %185 = arith.addf %180, %184 : vector<8x32xf32>
    %c0_104 = arith.constant 0 : index
    %c0_105 = arith.constant 0 : index
    %186 = vector.load %arg14[%c0_104, %c0_105] : memref<32x256xf32, #tpu.memory_space<vmem>>, vector<32x256xf32>
    %cst_106 = arith.constant dense<0.000000e+00> : vector<16x256xf32>
    %187 = tpu.matmul %94, %186, %cst_106 {dimension_numbers = #tpu.dot_dimension_numbers<[1], [0], [0], [1], [0, 0, 1, 1], [], []>} : vector<16x32xf32>, vector<32x256xf32>, vector<16x256xf32> -> vector<16x256xf32>
    %cst_107 = arith.constant dense<0.000000e+00> : vector<16x256xf32>
    %188 = tpu.matmul %97, %186, %cst_107 {dimension_numbers = #tpu.dot_dimension_numbers<[1], [0], [0], [1], [0, 0, 1, 1], [], []>} : vector<16x32xf32>, vector<32x256xf32>, vector<16x256xf32> -> vector<16x256xf32>
    %cst_108 = arith.constant dense<0.000000e+00> : vector<16x256xf32>
    %189 = tpu.matmul %109, %186, %cst_108 {dimension_numbers = #tpu.dot_dimension_numbers<[1], [0], [0], [1], [0, 0, 1, 1], [], []>} : vector<16x32xf32>, vector<32x256xf32>, vector<16x256xf32> -> vector<16x256xf32>
    %c0_109 = arith.constant 0 : index
    %c0_110 = arith.constant 0 : index
    %190 = vector.load %arg15[%c0_109, %c0_110] : memref<1x256xf32, #tpu.memory_space<vmem>>, vector<1x256xf32>
    %191 = vector.broadcast %190 : vector<1x256xf32> to vector<16x256xf32>
    %192 = arith.subf %191, %187 : vector<16x256xf32>
    %193 = math.absf %192 : vector<16x256xf32>
    %cst_111 = arith.constant 1.000000e+00 : f32
    %194 = vector.broadcast %cst_111 : f32 to vector<16x256xf32>
    %195 = arith.subf %194, %193 : vector<16x256xf32>
    %cst_112 = arith.constant 0.000000e+00 : f32
    %196 = vector.broadcast %cst_112 : f32 to vector<16x256xf32>
    %197 = arith.maximumf %195, %196 : vector<16x256xf32>
    %c0_113 = arith.constant 0 : index
    %c0_114 = arith.constant 0 : index
    %198 = vector.load %arg16[%c0_113, %c0_114] : memref<1x256xf32, #tpu.memory_space<vmem>>, vector<1x256xf32>
    %199 = vector.broadcast %198 : vector<1x256xf32> to vector<16x256xf32>
    %200 = arith.subf %199, %188 : vector<16x256xf32>
    %201 = math.absf %200 : vector<16x256xf32>
    %cst_115 = arith.constant 1.000000e+00 : f32
    %202 = vector.broadcast %cst_115 : f32 to vector<16x256xf32>
    %203 = arith.subf %202, %201 : vector<16x256xf32>
    %cst_116 = arith.constant 0.000000e+00 : f32
    %204 = vector.broadcast %cst_116 : f32 to vector<16x256xf32>
    %205 = arith.maximumf %203, %204 : vector<16x256xf32>
    %206 = arith.mulf %197, %205 : vector<16x256xf32>
    %207 = arith.mulf %206, %189 : vector<16x256xf32>
    %208 = vector.extract_strided_slice %91 {offsets = [64, 0], sizes = [16, 32], strides = [1, 1]} : vector<160x32xf32> to vector<16x32xf32>
    %209 = tpu.concatenate %208, %208, %208, %208 in 0 : vector<16x32xf32>, vector<16x32xf32>, vector<16x32xf32>, vector<16x32xf32> -> vector<64x32xf32>
    %210 = vector.extract_strided_slice %207 {offsets = [0, 0], sizes = [8, 64], strides = [1, 1]} : vector<16x256xf32> to vector<8x64xf32>
    %cst_117 = arith.constant dense<0.000000e+00> : vector<8x32xf32>
    %211 = tpu.matmul %210, %209, %cst_117 {dimension_numbers = #tpu.dot_dimension_numbers<[1], [0], [0], [1], [0, 0, 1, 1], [], []>} : vector<8x64xf32>, vector<64x32xf32>, vector<8x32xf32> -> vector<8x32xf32>
    %212 = vector.broadcast %111 : vector<1x32xf32> to vector<8x32xf32>
    %213 = arith.mulf %211, %212 : vector<8x32xf32>
    %214 = arith.addf %163, %213 : vector<8x32xf32>
    %215 = vector.extract_strided_slice %207 {offsets = [0, 64], sizes = [8, 64], strides = [1, 1]} : vector<16x256xf32> to vector<8x64xf32>
    %cst_118 = arith.constant dense<0.000000e+00> : vector<8x32xf32>
    %216 = tpu.matmul %215, %209, %cst_118 {dimension_numbers = #tpu.dot_dimension_numbers<[1], [0], [0], [1], [0, 0, 1, 1], [], []>} : vector<8x64xf32>, vector<64x32xf32>, vector<8x32xf32> -> vector<8x32xf32>
    %217 = vector.broadcast %113 : vector<1x32xf32> to vector<8x32xf32>
    %218 = arith.mulf %216, %217 : vector<8x32xf32>
    %219 = arith.addf %214, %218 : vector<8x32xf32>
    %220 = vector.extract_strided_slice %207 {offsets = [0, 128], sizes = [8, 64], strides = [1, 1]} : vector<16x256xf32> to vector<8x64xf32>
    %cst_119 = arith.constant dense<0.000000e+00> : vector<8x32xf32>
    %221 = tpu.matmul %220, %209, %cst_119 {dimension_numbers = #tpu.dot_dimension_numbers<[1], [0], [0], [1], [0, 0, 1, 1], [], []>} : vector<8x64xf32>, vector<64x32xf32>, vector<8x32xf32> -> vector<8x32xf32>
    %222 = vector.broadcast %115 : vector<1x32xf32> to vector<8x32xf32>
    %223 = arith.mulf %221, %222 : vector<8x32xf32>
    %224 = arith.addf %219, %223 : vector<8x32xf32>
    %225 = vector.extract_strided_slice %207 {offsets = [0, 192], sizes = [8, 64], strides = [1, 1]} : vector<16x256xf32> to vector<8x64xf32>
    %cst_120 = arith.constant dense<0.000000e+00> : vector<8x32xf32>
    %226 = tpu.matmul %225, %209, %cst_120 {dimension_numbers = #tpu.dot_dimension_numbers<[1], [0], [0], [1], [0, 0, 1, 1], [], []>} : vector<8x64xf32>, vector<64x32xf32>, vector<8x32xf32> -> vector<8x32xf32>
    %227 = vector.broadcast %117 : vector<1x32xf32> to vector<8x32xf32>
    %228 = arith.mulf %226, %227 : vector<8x32xf32>
    %229 = arith.addf %224, %228 : vector<8x32xf32>
    %230 = vector.extract_strided_slice %91 {offsets = [144, 0], sizes = [16, 32], strides = [1, 1]} : vector<160x32xf32> to vector<16x32xf32>
    %231 = tpu.concatenate %230, %230, %230, %230 in 0 : vector<16x32xf32>, vector<16x32xf32>, vector<16x32xf32>, vector<16x32xf32> -> vector<64x32xf32>
    %232 = vector.extract_strided_slice %207 {offsets = [8, 0], sizes = [8, 64], strides = [1, 1]} : vector<16x256xf32> to vector<8x64xf32>
    %cst_121 = arith.constant dense<0.000000e+00> : vector<8x32xf32>
    %233 = tpu.matmul %232, %231, %cst_121 {dimension_numbers = #tpu.dot_dimension_numbers<[1], [0], [0], [1], [0, 0, 1, 1], [], []>} : vector<8x64xf32>, vector<64x32xf32>, vector<8x32xf32> -> vector<8x32xf32>
    %234 = vector.broadcast %111 : vector<1x32xf32> to vector<8x32xf32>
    %235 = arith.mulf %233, %234 : vector<8x32xf32>
    %236 = arith.addf %185, %235 : vector<8x32xf32>
    %237 = vector.extract_strided_slice %207 {offsets = [8, 64], sizes = [8, 64], strides = [1, 1]} : vector<16x256xf32> to vector<8x64xf32>
    %cst_122 = arith.constant dense<0.000000e+00> : vector<8x32xf32>
    %238 = tpu.matmul %237, %231, %cst_122 {dimension_numbers = #tpu.dot_dimension_numbers<[1], [0], [0], [1], [0, 0, 1, 1], [], []>} : vector<8x64xf32>, vector<64x32xf32>, vector<8x32xf32> -> vector<8x32xf32>
    %239 = vector.broadcast %113 : vector<1x32xf32> to vector<8x32xf32>
    %240 = arith.mulf %238, %239 : vector<8x32xf32>
    %241 = arith.addf %236, %240 : vector<8x32xf32>
    %242 = vector.extract_strided_slice %207 {offsets = [8, 128], sizes = [8, 64], strides = [1, 1]} : vector<16x256xf32> to vector<8x64xf32>
    %cst_123 = arith.constant dense<0.000000e+00> : vector<8x32xf32>
    %243 = tpu.matmul %242, %231, %cst_123 {dimension_numbers = #tpu.dot_dimension_numbers<[1], [0], [0], [1], [0, 0, 1, 1], [], []>} : vector<8x64xf32>, vector<64x32xf32>, vector<8x32xf32> -> vector<8x32xf32>
    %244 = vector.broadcast %115 : vector<1x32xf32> to vector<8x32xf32>
    %245 = arith.mulf %243, %244 : vector<8x32xf32>
    %246 = arith.addf %241, %245 : vector<8x32xf32>
    %247 = vector.extract_strided_slice %207 {offsets = [8, 192], sizes = [8, 64], strides = [1, 1]} : vector<16x256xf32> to vector<8x64xf32>
    %cst_124 = arith.constant dense<0.000000e+00> : vector<8x32xf32>
    %248 = tpu.matmul %247, %231, %cst_124 {dimension_numbers = #tpu.dot_dimension_numbers<[1], [0], [0], [1], [0, 0, 1, 1], [], []>} : vector<8x64xf32>, vector<64x32xf32>, vector<8x32xf32> -> vector<8x32xf32>
    %249 = vector.broadcast %117 : vector<1x32xf32> to vector<8x32xf32>
    %250 = arith.mulf %248, %249 : vector<8x32xf32>
    %251 = arith.addf %246, %250 : vector<8x32xf32>
    %c0_125 = arith.constant 0 : index
    %c0_126 = arith.constant 0 : index
    %252 = vector.load %arg41[%c0_125, %c0_126] : memref<16x32xf32, #tpu.memory_space<vmem>>, vector<8x32xf32>
    tpu.vector_store %arg41[%c0_125, %c0_126], %229 {strides = array<i32>} : memref<16x32xf32, #tpu.memory_space<vmem>>, vector<8x32xf32>,
    %c8 = arith.constant 8 : index
    %c0_127 = arith.constant 0 : index
    %253 = vector.load %arg41[%c8, %c0_127] : memref<16x32xf32, #tpu.memory_space<vmem>>, vector<8x32xf32>
    tpu.vector_store %arg41[%c8, %c0_127], %251 {strides = array<i32>} : memref<16x32xf32, #tpu.memory_space<vmem>>, vector<8x32xf32>,
    %c0_128 = arith.constant 0 : index
    %c0_129 = arith.constant 0 : index
    %254 = vector.load %arg41[%c0_128, %c0_129] : memref<16x32xf32, #tpu.memory_space<vmem>>, vector<16x32xf32>
    %c0_130 = arith.constant 0 : index
    %c0_131 = arith.constant 0 : index
    %c0_132 = arith.constant 0 : index
    %255 = vector.load %arg29[%c0_130, %c0_131, %c0_132] : memref<1x32x32xf32, #tpu.memory_space<vmem>>, vector<1x32x32xf32>
    %256 = vector.shape_cast %255 : vector<1x32x32xf32> to vector<32x32xf32>
    %cst_133 = arith.constant dense<0.000000e+00> : vector<16x32xf32>
    %257 = tpu.matmul %254, %256, %cst_133 {dimension_numbers = #tpu.dot_dimension_numbers<[1], [1], [0], [0], [0, 0, 1, 0], [], []>} : vector<16x32xf32>, vector<32x32xf32>, vector<16x32xf32> -> vector<16x32xf32>
    %c0_134 = arith.constant 0 : index
    %c0_135 = arith.constant 0 : index
    %c0_136 = arith.constant 0 : index
    %258 = vector.load %arg30[%c0_134, %c0_135, %c0_136] : memref<1x1x32xf32, #tpu.memory_space<vmem>>, vector<1x1x32xf32>
    %259 = vector.shape_cast %258 : vector<1x1x32xf32> to vector<1x32xf32>
    %260 = vector.broadcast %259 : vector<1x32xf32> to vector<16x32xf32>
    %261 = arith.addf %257, %260 : vector<16x32xf32>
    %262 = arith.addf %75, %261 : vector<16x32xf32>
    %c0_137 = arith.constant 0 : index
    %c0_138 = arith.constant 0 : index
    %c0_139 = arith.constant 0 : index
    %263 = vector.load %arg31[%c0_137, %c0_138, %c0_139] : memref<1x1x32xf32, #tpu.memory_space<vmem>>, vector<1x1x32xf32>
    %264 = vector.shape_cast %263 : vector<1x1x32xf32> to vector<1x32xf32>
    %c0_140 = arith.constant 0 : index
    %c0_141 = arith.constant 0 : index
    %c0_142 = arith.constant 0 : index
    %265 = vector.load %arg32[%c0_140, %c0_141, %c0_142] : memref<1x1x32xf32, #tpu.memory_space<vmem>>, vector<1x1x32xf32>
    %266 = vector.shape_cast %265 : vector<1x1x32xf32> to vector<1x32xf32>
    %cst_143 = arith.constant dense<0.000000e+00> : vector<16xf32>
    %267 = vector.multi_reduction <add>, %262, %cst_143 [1] : vector<16x32xf32> to vector<16xf32>
    %268 = vector.shape_cast %267 : vector<16xf32> to vector<16x1xf32>
    %cst_144 = arith.constant 3.200000e+01 : f32
    %269 = vector.broadcast %cst_144 : f32 to vector<16x1xf32>
    %270 = arith.divf %268, %269 : vector<16x1xf32>
    %271 = vector.broadcast %270 : vector<16x1xf32> to vector<16x32xf32>
    %272 = arith.subf %262, %271 : vector<16x32xf32>
    %273 = arith.mulf %272, %272 : vector<16x32xf32>
    %cst_145 = arith.constant dense<0.000000e+00> : vector<16xf32>
    %274 = vector.multi_reduction <add>, %273, %cst_145 [1] : vector<16x32xf32> to vector<16xf32>
    %275 = vector.shape_cast %274 : vector<16xf32> to vector<16x1xf32>
    %cst_146 = arith.constant 3.200000e+01 : f32
    %276 = vector.broadcast %cst_146 : f32 to vector<16x1xf32>
    %277 = arith.divf %275, %276 : vector<16x1xf32>
    %cst_147 = arith.constant 9.99999974E-6 : f32
    %278 = vector.broadcast %cst_147 : f32 to vector<16x1xf32>
    %279 = arith.addf %277, %278 : vector<16x1xf32>
    %280 = math.rsqrt %279 : vector<16x1xf32>
    %281 = vector.broadcast %280 : vector<16x1xf32> to vector<16x32xf32>
    %282 = arith.mulf %272, %281 : vector<16x32xf32>
    %283 = vector.broadcast %264 : vector<1x32xf32> to vector<16x32xf32>
    %284 = arith.mulf %282, %283 : vector<16x32xf32>
    %285 = vector.broadcast %266 : vector<1x32xf32> to vector<16x32xf32>
    %286 = arith.addf %284, %285 : vector<16x32xf32>
    %c0_148 = arith.constant 0 : index
    %c0_149 = arith.constant 0 : index
    %c0_150 = arith.constant 0 : index
    %287 = vector.load %arg33[%c0_148, %c0_149, %c0_150] : memref<1x64x32xf32, #tpu.memory_space<vmem>>, vector<1x64x32xf32>
    %288 = vector.shape_cast %287 : vector<1x64x32xf32> to vector<64x32xf32>
    %cst_151 = arith.constant dense<0.000000e+00> : vector<16x64xf32>
    %289 = tpu.matmul %286, %288, %cst_151 {dimension_numbers = #tpu.dot_dimension_numbers<[1], [1], [0], [0], [0, 0, 1, 0], [], []>} : vector<16x32xf32>, vector<64x32xf32>, vector<16x64xf32> -> vector<16x64xf32>
    %c0_152 = arith.constant 0 : index
    %c0_153 = arith.constant 0 : index
    %c0_154 = arith.constant 0 : index
    %290 = vector.load %arg34[%c0_152, %c0_153, %c0_154] : memref<1x1x64xf32, #tpu.memory_space<vmem>>, vector<1x1x64xf32>
    %291 = vector.shape_cast %290 : vector<1x1x64xf32> to vector<1x64xf32>
    %292 = vector.broadcast %291 : vector<1x64xf32> to vector<16x64xf32>
    %293 = arith.addf %289, %292 : vector<16x64xf32>
    %cst_155 = arith.constant 0.000000e+00 : f32
    %294 = vector.broadcast %cst_155 : f32 to vector<16x64xf32>
    %295 = arith.maximumf %293, %294 : vector<16x64xf32>
    %c0_156 = arith.constant 0 : index
    %c0_157 = arith.constant 0 : index
    %c0_158 = arith.constant 0 : index
    %296 = vector.load %arg35[%c0_156, %c0_157, %c0_158] : memref<1x32x64xf32, #tpu.memory_space<vmem>>, vector<1x32x64xf32>
    %297 = vector.shape_cast %296 : vector<1x32x64xf32> to vector<32x64xf32>
    %cst_159 = arith.constant dense<0.000000e+00> : vector<16x32xf32>
    %298 = tpu.matmul %295, %297, %cst_159 {dimension_numbers = #tpu.dot_dimension_numbers<[1], [1], [0], [0], [0, 0, 1, 0], [], []>} : vector<16x64xf32>, vector<32x64xf32>, vector<16x32xf32> -> vector<16x32xf32>
    %c0_160 = arith.constant 0 : index
    %c0_161 = arith.constant 0 : index
    %c0_162 = arith.constant 0 : index
    %299 = vector.load %arg36[%c0_160, %c0_161, %c0_162] : memref<1x1x32xf32, #tpu.memory_space<vmem>>, vector<1x1x32xf32>
    %300 = vector.shape_cast %299 : vector<1x1x32xf32> to vector<1x32xf32>
    %301 = vector.broadcast %300 : vector<1x32xf32> to vector<16x32xf32>
    %302 = arith.addf %298, %301 : vector<16x32xf32>
    %303 = arith.addf %286, %302 : vector<16x32xf32>
    %c0_163 = arith.constant 0 : index
    %c0_164 = arith.constant 0 : index
    %c0_165 = arith.constant 0 : index
    %304 = vector.load %arg37[%c0_163, %c0_164, %c0_165] : memref<1x1x32xf32, #tpu.memory_space<vmem>>, vector<1x1x32xf32>
    %305 = vector.shape_cast %304 : vector<1x1x32xf32> to vector<1x32xf32>
    %c0_166 = arith.constant 0 : index
    %c0_167 = arith.constant 0 : index
    %c0_168 = arith.constant 0 : index
    %306 = vector.load %arg38[%c0_166, %c0_167, %c0_168] : memref<1x1x32xf32, #tpu.memory_space<vmem>>, vector<1x1x32xf32>
    %307 = vector.shape_cast %306 : vector<1x1x32xf32> to vector<1x32xf32>
    %cst_169 = arith.constant dense<0.000000e+00> : vector<16xf32>
    %308 = vector.multi_reduction <add>, %303, %cst_169 [1] : vector<16x32xf32> to vector<16xf32>
    %309 = vector.shape_cast %308 : vector<16xf32> to vector<16x1xf32>
    %cst_170 = arith.constant 3.200000e+01 : f32
    %310 = vector.broadcast %cst_170 : f32 to vector<16x1xf32>
    %311 = arith.divf %309, %310 : vector<16x1xf32>
    %312 = vector.broadcast %311 : vector<16x1xf32> to vector<16x32xf32>
    %313 = arith.subf %303, %312 : vector<16x32xf32>
    %314 = arith.mulf %313, %313 : vector<16x32xf32>
    %cst_171 = arith.constant dense<0.000000e+00> : vector<16xf32>
    %315 = vector.multi_reduction <add>, %314, %cst_171 [1] : vector<16x32xf32> to vector<16xf32>
    %316 = vector.shape_cast %315 : vector<16xf32> to vector<16x1xf32>
    %cst_172 = arith.constant 3.200000e+01 : f32
    %317 = vector.broadcast %cst_172 : f32 to vector<16x1xf32>
    %318 = arith.divf %316, %317 : vector<16x1xf32>
    %cst_173 = arith.constant 9.99999974E-6 : f32
    %319 = vector.broadcast %cst_173 : f32 to vector<16x1xf32>
    %320 = arith.addf %318, %319 : vector<16x1xf32>
    %321 = math.rsqrt %320 : vector<16x1xf32>
    %322 = vector.broadcast %321 : vector<16x1xf32> to vector<16x32xf32>
    %323 = arith.mulf %313, %322 : vector<16x32xf32>
    %324 = vector.broadcast %305 : vector<1x32xf32> to vector<16x32xf32>
    %325 = arith.mulf %323, %324 : vector<16x32xf32>
    %326 = vector.broadcast %307 : vector<1x32xf32> to vector<16x32xf32>
    %327 = arith.addf %325, %326 : vector<16x32xf32>
    %c0_174 = arith.constant 0 : index
    %c0_175 = arith.constant 0 : index
    %328 = vector.load %arg40[%c0_174, %c0_175] : memref<16x32xf32, #tpu.memory_space<vmem>>, vector<16x32xf32>
    tpu.vector_store %arg40[%c0_174, %c0_175], %327 {strides = array<i32>} : memref<16x32xf32, #tpu.memory_space<vmem>>, vector<16x32xf32>,
    %c0_176 = arith.constant 0 : index
    %c0_177 = arith.constant 0 : index
    %329 = vector.load %arg39[%c0_176, %c0_177] : memref<16x32xf32, #tpu.memory_space<vmem>>, vector<16x32xf32>
    tpu.vector_store %arg39[%c0_176, %c0_177], %327 {strides = array<i32>} : memref<16x32xf32, #tpu.memory_space<vmem>>, vector<16x32xf32>,
    return
  }
  func.func @transform_0(%arg0: i32) -> (i32, i32) {
    %c0_i32 = arith.constant 0 : i32
    %c0_i32_0 = arith.constant 0 : i32
    %c0_i32_1 = arith.constant 0 : i32
    return %c0_i32, %c0_i32_0 : i32, i32
  }
  func.func @transform_1(%arg0: i32) -> (i32, i32) {
    %c0_i32 = arith.constant 0 : i32
    %c0_i32_0 = arith.constant 0 : i32
    %c0_i32_1 = arith.constant 0 : i32
    return %c0_i32, %c0_i32_0 : i32, i32
  }
  func.func @transform_2(%arg0: i32) -> (i32, i32) {
    %c0_i32 = arith.constant 0 : i32
    %c0_i32_0 = arith.constant 0 : i32
    %c0_i32_1 = arith.constant 0 : i32
    return %c0_i32, %c0_i32_0 : i32, i32
  }
  func.func @transform_3(%arg0: i32) -> (i32, i32) {
    %c0_i32 = arith.constant 0 : i32
    %c0_i32_0 = arith.constant 0 : i32
    %c0_i32_1 = arith.constant 0 : i32
    return %c0_i32, %c0_i32_0 : i32, i32
  }
  func.func @transform_4(%arg0: i32) -> (i32, i32) {
    %c0_i32 = arith.constant 0 : i32
    %c0_i32_0 = arith.constant 0 : i32
    %c0_i32_1 = arith.constant 0 : i32
    return %c0_i32, %c0_i32_0 : i32, i32
  }
  func.func @transform_5(%arg0: i32) -> (i32, i32) {
    %c0_i32 = arith.constant 0 : i32
    %c0_i32_0 = arith.constant 0 : i32
    %c0_i32_1 = arith.constant 0 : i32
    return %c0_i32, %c0_i32_0 : i32, i32
  }
  func.func @transform_6(%arg0: i32) -> (i32, i32) {
    %c0_i32 = arith.constant 0 : i32
    %c0_i32_0 = arith.constant 0 : i32
    %c0_i32_1 = arith.constant 0 : i32
    return %c0_i32, %c0_i32_0 : i32, i32
  }
  func.func @transform_7(%arg0: i32) -> (i32, i32) {
    %c0_i32 = arith.constant 0 : i32
    %c0_i32_0 = arith.constant 0 : i32
    %c0_i32_1 = arith.constant 0 : i32
    return %c0_i32, %c0_i32_0 : i32, i32
  }
  func.func @transform_8(%arg0: i32) -> (i32, i32) {
    %c0_i32 = arith.constant 0 : i32
    %c0_i32_0 = arith.constant 0 : i32
    %c0_i32_1 = arith.constant 0 : i32
    return %c0_i32, %c0_i32_0 : i32, i32
  }
  func.func @transform_9(%arg0: i32) -> (i32, i32, i32) {
    %c0_i32 = arith.constant 0 : i32
    %c0_i32_0 = arith.constant 0 : i32
    %c0_i32_1 = arith.constant 0 : i32
    %c0_i32_2 = arith.constant 0 : i32
    return %c0_i32, %c0_i32_0, %c0_i32_1 : i32, i32, i32
  }
  func.func @transform_10(%arg0: i32) -> (i32, i32) {
    %c0_i32 = arith.constant 0 : i32
    %c0_i32_0 = arith.constant 0 : i32
    %c0_i32_1 = arith.constant 0 : i32
    return %c0_i32, %c0_i32_0 : i32, i32
  }
  func.func @transform_11(%arg0: i32) -> (i32, i32) {
    %c0_i32 = arith.constant 0 : i32
    %c0_i32_0 = arith.constant 0 : i32
    %c0_i32_1 = arith.constant 0 : i32
    return %c0_i32, %c0_i32_0 : i32, i32
  }
  func.func @transform_12(%arg0: i32) -> (i32, i32) {
    %c0_i32 = arith.constant 0 : i32
    %c0_i32_0 = arith.constant 0 : i32
    %c0_i32_1 = arith.constant 0 : i32
    return %c0_i32, %c0_i32_0 : i32, i32
  }
  func.func @transform_13(%arg0: i32) -> (i32, i32) {
    %c0_i32 = arith.constant 0 : i32
    %c0_i32_0 = arith.constant 0 : i32
    %c0_i32_1 = arith.constant 0 : i32
    return %c0_i32, %c0_i32_0 : i32, i32
  }
  func.func @transform_14(%arg0: i32) -> (i32, i32) {
    %c0_i32 = arith.constant 0 : i32
    %c0_i32_0 = arith.constant 0 : i32
    %c0_i32_1 = arith.constant 0 : i32
    return %c0_i32, %c0_i32_0 : i32, i32
  }
  func.func @transform_15(%arg0: i32) -> (i32, i32) {
    %c0_i32 = arith.constant 0 : i32
    %c0_i32_0 = arith.constant 0 : i32
    %c0_i32_1 = arith.constant 0 : i32
    return %c0_i32, %c0_i32_0 : i32, i32
  }
  func.func @transform_16(%arg0: i32) -> (i32, i32, i32) {
    %c0_i32 = arith.constant 0 : i32
    %c0_i32_0 = arith.constant 0 : i32
    %c0_i32_1 = arith.constant 0 : i32
    return %arg0, %c0_i32, %c0_i32_0 : i32, i32, i32
  }
  func.func @transform_17(%arg0: i32) -> (i32, i32, i32) {
    %c0_i32 = arith.constant 0 : i32
    %c0_i32_0 = arith.constant 0 : i32
    %c0_i32_1 = arith.constant 0 : i32
    return %arg0, %c0_i32, %c0_i32_0 : i32, i32, i32
  }
  func.func @transform_18(%arg0: i32) -> (i32, i32, i32) {
    %c0_i32 = arith.constant 0 : i32
    %c0_i32_0 = arith.constant 0 : i32
    %c0_i32_1 = arith.constant 0 : i32
    return %arg0, %c0_i32, %c0_i32_0 : i32, i32, i32
  }
  func.func @transform_19(%arg0: i32) -> (i32, i32, i32) {
    %c0_i32 = arith.constant 0 : i32
    %c0_i32_0 = arith.constant 0 : i32
    %c0_i32_1 = arith.constant 0 : i32
    return %arg0, %c0_i32, %c0_i32_0 : i32, i32, i32
  }
  func.func @transform_20(%arg0: i32) -> (i32, i32, i32) {
    %c0_i32 = arith.constant 0 : i32
    %c0_i32_0 = arith.constant 0 : i32
    %c0_i32_1 = arith.constant 0 : i32
    return %arg0, %c0_i32, %c0_i32_0 : i32, i32, i32
  }
  func.func @transform_21(%arg0: i32) -> (i32, i32, i32) {
    %c0_i32 = arith.constant 0 : i32
    %c0_i32_0 = arith.constant 0 : i32
    %c0_i32_1 = arith.constant 0 : i32
    return %arg0, %c0_i32, %c0_i32_0 : i32, i32, i32
  }
  func.func @transform_22(%arg0: i32) -> (i32, i32, i32) {
    %c0_i32 = arith.constant 0 : i32
    %c0_i32_0 = arith.constant 0 : i32
    %c0_i32_1 = arith.constant 0 : i32
    return %arg0, %c0_i32, %c0_i32_0 : i32, i32, i32
  }
  func.func @transform_23(%arg0: i32) -> (i32, i32, i32) {
    %c0_i32 = arith.constant 0 : i32
    %c0_i32_0 = arith.constant 0 : i32
    %c0_i32_1 = arith.constant 0 : i32
    return %arg0, %c0_i32, %c0_i32_0 : i32, i32, i32
  }
  func.func @transform_24(%arg0: i32) -> (i32, i32, i32) {
    %c0_i32 = arith.constant 0 : i32
    %c0_i32_0 = arith.constant 0 : i32
    %c0_i32_1 = arith.constant 0 : i32
    return %arg0, %c0_i32, %c0_i32_0 : i32, i32, i32
  }
  func.func @transform_25(%arg0: i32) -> (i32, i32, i32) {
    %c0_i32 = arith.constant 0 : i32
    %c0_i32_0 = arith.constant 0 : i32
    %c0_i32_1 = arith.constant 0 : i32
    return %arg0, %c0_i32, %c0_i32_0 : i32, i32, i32
  }
  func.func @transform_26(%arg0: i32) -> (i32, i32, i32) {
    %c0_i32 = arith.constant 0 : i32
    %c0_i32_0 = arith.constant 0 : i32
    %c0_i32_1 = arith.constant 0 : i32
    return %arg0, %c0_i32, %c0_i32_0 : i32, i32, i32
  }
  func.func @transform_27(%arg0: i32) -> (i32, i32, i32) {
    %c0_i32 = arith.constant 0 : i32
    %c0_i32_0 = arith.constant 0 : i32
    %c0_i32_1 = arith.constant 0 : i32
    return %arg0, %c0_i32, %c0_i32_0 : i32, i32, i32
  }
  func.func @transform_28(%arg0: i32) -> (i32, i32, i32) {
    %c0_i32 = arith.constant 0 : i32
    %c0_i32_0 = arith.constant 0 : i32
    %c0_i32_1 = arith.constant 0 : i32
    return %arg0, %c0_i32, %c0_i32_0 : i32, i32, i32
  }
  func.func @transform_29(%arg0: i32) -> (i32, i32, i32) {
    %c0_i32 = arith.constant 0 : i32
    %c0_i32_0 = arith.constant 0 : i32
    %c0_i32_1 = arith.constant 0 : i32
    return %arg0, %c0_i32, %c0_i32_0 : i32, i32, i32
  }
  func.func @transform_30(%arg0: i32) -> (i32, i32, i32) {
    %c0_i32 = arith.constant 0 : i32
    %c0_i32_0 = arith.constant 0 : i32
    %c0_i32_1 = arith.constant 0 : i32
    return %arg0, %c0_i32, %c0_i32_0 : i32, i32, i32
  }
  func.func @transform_31(%arg0: i32) -> (i32, i32, i32) {
    %c0_i32 = arith.constant 0 : i32
    %c0_i32_0 = arith.constant 0 : i32
    %c0_i32_1 = arith.constant 0 : i32
    return %arg0, %c0_i32, %c0_i32_0 : i32, i32, i32
  }
  func.func @transform_32(%arg0: i32) -> (i32, i32, i32) {
    %c0_i32 = arith.constant 0 : i32
    %c0_i32_0 = arith.constant 0 : i32
    %c0_i32_1 = arith.constant 0 : i32
    return %arg0, %c0_i32, %c0_i32_0 : i32, i32, i32
  }
  func.func @transform_33(%arg0: i32) -> (i32, i32, i32) {
    %c0_i32 = arith.constant 0 : i32
    %c0_i32_0 = arith.constant 0 : i32
    %c0_i32_1 = arith.constant 0 : i32
    return %arg0, %c0_i32, %c0_i32_0 : i32, i32, i32
  }
  func.func @transform_34(%arg0: i32) -> (i32, i32, i32) {
    %c0_i32 = arith.constant 0 : i32
    %c0_i32_0 = arith.constant 0 : i32
    %c0_i32_1 = arith.constant 0 : i32
    return %arg0, %c0_i32, %c0_i32_0 : i32, i32, i32
  }
  func.func @transform_35(%arg0: i32) -> (i32, i32, i32) {
    %c0_i32 = arith.constant 0 : i32
    %c0_i32_0 = arith.constant 0 : i32
    %c0_i32_1 = arith.constant 0 : i32
    return %arg0, %c0_i32, %c0_i32_0 : i32, i32, i32
  }
  func.func @transform_36(%arg0: i32) -> (i32, i32, i32) {
    %c0_i32 = arith.constant 0 : i32
    %c0_i32_0 = arith.constant 0 : i32
    %c0_i32_1 = arith.constant 0 : i32
    return %arg0, %c0_i32, %c0_i32_0 : i32, i32, i32
  }
  func.func @transform_37(%arg0: i32) -> (i32, i32, i32) {
    %c0_i32 = arith.constant 0 : i32
    %c0_i32_0 = arith.constant 0 : i32
    %c0_i32_1 = arith.constant 0 : i32
    return %arg0, %c0_i32, %c0_i32_0 : i32, i32, i32
  }
  func.func @transform_38(%arg0: i32) -> (i32, i32) {
    %c0_i32 = arith.constant 0 : i32
    %c0_i32_0 = arith.constant 0 : i32
    %c0_i32_1 = arith.constant 0 : i32
    return %c0_i32, %c0_i32_0 : i32, i32
  }
}

</mosaic_0001>

<llo_original>
// kernel: squeeze.2
$region0: #{squeeze.2}
  %s0 = inlined_call_operand.vmem [shape: f32[2,8,2,1], index: 0, kind: input, shape index: {}]
  %s1 = inlined_call_operand.vmem [shape: f32[16,2], index: 1, kind: output, shape index: {}]
  $region1: #{squeeze.2} parent=0
    #allocation0 [shape = 'u8[4096]{0}', space=vmem, size = 0x1000, scoped, tag = 'scoped mem for output reshape']
    #allocation1 [shape = 'u8[8192]{0}', space=vmem, size = 0x2000, scoped, tag = 'scoped mem for input reshape']
    %s3 = ssub.s32 4, 1
    %s4 = scalar_lea.vmem %s0, 2
    %v5 = vld [vmem:[%s4] sm:%s3]
    %s6 = scalar_lea.vmem [#allocation1], 8
    %7 = vst [vmem:[%s6] sm:%s3] %v5
    %v8 = vld [vmem:[%s0] sm:%s3]
    %9 = vst [vmem:[#allocation1] sm:%s3] %v8
    %s10 = smov 3
    %v11 = vld [vmem:[#allocation1] ss:$8 sm:%s10]
    %vm12 = vcmask 64512
    %13 = vst.msk [vmem:[#allocation0] sm:$0x3] %vm12, %v11
    %s14 = scalar_lea.vmem [#allocation1], 1
    %s15 = smov 3
    %v16 = vld [vmem:[%s14] ss:$8 sm:%s15]
    %17 = vrot.lane.b32.xlu0 %v16, 8
    %v18 = vpop.permute.xlu0 %17
    %vm19 = vcmask 130112
    %20 = vst.msk [vmem:[#allocation0] sm:$0x3] %vm19, %v18
    %s22 = ssub.s32 4, 1
    %v23 = vld [vmem:[#allocation0] sm:%s22]
    %s25 = ssub.s32 4, 1
    %26 = vst [vmem:[%s1] sm:%s25] %v23

// kernel: decoder_forward.1
$region0: #{decoder_forward.1}
  #allocation0 [shape = 'u32[]', space=smem, size = 0x4, offset = 0x4, fixed_abs, tag = 'smem constant byte address 0x4 - core index']
  #allocation1 [shape = 'u32[72,128]{1,0:T(1,128)}', space=vmem, size = 0x9000, scoped, tag = 'internal scratch']
  #allocation2 [shape = 'f32[16,32]{1,0:T(8,128)}', space=vmem, size = 0x2000, scoped, tag = 'scratch operand']
  #allocation3 [shape = 'f32[16,32]{1,0:T(8,128)}', space=vmem, size = 0x2000, scoped, tag = 'scratch operand']
  %s0 = inlined_call_operand.smem [shape: u32[39], index: -1, kind: input, shape index: {}]
  %s1 = sld [smem:[%s0]]
  %s2 = scalar_lea.smem %s0, 1
  %s3 = sld [smem:[%s2]]
  %s4 = scalar_lea.smem %s0, 2
  %s5 = sld [smem:[%s4]]
  %s6 = scalar_lea.smem %s0, 3
  %s7 = sld [smem:[%s6]]
  %s8 = scalar_lea.smem %s0, 4
  %s9 = sld [smem:[%s8]]
  %s10 = scalar_lea.smem %s0, 5
  %s11 = sld [smem:[%s10]]
  %s12 = scalar_lea.smem %s0, 6
  %s13 = sld [smem:[%s12]]
  %s14 = scalar_lea.smem %s0, 7
  %s15 = sld [smem:[%s14]]
  %s16 = scalar_lea.smem %s0, 8
  %s17 = sld [smem:[%s16]]
  %s18 = scalar_lea.smem %s0, 9
  %s19 = sld [smem:[%s18]]
  %s20 = scalar_lea.smem %s0, 10
  %s21 = sld [smem:[%s20]]
  %s22 = scalar_lea.smem %s0, 11
  %s23 = sld [smem:[%s22]]
  %s24 = scalar_lea.smem %s0, 12
  %s25 = sld [smem:[%s24]]
  %s26 = scalar_lea.smem %s0, 13
  %s27 = sld [smem:[%s26]]
  %s28 = scalar_lea.smem %s0, 14
  %s29 = sld [smem:[%s28]]
  %s30 = scalar_lea.smem %s0, 15
  %s31 = sld [smem:[%s30]]
  %s32 = scalar_lea.smem %s0, 16
  %s33 = sld [smem:[%s32]]
  %s34 = scalar_lea.smem %s0, 17
  %s35 = sld [smem:[%s34]]
  %s36 = scalar_lea.smem %s0, 18
  %s37 = sld [smem:[%s36]]
  %s38 = scalar_lea.smem %s0, 19
  %s39 = sld [smem:[%s38]]
  %s40 = scalar_lea.smem %s0, 20
  %s41 = sld [smem:[%s40]]
  %s42 = scalar_lea.smem %s0, 21
  %s43 = sld [smem:[%s42]]
  %s44 = scalar_lea.smem %s0, 22
  %s45 = sld [smem:[%s44]]
  %s46 = scalar_lea.smem %s0, 23
  %s47 = sld [smem:[%s46]]
  %s48 = scalar_lea.smem %s0, 24
  %s49 = sld [smem:[%s48]]
  %s50 = scalar_lea.smem %s0, 25
  %s51 = sld [smem:[%s50]]
  %s52 = scalar_lea.smem %s0, 26
  %s53 = sld [smem:[%s52]]
  %s54 = scalar_lea.smem %s0, 27
  %s55 = sld [smem:[%s54]]
  %s56 = scalar_lea.smem %s0, 28
  %s57 = sld [smem:[%s56]]
  %s58 = scalar_lea.smem %s0, 29
  %s59 = sld [smem:[%s58]]
  %s60 = scalar_lea.smem %s0, 30
  %s61 = sld [smem:[%s60]]
  %s62 = scalar_lea.smem %s0, 31
  %s63 = sld [smem:[%s62]]
  %s64 = scalar_lea.smem %s0, 32
  %s65 = sld [smem:[%s64]]
  %s66 = scalar_lea.smem %s0, 33
  %s67 = sld [smem:[%s66]]
  %s68 = scalar_lea.smem %s0, 34
  %s69 = sld [smem:[%s68]]
  %s70 = scalar_lea.smem %s0, 35
  %s71 = sld [smem:[%s70]]
  %s72 = scalar_lea.smem %s0, 36
  %s73 = sld [smem:[%s72]]
  %s74 = scalar_lea.smem %s0, 37
  %s75 = sld [smem:[%s74]]
  %s76 = scalar_lea.smem %s0, 38
  %s77 = sld [smem:[%s76]]
  %s78 = sld [smem:[#allocation0]]
  $region189: #{decoder_forward.1} parent=0
    _
  %s80 = ssub.s32 1, %s78
  %s81 = scalar_select 0, %s80, %s78
  $region1: #{decoder_forward.1} parent=0
    #allocation4 [shape = 'u8[8192]{0}', space=vmem, size = 0x2000, scoped, tag = 'output window, operand 0, single buffered']
    #allocation5 [shape = 's32[2]{0}', space=sflag, size = 0x8, scoped, tag = 'scoped memory for decoder_forward.1']
    %82 = vsyncpa [#allocation5], 0
    loop: start=0, step=1, limit=4
    $region2: #{decoder_forward.1} parent=1 // loop_pre_header
      _
    $region3: #{decoder_forward.1} parent=1 // loop_header
      %s84 = sphi 0, %s88
      %p85 = scmp.ge.s32.totalorder %s84, 4
      %s92 = sphi 0, %s92
      %s94 = sphi 0, %s92
      %s95 = sphi 0, %s94
      %s109 = sphi 0, %s95
      %s113 = sphi 0, %s113
      %s115 = sphi 0, %s113
      %s116 = sphi 0, %s115
      %s130 = sphi 0, %s116
      %s134 = sphi 0, %s134
      %s136 = sphi 0, %s134
      %s137 = sphi 0, %s136
      %s151 = sphi 0, %s137
      %s155 = sphi 0, %s155
      %s157 = sphi 0, %s155
      %s158 = sphi 0, %s157
      %s172 = sphi 0, %s158
      %s176 = sphi 0, %s176
      %s178 = sphi 0, %s176
      %s179 = sphi 0, %s178
      %s193 = sphi 0, %s179
      %s197 = sphi 0, %s197
      %s199 = sphi 0, %s197
      %s200 = sphi 0, %s199
      %s214 = sphi 0, %s200
      %s218 = sphi 0, %s218
      %s220 = sphi 0, %s218
      %s221 = sphi 0, %s220
      %s235 = sphi 0, %s221
      %s239 = sphi 0, %s239
      %s241 = sphi 0, %s239
      %s242 = sphi 0, %s241
      %s256 = sphi 0, %s242
      %s260 = sphi 0, %s260
      %s262 = sphi 0, %s260
      %s263 = sphi 0, %s262
      %s277 = sphi 0, %s263
      %s281 = sphi 0, %s281
      %s283 = sphi 0, %s281
      %s284 = sphi 0, %s283
      %s298 = sphi 0, %s284
      %s302 = sphi 0, %s302
      %s304 = sphi 0, %s302
      %s305 = sphi 0, %s304
      %s319 = sphi 0, %s305
      %s323 = sphi 0, %s323
      %s325 = sphi 0, %s323
      %s326 = sphi 0, %s325
      %s340 = sphi 0, %s326
      %s344 = sphi 0, %s344
      %s346 = sphi 0, %s344
      %s347 = sphi 0, %s346
      %s361 = sphi 0, %s347
      %s365 = sphi 0, %s365
      %s367 = sphi 0, %s365
      %s368 = sphi 0, %s367
      %s382 = sphi 0, %s368
      %s386 = sphi 0, %s386
      %s388 = sphi 0, %s386
      %s389 = sphi 0, %s388
      %s403 = sphi 0, %s389
      %s407 = sphi 0, %s407
      %s409 = sphi 0, %s407
      %s410 = sphi 0, %s409
      %s424 = sphi 0, %s410
      %s430 = sphi 0, %s432
      %s433 = sphi 0, %s430
      %s434 = sphi 0, %s433
      %s450 = sphi 0, %s434
      %s456 = sphi 0, %s458
      %s459 = sphi 0, %s456
      %s460 = sphi 0, %s459
      %s476 = sphi 0, %s460
      %s482 = sphi 0, %s484
      %s485 = sphi 0, %s482
      %s486 = sphi 0, %s485
      %s502 = sphi 0, %s486
      %s508 = sphi 0, %s510
      %s511 = sphi 0, %s508
      %s512 = sphi 0, %s511
      %s528 = sphi 0, %s512
      %s534 = sphi 0, %s536
      %s537 = sphi 0, %s534
      %s538 = sphi 0, %s537
      %s554 = sphi 0, %s538
      %s560 = sphi 0, %s562
      %s563 = sphi 0, %s560
      %s564 = sphi 0, %s563
      %s580 = sphi 0, %s564
      %s586 = sphi 0, %s588
      %s589 = sphi 0, %s586
      %s590 = sphi 0, %s589
      %s606 = sphi 0, %s590
      %s612 = sphi 0, %s614
      %s615 = sphi 0, %s612
      %s616 = sphi 0, %s615
      %s632 = sphi 0, %s616
      %s638 = sphi 0, %s640
      %s641 = sphi 0, %s638
      %s642 = sphi 0, %s641
      %s658 = sphi 0, %s642
      %s664 = sphi 0, %s666
      %s667 = sphi 0, %s664
      %s668 = sphi 0, %s667
      %s684 = sphi 0, %s668
      %s690 = sphi 0, %s692
      %s693 = sphi 0, %s690
      %s694 = sphi 0, %s693
      %s710 = sphi 0, %s694
      %s716 = sphi 0, %s718
      %s719 = sphi 0, %s716
      %s720 = sphi 0, %s719
      %s736 = sphi 0, %s720
      %s742 = sphi 0, %s744
      %s745 = sphi 0, %s742
      %s746 = sphi 0, %s745
      %s762 = sphi 0, %s746
      %s768 = sphi 0, %s770
      %s771 = sphi 0, %s768
      %s772 = sphi 0, %s771
      %s788 = sphi 0, %s772
      %s794 = sphi 0, %s796
      %s797 = sphi 0, %s794
      %s798 = sphi 0, %s797
      %s814 = sphi 0, %s798
      %s820 = sphi 0, %s822
      %s823 = sphi 0, %s820
      %s824 = sphi 0, %s823
      %s840 = sphi 0, %s824
      %s846 = sphi 0, %s848
      %s849 = sphi 0, %s846
      %s850 = sphi 0, %s849
      %s866 = sphi 0, %s850
      %s872 = sphi 0, %s874
      %s875 = sphi 0, %s872
      %s876 = sphi 0, %s875
      %s892 = sphi 0, %s876
      %s898 = sphi 0, %s900
      %s901 = sphi 0, %s898
      %s902 = sphi 0, %s901
      %s918 = sphi 0, %s902
      %s924 = sphi 0, %s926
      %s927 = sphi 0, %s924
      %s928 = sphi 0, %s927
      %s944 = sphi 0, %s928
      %s950 = sphi 0, %s952
      %s953 = sphi 0, %s950
      %s954 = sphi 0, %s953
      %s970 = sphi 0, %s954
      %s976 = sphi 0, %s978
      %s979 = sphi 0, %s976
      %s980 = sphi 0, %s979
      %s996 = sphi 0, %s980
      %s1000 = sphi 0, %s1000
      %s1002 = sphi 0, %s1000
      %s1003 = sphi 0, %s1002
      %s1017 = sphi 0, %s1003
    $region4: #{decoder_forward.1} parent=1 // loop_header_branch
      %87 = sbr.rel (%p85) target = $region8
    $region5: #{decoder_forward.1} parent=1 // loop_body
      %s89 = ssub.s32 %s84, 1
      %s90 = ssub.s32 %s84, 2
      %s91 = sadd.s32 %s84, 1
      %s93 = sadd.s32 %s92, 1
      %p96 = scmp.eq.s32.totalorder %s84, 1
      %p97 = scmp.ne.s32.totalorder %s92, %s94
      %p98 = scmp.eq.s32.totalorder %s84, 0
      %p99 = por %p97, %p98
      %p100 = scmp.ne.s32.totalorder %s92, %s94
      %p101 = scmp.eq.s32.totalorder %s89, 1
      %p102 = por %p100, %p101
      %p103 = scmp.ne.s32.totalorder %s94, %s95
      %p104 = scmp.eq.s32.totalorder %s89, 0
      %p105 = por %p103, %p104
      %p106 = scmp.ne.s32.totalorder %s94, %s95
      %p107 = scmp.eq.s32.totalorder %s90, 1
      %p108 = por %p106, %p107
      %p110 = scmp.ne.s32.totalorder %s95, %s109
      %p111 = scmp.eq.s32.totalorder %s90, 0
      %p112 = por %p110, %p111
      %s114 = sadd.s32 %s113, 1
      %p117 = scmp.eq.s32.totalorder %s84, 1
      %p118 = scmp.ne.s32.totalorder %s113, %s115
      %p119 = scmp.eq.s32.totalorder %s84, 0
      %p120 = por %p118, %p119
      %p121 = scmp.ne.s32.totalorder %s113, %s115
      %p122 = scmp.eq.s32.totalorder %s89, 1
      %p123 = por %p121, %p122
      %p124 = scmp.ne.s32.totalorder %s115, %s116
      %p125 = scmp.eq.s32.totalorder %s89, 0
      %p126 = por %p124, %p125
      %p127 = scmp.ne.s32.totalorder %s115, %s116
      %p128 = scmp.eq.s32.totalorder %s90, 1
      %p129 = por %p127, %p128
      %p131 = scmp.ne.s32.totalorder %s116, %s130
      %p132 = scmp.eq.s32.totalorder %s90, 0
      %p133 = por %p131, %p132
      %s135 = sadd.s32 %s134, 1
      %p138 = scmp.eq.s32.totalorder %s84, 1
      %p139 = scmp.ne.s32.totalorder %s134, %s136
      %p140 = scmp.eq.s32.totalorder %s84, 0
      %p141 = por %p139, %p140
      %p142 = scmp.ne.s32.totalorder %s134, %s136
      %p143 = scmp.eq.s32.totalorder %s89, 1
      %p144 = por %p142, %p143
      %p145 = scmp.ne.s32.totalorder %s136, %s137
      %p146 = scmp.eq.s32.totalorder %s89, 0
      %p147 = por %p145, %p146
      %p148 = scmp.ne.s32.totalorder %s136, %s137
      %p149 = scmp.eq.s32.totalorder %s90, 1
      %p150 = por %p148, %p149
      %p152 = scmp.ne.s32.totalorder %s137, %s151
      %p153 = scmp.eq.s32.totalorder %s90, 0
      %p154 = por %p152, %p153
      %s156 = sadd.s32 %s155, 1
      %p159 = scmp.eq.s32.totalorder %s84, 1
      %p160 = scmp.ne.s32.totalorder %s155, %s157
      %p161 = scmp.eq.s32.totalorder %s84, 0
      %p162 = por %p160, %p161
      %p163 = scmp.ne.s32.totalorder %s155, %s157
      %p164 = scmp.eq.s32.totalorder %s89, 1
      %p165 = por %p163, %p164
      %p166 = scmp.ne.s32.totalorder %s157, %s158
      %p167 = scmp.eq.s32.totalorder %s89, 0
      %p168 = por %p166, %p167
      %p169 = scmp.ne.s32.totalorder %s157, %s158
      %p170 = scmp.eq.s32.totalorder %s90, 1
      %p171 = por %p169, %p170
      %p173 = scmp.ne.s32.totalorder %s158, %s172
      %p174 = scmp.eq.s32.totalorder %s90, 0
      %p175 = por %p173, %p174
      %s177 = sadd.s32 %s176, 1
      %p180 = scmp.eq.s32.totalorder %s84, 1
      %p181 = scmp.ne.s32.totalorder %s176, %s178
      %p182 = scmp.eq.s32.totalorder %s84, 0
      %p183 = por %p181, %p182
      %p184 = scmp.ne.s32.totalorder %s176, %s178
      %p185 = scmp.eq.s32.totalorder %s89, 1
      %p186 = por %p184, %p185
      %p187 = scmp.ne.s32.totalorder %s178, %s179
      %p188 = scmp.eq.s32.totalorder %s89, 0
      %p189 = por %p187, %p188
      %p190 = scmp.ne.s32.totalorder %s178, %s179
      %p191 = scmp.eq.s32.totalorder %s90, 1
      %p192 = por %p190, %p191
      %p194 = scmp.ne.s32.totalorder %s179, %s193
      %p195 = scmp.eq.s32.totalorder %s90, 0
      %p196 = por %p194, %p195
      %s198 = sadd.s32 %s197, 1
      %p201 = scmp.eq.s32.totalorder %s84, 1
      %p202 = scmp.ne.s32.totalorder %s197, %s199
      %p203 = scmp.eq.s32.totalorder %s84, 0
      %p204 = por %p202, %p203
      %p205 = scmp.ne.s32.totalorder %s197, %s199
      %p206 = scmp.eq.s32.totalorder %s89, 1
      %p207 = por %p205, %p206
      %p208 = scmp.ne.s32.totalorder %s199, %s200
      %p209 = scmp.eq.s32.totalorder %s89, 0
      %p210 = por %p208, %p209
      %p211 = scmp.ne.s32.totalorder %s199, %s200
      %p212 = scmp.eq.s32.totalorder %s90, 1
      %p213 = por %p211, %p212
      %p215 = scmp.ne.s32.totalorder %s200, %s214
      %p216 = scmp.eq.s32.totalorder %s90, 0
      %p217 = por %p215, %p216
      %s219 = sadd.s32 %s218, 1
      %p222 = scmp.eq.s32.totalorder %s84, 1
      %p223 = scmp.ne.s32.totalorder %s218, %s220
      %p224 = scmp.eq.s32.totalorder %s84, 0
      %p225 = por %p223, %p224
      %p226 = scmp.ne.s32.totalorder %s218, %s220
      %p227 = scmp.eq.s32.totalorder %s89, 1
      %p228 = por %p226, %p227
      %p229 = scmp.ne.s32.totalorder %s220, %s221
      %p230 = scmp.eq.s32.totalorder %s89, 0
      %p231 = por %p229, %p230
      %p232 = scmp.ne.s32.totalorder %s220, %s221
      %p233 = scmp.eq.s32.totalorder %s90, 1
      %p234 = por %p232, %p233
      %p236 = scmp.ne.s32.totalorder %s221, %s235
      %p237 = scmp.eq.s32.totalorder %s90, 0
      %p238 = por %p236, %p237
      %s240 = sadd.s32 %s239, 1
      %p243 = scmp.eq.s32.totalorder %s84, 1
      %p244 = scmp.ne.s32.totalorder %s239, %s241
      %p245 = scmp.eq.s32.totalorder %s84, 0
      %p246 = por %p244, %p245
      %p247 = scmp.ne.s32.totalorder %s239, %s241
      %p248 = scmp.eq.s32.totalorder %s89, 1
      %p249 = por %p247, %p248
      %p250 = scmp.ne.s32.totalorder %s241, %s242
      %p251 = scmp.eq.s32.totalorder %s89, 0
      %p252 = por %p250, %p251
      %p253 = scmp.ne.s32.totalorder %s241, %s242
      %p254 = scmp.eq.s32.totalorder %s90, 1
      %p255 = por %p253, %p254
      %p257 = scmp.ne.s32.totalorder %s242, %s256
      %p258 = scmp.eq.s32.totalorder %s90, 0
      %p259 = por %p257, %p258
      %s261 = sadd.s32 %s260, 1
      %p264 = scmp.eq.s32.totalorder %s84, 1
      %p265 = scmp.ne.s32.totalorder %s260, %s262
      %p266 = scmp.eq.s32.totalorder %s84, 0
      %p267 = por %p265, %p266
      %p268 = scmp.ne.s32.totalorder %s260, %s262
      %p269 = scmp.eq.s32.totalorder %s89, 1
      %p270 = por %p268, %p269
      %p271 = scmp.ne.s32.totalorder %s262, %s263
      %p272 = scmp.eq.s32.totalorder %s89, 0
      %p273 = por %p271, %p272
      %p274 = scmp.ne.s32.totalorder %s262, %s263
      %p275 = scmp.eq.s32.totalorder %s90, 1
      %p276 = por %p274, %p275
      %p278 = scmp.ne.s32.totalorder %s263, %s277
      %p279 = scmp.eq.s32.totalorder %s90, 0
      %p280 = por %p278, %p279
      %s282 = sadd.s32 %s281, 1
      %p285 = scmp.eq.s32.totalorder %s84, 1
      %p286 = scmp.ne.s32.totalorder %s281, %s283
      %p287 = scmp.eq.s32.totalorder %s84, 0
      %p288 = por %p286, %p287
      %p289 = scmp.ne.s32.totalorder %s281, %s283
      %p290 = scmp.eq.s32.totalorder %s89, 1
      %p291 = por %p289, %p290
      %p292 = scmp.ne.s32.totalorder %s283, %s284
      %p293 = scmp.eq.s32.totalorder %s89, 0
      %p294 = por %p292, %p293
      %p295 = scmp.ne.s32.totalorder %s283, %s284
      %p296 = scmp.eq.s32.totalorder %s90, 1
      %p297 = por %p295, %p296
      %p299 = scmp.ne.s32.totalorder %s284, %s298
      %p300 = scmp.eq.s32.totalorder %s90, 0
      %p301 = por %p299, %p300
      %s303 = sadd.s32 %s302, 1
      %p306 = scmp.eq.s32.totalorder %s84, 1
      %p307 = scmp.ne.s32.totalorder %s302, %s304
      %p308 = scmp.eq.s32.totalorder %s84, 0
      %p309 = por %p307, %p308
      %p310 = scmp.ne.s32.totalorder %s302, %s304
      %p311 = scmp.eq.s32.totalorder %s89, 1
      %p312 = por %p310, %p311
      %p313 = scmp.ne.s32.totalorder %s304, %s305
      %p314 = scmp.eq.s32.totalorder %s89, 0
      %p315 = por %p313, %p314
      %p316 = scmp.ne.s32.totalorder %s304, %s305
      %p317 = scmp.eq.s32.totalorder %s90, 1
      %p318 = por %p316, %p317
      %p320 = scmp.ne.s32.totalorder %s305, %s319
      %p321 = scmp.eq.s32.totalorder %s90, 0
      %p322 = por %p320, %p321
      %s324 = sadd.s32 %s323, 1
      %p327 = scmp.eq.s32.totalorder %s84, 1
      %p328 = scmp.ne.s32.totalorder %s323, %s325
      %p329 = scmp.eq.s32.totalorder %s84, 0
      %p330 = por %p328, %p329
      %p331 = scmp.ne.s32.totalorder %s323, %s325
      %p332 = scmp.eq.s32.totalorder %s89, 1
      %p333 = por %p331, %p332
      %p334 = scmp.ne.s32.totalorder %s325, %s326
      %p335 = scmp.eq.s32.totalorder %s89, 0
      %p336 = por %p334, %p335
      %p337 = scmp.ne.s32.totalorder %s325, %s326
      %p338 = scmp.eq.s32.totalorder %s90, 1
      %p339 = por %p337, %p338
      %p341 = scmp.ne.s32.totalorder %s326, %s340
      %p342 = scmp.eq.s32.totalorder %s90, 0
      %p343 = por %p341, %p342
      %s345 = sadd.s32 %s344, 1
      %p348 = scmp.eq.s32.totalorder %s84, 1
      %p349 = scmp.ne.s32.totalorder %s344, %s346
      %p350 = scmp.eq.s32.totalorder %s84, 0
      %p351 = por %p349, %p350
      %p352 = scmp.ne.s32.totalorder %s344, %s346
      %p353 = scmp.eq.s32.totalorder %s89, 1
      %p354 = por %p352, %p353
      %p355 = scmp.ne.s32.totalorder %s346, %s347
      %p356 = scmp.eq.s32.totalorder %s89, 0
      %p357 = por %p355, %p356
      %p358 = scmp.ne.s32.totalorder %s346, %s347
      %p359 = scmp.eq.s32.totalorder %s90, 1
      %p360 = por %p358, %p359
      %p362 = scmp.ne.s32.totalorder %s347, %s361
      %p363 = scmp.eq.s32.totalorder %s90, 0
      %p364 = por %p362, %p363
      %s366 = sadd.s32 %s365, 1
      %p369 = scmp.eq.s32.totalorder %s84, 1
      %p370 = scmp.ne.s32.totalorder %s365, %s367
      %p371 = scmp.eq.s32.totalorder %s84, 0
      %p372 = por %p370, %p371
      %p373 = scmp.ne.s32.totalorder %s365, %s367
      %p374 = scmp.eq.s32.totalorder %s89, 1
      %p375 = por %p373, %p374
      %p376 = scmp.ne.s32.totalorder %s367, %s368
      %p377 = scmp.eq.s32.totalorder %s89, 0
      %p378 = por %p376, %p377
      %p379 = scmp.ne.s32.totalorder %s367, %s368
      %p380 = scmp.eq.s32.totalorder %s90, 1
      %p381 = por %p379, %p380
      %p383 = scmp.ne.s32.totalorder %s368, %s382
      %p384 = scmp.eq.s32.totalorder %s90, 0
      %p385 = por %p383, %p384
      %s387 = sadd.s32 %s386, 1
      %p390 = scmp.eq.s32.totalorder %s84, 1
      %p391 = scmp.ne.s32.totalorder %s386, %s388
      %p392 = scmp.eq.s32.totalorder %s84, 0
      %p393 = por %p391, %p392
      %p394 = scmp.ne.s32.totalorder %s386, %s388
      %p395 = scmp.eq.s32.totalorder %s89, 1
      %p396 = por %p394, %p395
      %p397 = scmp.ne.s32.totalorder %s388, %s389
      %p398 = scmp.eq.s32.totalorder %s89, 0
      %p399 = por %p397, %p398
      %p400 = scmp.ne.s32.totalorder %s388, %s389
      %p401 = scmp.eq.s32.totalorder %s90, 1
      %p402 = por %p400, %p401
      %p404 = scmp.ne.s32.totalorder %s389, %s403
      %p405 = scmp.eq.s32.totalorder %s90, 0
      %p406 = por %p404, %p405
      %s408 = sadd.s32 %s407, 1
      %p411 = scmp.eq.s32.totalorder %s84, 1
      %p412 = scmp.ne.s32.totalorder %s407, %s409
      %p413 = scmp.eq.s32.totalorder %s84, 0
      %p414 = por %p412, %p413
      %p415 = scmp.ne.s32.totalorder %s407, %s409
      %p416 = scmp.eq.s32.totalorder %s89, 1
      %p417 = por %p415, %p416
      %p418 = scmp.ne.s32.totalorder %s409, %s410
      %p419 = scmp.eq.s32.totalorder %s89, 0
      %p420 = por %p418, %p419
      %p421 = scmp.ne.s32.totalorder %s409, %s410
      %p422 = scmp.eq.s32.totalorder %s90, 1
      %p423 = por %p421, %p422
      %p425 = scmp.ne.s32.totalorder %s410, %s424
      %p426 = scmp.eq.s32.totalorder %s90, 0
      %p427 = por %p425, %p426
      %s428 = ssub.s32 %s84, %s91
      %p429 = scmp.eq.s32.totalorder %s428, 0
      %s431 = sadd.s32 %s430, 1
      %s432 = scalar_select %p429, %s430, %s431
      %p435 = pneg %p429
      %p436 = scmp.eq.s32.totalorder %s84, 1
      %p437 = por %p435, %p436
      %p438 = scmp.ne.s32.totalorder %s430, %s433
      %p439 = scmp.eq.s32.totalorder %s84, 0
      %p440 = por %p438, %p439
      %p441 = scmp.ne.s32.totalorder %s430, %s433
      %p442 = scmp.eq.s32.totalorder %s89, 1
      %p443 = por %p441, %p442
      %p444 = scmp.ne.s32.totalorder %s433, %s434
      %p445 = scmp.eq.s32.totalorder %s89, 0
      %p446 = por %p444, %p445
      %p447 = scmp.ne.s32.totalorder %s433, %s434
      %p448 = scmp.eq.s32.totalorder %s90, 1
      %p449 = por %p447, %p448
      %p451 = scmp.ne.s32.totalorder %s434, %s450
      %p452 = scmp.eq.s32.totalorder %s90, 0
      %p453 = por %p451, %p452
      %s454 = ssub.s32 %s84, %s91
      %p455 = scmp.eq.s32.totalorder %s454, 0
      %s457 = sadd.s32 %s456, 1
      %s458 = scalar_select %p455, %s456, %s457
      %p461 = pneg %p455
      %p462 = scmp.eq.s32.totalorder %s84, 1
      %p463 = por %p461, %p462
      %p464 = scmp.ne.s32.totalorder %s456, %s459
      %p465 = scmp.eq.s32.totalorder %s84, 0
      %p466 = por %p464, %p465
      %p467 = scmp.ne.s32.totalorder %s456, %s459
      %p468 = scmp.eq.s32.totalorder %s89, 1
      %p469 = por %p467, %p468
      %p470 = scmp.ne.s32.totalorder %s459, %s460
      %p471 = scmp.eq.s32.totalorder %s89, 0
      %p472 = por %p470, %p471
      %p473 = scmp.ne.s32.totalorder %s459, %s460
      %p474 = scmp.eq.s32.totalorder %s90, 1
      %p475 = por %p473, %p474
      %p477 = scmp.ne.s32.totalorder %s460, %s476
      %p478 = scmp.eq.s32.totalorder %s90, 0
      %p479 = por %p477, %p478
      %s480 = ssub.s32 %s84, %s91
      %p481 = scmp.eq.s32.totalorder %s480, 0
      %s483 = sadd.s32 %s482, 1
      %s484 = scalar_select %p481, %s482, %s483
      %p487 = pneg %p481
      %p488 = scmp.eq.s32.totalorder %s84, 1
      %p489 = por %p487, %p488
      %p490 = scmp.ne.s32.totalorder %s482, %s485
      %p491 = scmp.eq.s32.totalorder %s84, 0
      %p492 = por %p490, %p491
      %p493 = scmp.ne.s32.totalorder %s482, %s485
      %p494 = scmp.eq.s32.totalorder %s89, 1
      %p495 = por %p493, %p494
      %p496 = scmp.ne.s32.totalorder %s485, %s486
      %p497 = scmp.eq.s32.totalorder %s89, 0
      %p498 = por %p496, %p497
      %p499 = scmp.ne.s32.totalorder %s485, %s486
      %p500 = scmp.eq.s32.totalorder %s90, 1
      %p501 = por %p499, %p500
      %p503 = scmp.ne.s32.totalorder %s486, %s502
      %p504 = scmp.eq.s32.totalorder %s90, 0
      %p505 = por %p503, %p504
      %s506 = ssub.s32 %s84, %s91
      %p507 = scmp.eq.s32.totalorder %s506, 0
      %s509 = sadd.s32 %s508, 1
      %s510 = scalar_select %p507, %s508, %s509
      %p513 = pneg %p507
      %p514 = scmp.eq.s32.totalorder %s84, 1
      %p515 = por %p513, %p514
      %p516 = scmp.ne.s32.totalorder %s508, %s511
      %p517 = scmp.eq.s32.totalorder %s84, 0
      %p518 = por %p516, %p517
      %p519 = scmp.ne.s32.totalorder %s508, %s511
      %p520 = scmp.eq.s32.totalorder %s89, 1
      %p521 = por %p519, %p520
      %p522 = scmp.ne.s32.totalorder %s511, %s512
      %p523 = scmp.eq.s32.totalorder %s89, 0
      %p524 = por %p522, %p523
      %p525 = scmp.ne.s32.totalorder %s511, %s512
      %p526 = scmp.eq.s32.totalorder %s90, 1
      %p527 = por %p525, %p526
      %p529 = scmp.ne.s32.totalorder %s512, %s528
      %p530 = scmp.eq.s32.totalorder %s90, 0
      %p531 = por %p529, %p530
      %s532 = ssub.s32 %s84, %s91
      %p533 = scmp.eq.s32.totalorder %s532, 0
      %s535 = sadd.s32 %s534, 1
      %s536 = scalar_select %p533, %s534, %s535
      %p539 = pneg %p533
      %p540 = scmp.eq.s32.totalorder %s84, 1
      %p541 = por %p539, %p540
      %p542 = scmp.ne.s32.totalorder %s534, %s537
      %p543 = scmp.eq.s32.totalorder %s84, 0
      %p544 = por %p542, %p543
      %p545 = scmp.ne.s32.totalorder %s534, %s537
      %p546 = scmp.eq.s32.totalorder %s89, 1
      %p547 = por %p545, %p546
      %p548 = scmp.ne.s32.totalorder %s537, %s538
      %p549 = scmp.eq.s32.totalorder %s89, 0
      %p550 = por %p548, %p549
      %p551 = scmp.ne.s32.totalorder %s537, %s538
      %p552 = scmp.eq.s32.totalorder %s90, 1
      %p553 = por %p551, %p552
      %p555 = scmp.ne.s32.totalorder %s538, %s554
      %p556 = scmp.eq.s32.totalorder %s90, 0
      %p557 = por %p555, %p556
      %s558 = ssub.s32 %s84, %s91
      %p559 = scmp.eq.s32.totalorder %s558, 0
      %s561 = sadd.s32 %s560, 1
      %s562 = scalar_select %p559, %s560, %s561
      %p565 = pneg %p559
      %p566 = scmp.eq.s32.totalorder %s84, 1
      %p567 = por %p565, %p566
      %p568 = scmp.ne.s32.totalorder %s560, %s563
      %p569 = scmp.eq.s32.totalorder %s84, 0
      %p570 = por %p568, %p569
      %p571 = scmp.ne.s32.totalorder %s560, %s563
      %p572 = scmp.eq.s32.totalorder %s89, 1
      %p573 = por %p571, %p572
      %p574 = scmp.ne.s32.totalorder %s563, %s564
      %p575 = scmp.eq.s32.totalorder %s89, 0
      %p576 = por %p574, %p575
      %p577 = scmp.ne.s32.totalorder %s563, %s564
      %p578 = scmp.eq.s32.totalorder %s90, 1
      %p579 = por %p577, %p578
      %p581 = scmp.ne.s32.totalorder %s564, %s580
      %p582 = scmp.eq.s32.totalorder %s90, 0
      %p583 = por %p581, %p582
      %s584 = ssub.s32 %s84, %s91
      %p585 = scmp.eq.s32.totalorder %s584, 0
      %s587 = sadd.s32 %s586, 1
      %s588 = scalar_select %p585, %s586, %s587
      %p591 = pneg %p585
      %p592 = scmp.eq.s32.totalorder %s84, 1
      %p593 = por %p591, %p592
      %p594 = scmp.ne.s32.totalorder %s586, %s589
      %p595 = scmp.eq.s32.totalorder %s84, 0
      %p596 = por %p594, %p595
      %p597 = scmp.ne.s32.totalorder %s586, %s589
      %p598 = scmp.eq.s32.totalorder %s89, 1
      %p599 = por %p597, %p598
      %p600 = scmp.ne.s32.totalorder %s589, %s590
      %p601 = scmp.eq.s32.totalorder %s89, 0
      %p602 = por %p600, %p601
      %p603 = scmp.ne.s32.totalorder %s589, %s590
      %p604 = scmp.eq.s32.totalorder %s90, 1
      %p605 = por %p603, %p604
      %p607 = scmp.ne.s32.totalorder %s590, %s606
      %p608 = scmp.eq.s32.totalorder %s90, 0
      %p609 = por %p607, %p608
      %s610 = ssub.s32 %s84, %s91
      %p611 = scmp.eq.s32.totalorder %s610, 0
      %s613 = sadd.s32 %s612, 1
      %s614 = scalar_select %p611, %s612, %s613
      %p617 = pneg %p611
      %p618 = scmp.eq.s32.totalorder %s84, 1
      %p619 = por %p617, %p618
      %p620 = scmp.ne.s32.totalorder %s612, %s615
      %p621 = scmp.eq.s32.totalorder %s84, 0
      %p622 = por %p620, %p621
      %p623 = scmp.ne.s32.totalorder %s612, %s615
      %p624 = scmp.eq.s32.totalorder %s89, 1
      %p625 = por %p623, %p624
      %p626 = scmp.ne.s32.totalorder %s615, %s616
      %p627 = scmp.eq.s32.totalorder %s89, 0
      %p628 = por %p626, %p627
      %p629 = scmp.ne.s32.totalorder %s615, %s616
      %p630 = scmp.eq.s32.totalorder %s90, 1
      %p631 = por %p629, %p630
      %p633 = scmp.ne.s32.totalorder %s616, %s632
      %p634 = scmp.eq.s32.totalorder %s90, 0
      %p635 = por %p633, %p634
      %s636 = ssub.s32 %s84, %s91
      %p637 = scmp.eq.s32.totalorder %s636, 0
      %s639 = sadd.s32 %s638, 1
      %s640 = scalar_select %p637, %s638, %s639
      %p643 = pneg %p637
      %p644 = scmp.eq.s32.totalorder %s84, 1
      %p645 = por %p643, %p644
      %p646 = scmp.ne.s32.totalorder %s638, %s641
      %p647 = scmp.eq.s32.totalorder %s84, 0
      %p648 = por %p646, %p647
      %p649 = scmp.ne.s32.totalorder %s638, %s641
      %p650 = scmp.eq.s32.totalorder %s89, 1
      %p651 = por %p649, %p650
      %p652 = scmp.ne.s32.totalorder %s641, %s642
      %p653 = scmp.eq.s32.totalorder %s89, 0
      %p654 = por %p652, %p653
      %p655 = scmp.ne.s32.totalorder %s641, %s642
      %p656 = scmp.eq.s32.totalorder %s90, 1
      %p657 = por %p655, %p656
      %p659 = scmp.ne.s32.totalorder %s642, %s658
      %p660 = scmp.eq.s32.totalorder %s90, 0
      %p661 = por %p659, %p660
      %s662 = ssub.s32 %s84, %s91
      %p663 = scmp.eq.s32.totalorder %s662, 0
      %s665 = sadd.s32 %s664, 1
      %s666 = scalar_select %p663, %s664, %s665
      %p669 = pneg %p663
      %p670 = scmp.eq.s32.totalorder %s84, 1
      %p671 = por %p669, %p670
      %p672 = scmp.ne.s32.totalorder %s664, %s667
      %p673 = scmp.eq.s32.totalorder %s84, 0
      %p674 = por %p672, %p673
      %p675 = scmp.ne.s32.totalorder %s664, %s667
      %p676 = scmp.eq.s32.totalorder %s89, 1
      %p677 = por %p675, %p676
      %p678 = scmp.ne.s32.totalorder %s667, %s668
      %p679 = scmp.eq.s32.totalorder %s89, 0
      %p680 = por %p678, %p679
      %p681 = scmp.ne.s32.totalorder %s667, %s668
      %p682 = scmp.eq.s32.totalorder %s90, 1
      %p683 = por %p681, %p682
      %p685 = scmp.ne.s32.totalorder %s668, %s684
      %p686 = scmp.eq.s32.totalorder %s90, 0
      %p687 = por %p685, %p686
      %s688 = ssub.s32 %s84, %s91
      %p689 = scmp.eq.s32.totalorder %s688, 0
      %s691 = sadd.s32 %s690, 1
      %s692 = scalar_select %p689, %s690, %s691
      %p695 = pneg %p689
      %p696 = scmp.eq.s32.totalorder %s84, 1
      %p697 = por %p695, %p696
      %p698 = scmp.ne.s32.totalorder %s690, %s693
      %p699 = scmp.eq.s32.totalorder %s84, 0
      %p700 = por %p698, %p699
      %p701 = scmp.ne.s32.totalorder %s690, %s693
      %p702 = scmp.eq.s32.totalorder %s89, 1
      %p703 = por %p701, %p702
      %p704 = scmp.ne.s32.totalorder %s693, %s694
      %p705 = scmp.eq.s32.totalorder %s89, 0
      %p706 = por %p704, %p705
      %p707 = scmp.ne.s32.totalorder %s693, %s694
      %p708 = scmp.eq.s32.totalorder %s90, 1
      %p709 = por %p707, %p708
      %p711 = scmp.ne.s32.totalorder %s694, %s710
      %p712 = scmp.eq.s32.totalorder %s90, 0
      %p713 = por %p711, %p712
      %s714 = ssub.s32 %s84, %s91
      %p715 = scmp.eq.s32.totalorder %s714, 0
      %s717 = sadd.s32 %s716, 1
      %s718 = scalar_select %p715, %s716, %s717
      %p721 = pneg %p715
      %p722 = scmp.eq.s32.totalorder %s84, 1
      %p723 = por %p721, %p722
      %p724 = scmp.ne.s32.totalorder %s716, %s719
      %p725 = scmp.eq.s32.totalorder %s84, 0
      %p726 = por %p724, %p725
      %p727 = scmp.ne.s32.totalorder %s716, %s719
      %p728 = scmp.eq.s32.totalorder %s89, 1
      %p729 = por %p727, %p728
      %p730 = scmp.ne.s32.totalorder %s719, %s720
      %p731 = scmp.eq.s32.totalorder %s89, 0
      %p732 = por %p730, %p731
      %p733 = scmp.ne.s32.totalorder %s719, %s720
      %p734 = scmp.eq.s32.totalorder %s90, 1
      %p735 = por %p733, %p734
      %p737 = scmp.ne.s32.totalorder %s720, %s736
      %p738 = scmp.eq.s32.totalorder %s90, 0
      %p739 = por %p737, %p738
      %s740 = ssub.s32 %s84, %s91
      %p741 = scmp.eq.s32.totalorder %s740, 0
      %s743 = sadd.s32 %s742, 1
      %s744 = scalar_select %p741, %s742, %s743
      %p747 = pneg %p741
      %p748 = scmp.eq.s32.totalorder %s84, 1
      %p749 = por %p747, %p748
      %p750 = scmp.ne.s32.totalorder %s742, %s745
      %p751 = scmp.eq.s32.totalorder %s84, 0
      %p752 = por %p750, %p751
      %p753 = scmp.ne.s32.totalorder %s742, %s745
      %p754 = scmp.eq.s32.totalorder %s89, 1
      %p755 = por %p753, %p754
      %p756 = scmp.ne.s32.totalorder %s745, %s746
      %p757 = scmp.eq.s32.totalorder %s89, 0
      %p758 = por %p756, %p757
      %p759 = scmp.ne.s32.totalorder %s745, %s746
      %p760 = scmp.eq.s32.totalorder %s90, 1
      %p761 = por %p759, %p760
      %p763 = scmp.ne.s32.totalorder %s746, %s762
      %p764 = scmp.eq.s32.totalorder %s90, 0
      %p765 = por %p763, %p764
      %s766 = ssub.s32 %s84, %s91
      %p767 = scmp.eq.s32.totalorder %s766, 0
      %s769 = sadd.s32 %s768, 1
      %s770 = scalar_select %p767, %s768, %s769
      %p773 = pneg %p767
      %p774 = scmp.eq.s32.totalorder %s84, 1
      %p775 = por %p773, %p774
      %p776 = scmp.ne.s32.totalorder %s768, %s771
      %p777 = scmp.eq.s32.totalorder %s84, 0
      %p778 = por %p776, %p777
      %p779 = scmp.ne.s32.totalorder %s768, %s771
      %p780 = scmp.eq.s32.totalorder %s89, 1
      %p781 = por %p779, %p780
      %p782 = scmp.ne.s32.totalorder %s771, %s772
      %p783 = scmp.eq.s32.totalorder %s89, 0
      %p784 = por %p782, %p783
      %p785 = scmp.ne.s32.totalorder %s771, %s772
      %p786 = scmp.eq.s32.totalorder %s90, 1
      %p787 = por %p785, %p786
      %p789 = scmp.ne.s32.totalorder %s772, %s788
      %p790 = scmp.eq.s32.totalorder %s90, 0
      %p791 = por %p789, %p790
      %s792 = ssub.s32 %s84, %s91
      %p793 = scmp.eq.s32.totalorder %s792, 0
      %s795 = sadd.s32 %s794, 1
      %s796 = scalar_select %p793, %s794, %s795
      %p799 = pneg %p793
      %p800 = scmp.eq.s32.totalorder %s84, 1
      %p801 = por %p799, %p800
      %p802 = scmp.ne.s32.totalorder %s794, %s797
      %p803 = scmp.eq.s32.totalorder %s84, 0
      %p804 = por %p802, %p803
      %p805 = scmp.ne.s32.totalorder %s794, %s797
      %p806 = scmp.eq.s32.totalorder %s89, 1
      %p807 = por %p805, %p806
      %p808 = scmp.ne.s32.totalorder %s797, %s798
      %p809 = scmp.eq.s32.totalorder %s89, 0
      %p810 = por %p808, %p809
      %p811 = scmp.ne.s32.totalorder %s797, %s798
      %p812 = scmp.eq.s32.totalorder %s90, 1
      %p813 = por %p811, %p812
      %p815 = scmp.ne.s32.totalorder %s798, %s814
      %p816 = scmp.eq.s32.totalorder %s90, 0
      %p817 = por %p815, %p816
      %s818 = ssub.s32 %s84, %s91
      %p819 = scmp.eq.s32.totalorder %s818, 0
      %s821 = sadd.s32 %s820, 1
      %s822 = scalar_select %p819, %s820, %s821
      %p825 = pneg %p819
      %p826 = scmp.eq.s32.totalorder %s84, 1
      %p827 = por %p825, %p826
      %p828 = scmp.ne.s32.totalorder %s820, %s823
      %p829 = scmp.eq.s32.totalorder %s84, 0
      %p830 = por %p828, %p829
      %p831 = scmp.ne.s32.totalorder %s820, %s823
      %p832 = scmp.eq.s32.totalorder %s89, 1
      %p833 = por %p831, %p832
      %p834 = scmp.ne.s32.totalorder %s823, %s824
      %p835 = scmp.eq.s32.totalorder %s89, 0
      %p836 = por %p834, %p835
      %p837 = scmp.ne.s32.totalorder %s823, %s824
      %p838 = scmp.eq.s32.totalorder %s90, 1
      %p839 = por %p837, %p838
      %p841 = scmp.ne.s32.totalorder %s824, %s840
      %p842 = scmp.eq.s32.totalorder %s90, 0
      %p843 = por %p841, %p842
      %s844 = ssub.s32 %s84, %s91
      %p845 = scmp.eq.s32.totalorder %s844, 0
      %s847 = sadd.s32 %s846, 1
      %s848 = scalar_select %p845, %s846, %s847
      %p851 = pneg %p845
      %p852 = scmp.eq.s32.totalorder %s84, 1
      %p853 = por %p851, %p852
      %p854 = scmp.ne.s32.totalorder %s846, %s849
      %p855 = scmp.eq.s32.totalorder %s84, 0
      %p856 = por %p854, %p855
      %p857 = scmp.ne.s32.totalorder %s846, %s849
      %p858 = scmp.eq.s32.totalorder %s89, 1
      %p859 = por %p857, %p858
      %p860 = scmp.ne.s32.totalorder %s849, %s850
      %p861 = scmp.eq.s32.totalorder %s89, 0
      %p862 = por %p860, %p861
      %p863 = scmp.ne.s32.totalorder %s849, %s850
      %p864 = scmp.eq.s32.totalorder %s90, 1
      %p865 = por %p863, %p864
      %p867 = scmp.ne.s32.totalorder %s850, %s866
      %p868 = scmp.eq.s32.totalorder %s90, 0
      %p869 = por %p867, %p868
      %s870 = ssub.s32 %s84, %s91
      %p871 = scmp.eq.s32.totalorder %s870, 0
      %s873 = sadd.s32 %s872, 1
      %s874 = scalar_select %p871, %s872, %s873
      %p877 = pneg %p871
      %p878 = scmp.eq.s32.totalorder %s84, 1
      %p879 = por %p877, %p878
      %p880 = scmp.ne.s32.totalorder %s872, %s875
      %p881 = scmp.eq.s32.totalorder %s84, 0
      %p882 = por %p880, %p881
      %p883 = scmp.ne.s32.totalorder %s872, %s875
      %p884 = scmp.eq.s32.totalorder %s89, 1
      %p885 = por %p883, %p884
      %p886 = scmp.ne.s32.totalorder %s875, %s876
      %p887 = scmp.eq.s32.totalorder %s89, 0
      %p888 = por %p886, %p887
      %p889 = scmp.ne.s32.totalorder %s875, %s876
      %p890 = scmp.eq.s32.totalorder %s90, 1
      %p891 = por %p889, %p890
      %p893 = scmp.ne.s32.totalorder %s876, %s892
      %p894 = scmp.eq.s32.totalorder %s90, 0
      %p895 = por %p893, %p894
      %s896 = ssub.s32 %s84, %s91
      %p897 = scmp.eq.s32.totalorder %s896, 0
      %s899 = sadd.s32 %s898, 1
      %s900 = scalar_select %p897, %s898, %s899
      %p903 = pneg %p897
      %p904 = scmp.eq.s32.totalorder %s84, 1
      %p905 = por %p903, %p904
      %p906 = scmp.ne.s32.totalorder %s898, %s901
      %p907 = scmp.eq.s32.totalorder %s84, 0
      %p908 = por %p906, %p907
      %p909 = scmp.ne.s32.totalorder %s898, %s901
      %p910 = scmp.eq.s32.totalorder %s89, 1
      %p911 = por %p909, %p910
      %p912 = scmp.ne.s32.totalorder %s901, %s902
      %p913 = scmp.eq.s32.totalorder %s89, 0
      %p914 = por %p912, %p913
      %p915 = scmp.ne.s32.totalorder %s901, %s902
      %p916 = scmp.eq.s32.totalorder %s90, 1
      %p917 = por %p915, %p916
      %p919 = scmp.ne.s32.totalorder %s902, %s918
      %p920 = scmp.eq.s32.totalorder %s90, 0
      %p921 = por %p919, %p920
      %s922 = ssub.s32 %s84, %s91
      %p923 = scmp.eq.s32.totalorder %s922, 0
      %s925 = sadd.s32 %s924, 1
      %s926 = scalar_select %p923, %s924, %s925
      %p929 = pneg %p923
      %p930 = scmp.eq.s32.totalorder %s84, 1
      %p931 = por %p929, %p930
      %p932 = scmp.ne.s32.totalorder %s924, %s927
      %p933 = scmp.eq.s32.totalorder %s84, 0
      %p934 = por %p932, %p933
      %p935 = scmp.ne.s32.totalorder %s924, %s927
      %p936 = scmp.eq.s32.totalorder %s89, 1
      %p937 = por %p935, %p936
      %p938 = scmp.ne.s32.totalorder %s927, %s928
      %p939 = scmp.eq.s32.totalorder %s89, 0
      %p940 = por %p938, %p939
      %p941 = scmp.ne.s32.totalorder %s927, %s928
      %p942 = scmp.eq.s32.totalorder %s90, 1
      %p943 = por %p941, %p942
      %p945 = scmp.ne.s32.totalorder %s928, %s944
      %p946 = scmp.eq.s32.totalorder %s90, 0
      %p947 = por %p945, %p946
      %s948 = ssub.s32 %s84, %s91
      %p949 = scmp.eq.s32.totalorder %s948, 0
      %s951 = sadd.s32 %s950, 1
      %s952 = scalar_select %p949, %s950, %s951
      %p955 = pneg %p949
      %p956 = scmp.eq.s32.totalorder %s84, 1
      %p957 = por %p955, %p956
      %p958 = scmp.ne.s32.totalorder %s950, %s953
      %p959 = scmp.eq.s32.totalorder %s84, 0
      %p960 = por %p958, %p959
      %p961 = scmp.ne.s32.totalorder %s950, %s953
      %p962 = scmp.eq.s32.totalorder %s89, 1
      %p963 = por %p961, %p962
      %p964 = scmp.ne.s32.totalorder %s953, %s954
      %p965 = scmp.eq.s32.totalorder %s89, 0
      %p966 = por %p964, %p965
      %p967 = scmp.ne.s32.totalorder %s953, %s954
      %p968 = scmp.eq.s32.totalorder %s90, 1
      %p969 = por %p967, %p968
      %p971 = scmp.ne.s32.totalorder %s954, %s970
      %p972 = scmp.eq.s32.totalorder %s90, 0
      %p973 = por %p971, %p972
      %s974 = ssub.s32 %s84, %s91
      %p975 = scmp.eq.s32.totalorder %s974, 0
      %s977 = sadd.s32 %s976, 1
      %s978 = scalar_select %p975, %s976, %s977
      %p981 = pneg %p975
      %p982 = scmp.eq.s32.totalorder %s84, 1
      %p983 = por %p981, %p982
      %p984 = scmp.ne.s32.totalorder %s976, %s979
      %p985 = scmp.eq.s32.totalorder %s84, 0
      %p986 = por %p984, %p985
      %p987 = scmp.ne.s32.totalorder %s976, %s979
      %p988 = scmp.eq.s32.totalorder %s89, 1
      %p989 = por %p987, %p988
      %p990 = scmp.ne.s32.totalorder %s979, %s980
      %p991 = scmp.eq.s32.totalorder %s89, 0
      %p992 = por %p990, %p991
      %p993 = scmp.ne.s32.totalorder %s979, %s980
      %p994 = scmp.eq.s32.totalorder %s90, 1
      %p995 = por %p993, %p994
      %p997 = scmp.ne.s32.totalorder %s980, %s996
      %p998 = scmp.eq.s32.totalorder %s90, 0
      %p999 = por %p997, %p998
      %s1001 = sadd.s32 %s1000, 1
      %p1004 = scmp.eq.s32.totalorder %s84, 1
      %p1005 = scmp.ne.s32.totalorder %s1000, %s1002
      %p1006 = scmp.eq.s32.totalorder %s84, 0
      %p1007 = por %p1005, %p1006
      %p1008 = scmp.ne.s32.totalorder %s1000, %s1002
      %p1009 = scmp.eq.s32.totalorder %s89, 1
      %p1010 = por %p1008, %p1009
      %p1011 = scmp.ne.s32.totalorder %s1002, %s1003
      %p1012 = scmp.eq.s32.totalorder %s89, 0
      %p1013 = por %p1011, %p1012
      %p1014 = scmp.ne.s32.totalorder %s1002, %s1003
      %p1015 = scmp.eq.s32.totalorder %s90, 1
      %p1016 = por %p1014, %p1015
      %p1018 = scmp.ne.s32.totalorder %s1003, %s1017
      %p1019 = scmp.eq.s32.totalorder %s90, 0
      %p1020 = por %p1018, %p1019
      %p1021 = scmp.le.s32.totalorder 1, %s84
      %p1022 = scmp.lt.s32.totalorder %s84, 3
      %p1023 = pnand %p1021, %p1022
      %p1024 = pneg %p1023
      // Predicated region
      $region9: #{decoder_forward.1} parent=5 // pred_check
        _
      $region10: #{decoder_forward.1} parent=5 // pred_check_branch
        %1026 = sbr.rel (%p1023) target = $region12
      $region11: #{decoder_forward.1} parent=5 // pred_region
        %s1027 = ssub.s32 %s84, 1
        // Predicated region
        $region13: #{decoder_forward.1} parent=11 // pred_check
          %p1028 = pneg %p105
        $region14: #{decoder_forward.1} parent=11 // pred_check_branch
          %1030 = sbr.rel (%p1028) target = $region16
        $region15: #{decoder_forward.1} parent=11 // pred_region
          _
        $region16: #{decoder_forward.1} parent=11 // pred_fallthru
          _
        // Predicated region
        $region17: #{decoder_forward.1} parent=11 // pred_check
          %p1031 = pneg %p126
        $region18: #{decoder_forward.1} parent=11 // pred_check_branch
          %1033 = sbr.rel (%p1031) target = $region20
        $region19: #{decoder_forward.1} parent=11 // pred_region
          _
        $region20: #{decoder_forward.1} parent=11 // pred_fallthru
          _
        // Predicated region
        $region21: #{decoder_forward.1} parent=11 // pred_check
          %p1034 = pneg %p147
        $region22: #{decoder_forward.1} parent=11 // pred_check_branch
          %1036 = sbr.rel (%p1034) target = $region24
        $region23: #{decoder_forward.1} parent=11 // pred_region
          _
        $region24: #{decoder_forward.1} parent=11 // pred_fallthru
          _
        // Predicated region
        $region25: #{decoder_forward.1} parent=11 // pred_check
          %p1037 = pneg %p168
        $region26: #{decoder_forward.1} parent=11 // pred_check_branch
          %1039 = sbr.rel (%p1037) target = $region28
        $region27: #{decoder_forward.1} parent=11 // pred_region
          _
        $region28: #{decoder_forward.1} parent=11 // pred_fallthru
          _
        // Predicated region
        $region29: #{decoder_forward.1} parent=11 // pred_check
          %p1040 = pneg %p189
        $region30: #{decoder_forward.1} parent=11 // pred_check_branch
          %1042 = sbr.rel (%p1040) target = $region32
        $region31: #{decoder_forward.1} parent=11 // pred_region
          _
        $region32: #{decoder_forward.1} parent=11 // pred_fallthru
          _
        // Predicated region
        $region33: #{decoder_forward.1} parent=11 // pred_check
          %p1043 = pneg %p210
        $region34: #{decoder_forward.1} parent=11 // pred_check_branch
          %1045 = sbr.rel (%p1043) target = $region36
        $region35: #{decoder_forward.1} parent=11 // pred_region
          _
        $region36: #{decoder_forward.1} parent=11 // pred_fallthru
          _
        // Predicated region
        $region37: #{decoder_forward.1} parent=11 // pred_check
          %p1046 = pneg %p231
        $region38: #{decoder_forward.1} parent=11 // pred_check_branch
          %1048 = sbr.rel (%p1046) target = $region40
        $region39: #{decoder_forward.1} parent=11 // pred_region
          _
        $region40: #{decoder_forward.1} parent=11 // pred_fallthru
          _
        // Predicated region
        $region41: #{decoder_forward.1} parent=11 // pred_check
          %p1049 = pneg %p252
        $region42: #{decoder_forward.1} parent=11 // pred_check_branch
          %1051 = sbr.rel (%p1049) target = $region44
        $region43: #{decoder_forward.1} parent=11 // pred_region
          _
        $region44: #{decoder_forward.1} parent=11 // pred_fallthru
          _
        // Predicated region
        $region45: #{decoder_forward.1} parent=11 // pred_check
          %p1052 = pneg %p273
        $region46: #{decoder_forward.1} parent=11 // pred_check_branch
          %1054 = sbr.rel (%p1052) target = $region48
        $region47: #{decoder_forward.1} parent=11 // pred_region
          _
        $region48: #{decoder_forward.1} parent=11 // pred_fallthru
          _
        // Predicated region
        $region49: #{decoder_forward.1} parent=11 // pred_check
          %p1055 = pneg %p294
        $region50: #{decoder_forward.1} parent=11 // pred_check_branch
          %1057 = sbr.rel (%p1055) target = $region52
        $region51: #{decoder_forward.1} parent=11 // pred_region
          _
        $region52: #{decoder_forward.1} parent=11 // pred_fallthru
          _
        // Predicated region
        $region53: #{decoder_forward.1} parent=11 // pred_check
          %p1058 = pneg %p315
        $region54: #{decoder_forward.1} parent=11 // pred_check_branch
          %1060 = sbr.rel (%p1058) target = $region56
        $region55: #{decoder_forward.1} parent=11 // pred_region
          _
        $region56: #{decoder_forward.1} parent=11 // pred_fallthru
          _
        // Predicated region
        $region57: #{decoder_forward.1} parent=11 // pred_check
          %p1061 = pneg %p336
        $region58: #{decoder_forward.1} parent=11 // pred_check_branch
          %1063 = sbr.rel (%p1061) target = $region60
        $region59: #{decoder_forward.1} parent=11 // pred_region
          _
        $region60: #{decoder_forward.1} parent=11 // pred_fallthru
          _
        // Predicated region
        $region61: #{decoder_forward.1} parent=11 // pred_check
          %p1064 = pneg %p357
        $region62: #{decoder_forward.1} parent=11 // pred_check_branch
          %1066 = sbr.rel (%p1064) target = $region64
        $region63: #{decoder_forward.1} parent=11 // pred_region
          _
        $region64: #{decoder_forward.1} parent=11 // pred_fallthru
          _
        // Predicated region
        $region65: #{decoder_forward.1} parent=11 // pred_check
          %p1067 = pneg %p378
        $region66: #{decoder_forward.1} parent=11 // pred_check_branch
          %1069 = sbr.rel (%p1067) target = $region68
        $region67: #{decoder_forward.1} parent=11 // pred_region
          _
        $region68: #{decoder_forward.1} parent=11 // pred_fallthru
          _
        // Predicated region
        $region69: #{decoder_forward.1} parent=11 // pred_check
          %p1070 = pneg %p399
        $region70: #{decoder_forward.1} parent=11 // pred_check_branch
          %1072 = sbr.rel (%p1070) target = $region72
        $region71: #{decoder_forward.1} parent=11 // pred_region
          _
        $region72: #{decoder_forward.1} parent=11 // pred_fallthru
          _
        // Predicated region
        $region73: #{decoder_forward.1} parent=11 // pred_check
          %p1073 = pneg %p420
        $region74: #{decoder_forward.1} parent=11 // pred_check_branch
          %1075 = sbr.rel (%p1073) target = $region76
        $region75: #{decoder_forward.1} parent=11 // pred_region
          _
        $region76: #{decoder_forward.1} parent=11 // pred_fallthru
          _
      $region12: #{decoder_forward.1} parent=5 // pred_fallthru
        _
      %p1076 = scmp.lt.s32.totalorder %s84, 2
      // Predicated region
      $region77: #{decoder_forward.1} parent=5 // pred_check
        %p1077 = pneg %p1076
      $region78: #{decoder_forward.1} parent=5 // pred_check_branch
        %1079 = sbr.rel (%p1077) target = $region80
      $region79: #{decoder_forward.1} parent=5 // pred_region
        // Predicated region
        $region81: #{decoder_forward.1} parent=79 // pred_check
          %p1080 = pneg %p440
        $region82: #{decoder_forward.1} parent=79 // pred_check_branch
          %1082 = sbr.rel (%p1080) target = $region84
        $region83: #{decoder_forward.1} parent=79 // pred_region
          %p1083 = scmp.lt.s32.totalorder %s84, 1
          %s1084 = scalar_select %p1083, %s84, 1
          %s1085 = smul.addr %s1084, 8
          %s1086 = smul.addr %s1085, 8
          %s1087 = scalar_lea.vmem %s33, %s1086
        $region84: #{decoder_forward.1} parent=79 // pred_fallthru
          _
        // Predicated region
        $region85: #{decoder_forward.1} parent=79 // pred_check
          %p1088 = pneg %p466
        $region86: #{decoder_forward.1} parent=79 // pred_check_branch
          %1090 = sbr.rel (%p1088) target = $region88
        $region87: #{decoder_forward.1} parent=79 // pred_region
          %p1091 = scmp.lt.s32.totalorder %s84, 1
          %s1092 = scalar_select %p1091, %s84, 1
          %s1093 = scalar_lea.vmem %s35, %s1092
        $region88: #{decoder_forward.1} parent=79 // pred_fallthru
          _
        // Predicated region
        $region89: #{decoder_forward.1} parent=79 // pred_check
          %p1094 = pneg %p492
        $region90: #{decoder_forward.1} parent=79 // pred_check_branch
          %1096 = sbr.rel (%p1094) target = $region92
        $region91: #{decoder_forward.1} parent=79 // pred_region
          %p1097 = scmp.lt.s32.totalorder %s84, 1
          %s1098 = scalar_select %p1097, %s84, 1
          %s1099 = smul.addr %s1098, 4
          %s1100 = smul.addr %s1099, 8
          %s1101 = scalar_lea.vmem %s37, %s1100
        $region92: #{decoder_forward.1} parent=79 // pred_fallthru
          _
        // Predicated region
        $region93: #{decoder_forward.1} parent=79 // pred_check
          %p1102 = pneg %p518
        $region94: #{decoder_forward.1} parent=79 // pred_check_branch
          %1104 = sbr.rel (%p1102) target = $region96
        $region95: #{decoder_forward.1} parent=79 // pred_region
          %p1105 = scmp.lt.s32.totalorder %s84, 1
          %s1106 = scalar_select %p1105, %s84, 1
          %s1107 = scalar_lea.vmem %s39, %s1106
        $region96: #{decoder_forward.1} parent=79 // pred_fallthru
          _
        // Predicated region
        $region97: #{decoder_forward.1} parent=79 // pred_check
          %p1108 = pneg %p544
        $region98: #{decoder_forward.1} parent=79 // pred_check_branch
          %1110 = sbr.rel (%p1108) target = $region100
        $region99: #{decoder_forward.1} parent=79 // pred_region
          %p1111 = scmp.lt.s32.totalorder %s84, 1
          %s1112 = scalar_select %p1111, %s84, 1
          %s1113 = smul.addr %s1112, 4
          %s1114 = smul.addr %s1113, 8
          %s1115 = scalar_lea.vmem %s41, %s1114
        $region100: #{decoder_forward.1} parent=79 // pred_fallthru
          _
        // Predicated region
        $region101: #{decoder_forward.1} parent=79 // pred_check
          %p1116 = pneg %p570
        $region102: #{decoder_forward.1} parent=79 // pred_check_branch
          %1118 = sbr.rel (%p1116) target = $region104
        $region103: #{decoder_forward.1} parent=79 // pred_region
          %p1119 = scmp.lt.s32.totalorder %s84, 1
          %s1120 = scalar_select %p1119, %s84, 1
          %s1121 = scalar_lea.vmem %s43, %s1120
        $region104: #{decoder_forward.1} parent=79 // pred_fallthru
          _
        // Predicated region
        $region105: #{decoder_forward.1} parent=79 // pred_check
          %p1122 = pneg %p596
        $region106: #{decoder_forward.1} parent=79 // pred_check_branch
          %1124 = sbr.rel (%p1122) target = $region108
        $region107: #{decoder_forward.1} parent=79 // pred_region
          %p1125 = scmp.lt.s32.totalorder %s84, 1
          %s1126 = scalar_select %p1125, %s84, 1
          %s1127 = scalar_lea.vmem %s45, %s1126
        $region108: #{decoder_forward.1} parent=79 // pred_fallthru
          _
        // Predicated region
        $region109: #{decoder_forward.1} parent=79 // pred_check
          %p1128 = pneg %p622
        $region110: #{decoder_forward.1} parent=79 // pred_check_branch
          %1130 = sbr.rel (%p1128) target = $region112
        $region111: #{decoder_forward.1} parent=79 // pred_region
          %p1131 = scmp.lt.s32.totalorder %s84, 1
          %s1132 = scalar_select %p1131, %s84, 1
          %s1133 = scalar_lea.vmem %s47, %s1132
        $region112: #{decoder_forward.1} parent=79 // pred_fallthru
          _
        // Predicated region
        $region113: #{decoder_forward.1} parent=79 // pred_check
          %p1134 = pneg %p648
        $region114: #{decoder_forward.1} parent=79 // pred_check_branch
          %1136 = sbr.rel (%p1134) target = $region116
        $region115: #{decoder_forward.1} parent=79 // pred_region
          %p1137 = scmp.lt.s32.totalorder %s84, 1
          %s1138 = scalar_select %p1137, %s84, 1
          %s1139 = smul.addr %s1138, 12
          %s1140 = smul.addr %s1139, 8
          %s1141 = scalar_lea.vmem %s49, %s1140
        $region116: #{decoder_forward.1} parent=79 // pred_fallthru
          _
        // Predicated region
        $region117: #{decoder_forward.1} parent=79 // pred_check
          %p1142 = pneg %p674
        $region118: #{decoder_forward.1} parent=79 // pred_check_branch
          %1144 = sbr.rel (%p1142) target = $region120
        $region119: #{decoder_forward.1} parent=79 // pred_region
          %p1145 = scmp.lt.s32.totalorder %s84, 1
          %s1146 = scalar_select %p1145, %s84, 1
          %s1147 = scalar_lea.vmem %s51, %s1146
        $region120: #{decoder_forward.1} parent=79 // pred_fallthru
          _
        // Predicated region
        $region121: #{decoder_forward.1} parent=79 // pred_check
          %p1148 = pneg %p700
        $region122: #{decoder_forward.1} parent=79 // pred_check_branch
          %1150 = sbr.rel (%p1148) target = $region124
        $region123: #{decoder_forward.1} parent=79 // pred_region
          %p1151 = scmp.lt.s32.totalorder %s84, 1
          %s1152 = scalar_select %p1151, %s84, 1
          %s1153 = smul.addr %s1152, 4
          %s1154 = smul.addr %s1153, 8
          %s1155 = scalar_lea.vmem %s53, %s1154
        $region124: #{decoder_forward.1} parent=79 // pred_fallthru
          _
        // Predicated region
        $region125: #{decoder_forward.1} parent=79 // pred_check
          %p1156 = pneg %p726
        $region126: #{decoder_forward.1} parent=79 // pred_check_branch
          %1158 = sbr.rel (%p1156) target = $region128
        $region127: #{decoder_forward.1} parent=79 // pred_region
          %p1159 = scmp.lt.s32.totalorder %s84, 1
          %s1160 = scalar_select %p1159, %s84, 1
          %s1161 = scalar_lea.vmem %s55, %s1160
        $region128: #{decoder_forward.1} parent=79 // pred_fallthru
          _
        // Predicated region
        $region129: #{decoder_forward.1} parent=79 // pred_check
          %p1162 = pneg %p752
        $region130: #{decoder_forward.1} parent=79 // pred_check_branch
          %1164 = sbr.rel (%p1162) target = $region132
        $region131: #{decoder_forward.1} parent=79 // pred_region
          %p1165 = scmp.lt.s32.totalorder %s84, 1
          %s1166 = scalar_select %p1165, %s84, 1
          %s1167 = smul.addr %s1166, 4
          %s1168 = smul.addr %s1167, 8
          %s1169 = scalar_lea.vmem %s57, %s1168
        $region132: #{decoder_forward.1} parent=79 // pred_fallthru
          _
        // Predicated region
        $region133: #{decoder_forward.1} parent=79 // pred_check
          %p1170 = pneg %p778
        $region134: #{decoder_forward.1} parent=79 // pred_check_branch
          %1172 = sbr.rel (%p1170) target = $region136
        $region135: #{decoder_forward.1} parent=79 // pred_region
          %p1173 = scmp.lt.s32.totalorder %s84, 1
          %s1174 = scalar_select %p1173, %s84, 1
          %s1175 = scalar_lea.vmem %s59, %s1174
        $region136: #{decoder_forward.1} parent=79 // pred_fallthru
          _
        // Predicated region
        $region137: #{decoder_forward.1} parent=79 // pred_check
          %p1176 = pneg %p804
        $region138: #{decoder_forward.1} parent=79 // pred_check_branch
          %1178 = sbr.rel (%p1176) target = $region140
        $region139: #{decoder_forward.1} parent=79 // pred_region
          %p1179 = scmp.lt.s32.totalorder %s84, 1
          %s1180 = scalar_select %p1179, %s84, 1
          %s1181 = scalar_lea.vmem %s61, %s1180
        $region140: #{decoder_forward.1} parent=79 // pred_fallthru
          _
        // Predicated region
        $region141: #{decoder_forward.1} parent=79 // pred_check
          %p1182 = pneg %p830
        $region142: #{decoder_forward.1} parent=79 // pred_check_branch
          %1184 = sbr.rel (%p1182) target = $region144
        $region143: #{decoder_forward.1} parent=79 // pred_region
          %p1185 = scmp.lt.s32.totalorder %s84, 1
          %s1186 = scalar_select %p1185, %s84, 1
          %s1187 = scalar_lea.vmem %s63, %s1186
        $region144: #{decoder_forward.1} parent=79 // pred_fallthru
          _
        // Predicated region
        $region145: #{decoder_forward.1} parent=79 // pred_check
          %p1188 = pneg %p856
        $region146: #{decoder_forward.1} parent=79 // pred_check_branch
          %1190 = sbr.rel (%p1188) target = $region148
        $region147: #{decoder_forward.1} parent=79 // pred_region
          %p1191 = scmp.lt.s32.totalorder %s84, 1
          %s1192 = scalar_select %p1191, %s84, 1
          %s1193 = smul.addr %s1192, 8
          %s1194 = smul.addr %s1193, 8
          %s1195 = scalar_lea.vmem %s65, %s1194
        $region148: #{decoder_forward.1} parent=79 // pred_fallthru
          _
        // Predicated region
        $region149: #{decoder_forward.1} parent=79 // pred_check
          %p1196 = pneg %p882
        $region150: #{decoder_forward.1} parent=79 // pred_check_branch
          %1198 = sbr.rel (%p1196) target = $region152
        $region151: #{decoder_forward.1} parent=79 // pred_region
          %p1199 = scmp.lt.s32.totalorder %s84, 1
          %s1200 = scalar_select %p1199, %s84, 1
          %s1201 = scalar_lea.vmem %s67, %s1200
        $region152: #{decoder_forward.1} parent=79 // pred_fallthru
          _
        // Predicated region
        $region153: #{decoder_forward.1} parent=79 // pred_check
          %p1202 = pneg %p908
        $region154: #{decoder_forward.1} parent=79 // pred_check_branch
          %1204 = sbr.rel (%p1202) target = $region156
        $region155: #{decoder_forward.1} parent=79 // pred_region
          %p1205 = scmp.lt.s32.totalorder %s84, 1
          %s1206 = scalar_select %p1205, %s84, 1
          %s1207 = smul.addr %s1206, 4
          %s1208 = smul.addr %s1207, 8
          %s1209 = scalar_lea.vmem %s69, %s1208
        $region156: #{decoder_forward.1} parent=79 // pred_fallthru
          _
        // Predicated region
        $region157: #{decoder_forward.1} parent=79 // pred_check
          %p1210 = pneg %p934
        $region158: #{decoder_forward.1} parent=79 // pred_check_branch
          %1212 = sbr.rel (%p1210) target = $region160
        $region159: #{decoder_forward.1} parent=79 // pred_region
          %p1213 = scmp.lt.s32.totalorder %s84, 1
          %s1214 = scalar_select %p1213, %s84, 1
          %s1215 = scalar_lea.vmem %s71, %s1214
        $region160: #{decoder_forward.1} parent=79 // pred_fallthru
          _
        // Predicated region
        $region161: #{decoder_forward.1} parent=79 // pred_check
          %p1216 = pneg %p960
        $region162: #{decoder_forward.1} parent=79 // pred_check_branch
          %1218 = sbr.rel (%p1216) target = $region164
        $region163: #{decoder_forward.1} parent=79 // pred_region
          %p1219 = scmp.lt.s32.totalorder %s84, 1
          %s1220 = scalar_select %p1219, %s84, 1
          %s1221 = scalar_lea.vmem %s73, %s1220
        $region164: #{decoder_forward.1} parent=79 // pred_fallthru
          _
        // Predicated region
        $region165: #{decoder_forward.1} parent=79 // pred_check
          %p1222 = pneg %p986
        $region166: #{decoder_forward.1} parent=79 // pred_check_branch
          %1224 = sbr.rel (%p1222) target = $region168
        $region167: #{decoder_forward.1} parent=79 // pred_region
          %p1225 = scmp.lt.s32.totalorder %s84, 1
          %s1226 = scalar_select %p1225, %s84, 1
          %s1227 = scalar_lea.vmem %s75, %s1226
        $region168: #{decoder_forward.1} parent=79 // pred_fallthru
          _
      $region80: #{decoder_forward.1} parent=5 // pred_fallthru
        _
      %p1228 = scmp.le.s32.totalorder 1, %s84
      %p1229 = scmp.lt.s32.totalorder %s84, 3
      %p1230 = pnand %p1228, %p1229
      %p1231 = pneg %p1230
      // Predicated region
      $region169: #{decoder_forward.1} parent=5 // pred_check
        _
      $region170: #{decoder_forward.1} parent=5 // pred_check_branch
        %1233 = sbr.rel (%p1230) target = $region172
      $region171: #{decoder_forward.1} parent=5 // pred_region
        %s1234 = ssub.s32 %s84, 1
        %p1235 = pneg %p105
        %p1236 = pneg %p102
        %p1237 = pneg %p126
        %p1238 = pneg %p123
        %p1239 = pneg %p147
        %p1240 = pneg %p144
        %p1241 = pneg %p168
        %p1242 = pneg %p165
        %p1243 = pneg %p189
        %p1244 = pneg %p186
        %p1245 = pneg %p210
        %p1246 = pneg %p207
        %p1247 = pneg %p231
        %p1248 = pneg %p228
        %p1249 = pneg %p252
        %p1250 = pneg %p249
        %p1251 = pneg %p273
        %p1252 = pneg %p270
        %p1253 = pneg %p294
        %p1254 = pneg %p291
        %p1255 = pneg %p315
        %p1256 = pneg %p312
        %p1257 = pneg %p336
        %p1258 = pneg %p333
        %p1259 = pneg %p357
        %p1260 = pneg %p354
        %p1261 = pneg %p378
        %p1262 = pneg %p375
        %p1263 = pneg %p399
        %p1264 = pneg %p396
        %p1265 = pneg %p420
        %p1266 = pneg %p417
        %p1267 = scmp.lt.s32.totalorder %s89, 1
        %s1268 = scalar_select %p1267, %s89, 1
        %s1269 = smul.addr %s1268, 8
        %s1270 = smul.addr %s1269, 8
        %s1271 = scalar_lea.vmem %s33, %s1270
        %p1272 = pneg %p446
        %p1273 = pneg %p443
        %p1274 = scmp.lt.s32.totalorder %s89, 1
        %s1275 = scalar_select %p1274, %s89, 1
        %s1276 = scalar_lea.vmem %s35, %s1275
        %p1277 = pneg %p472
        %p1278 = pneg %p469
        %p1279 = scmp.lt.s32.totalorder %s89, 1
        %s1280 = scalar_select %p1279, %s89, 1
        %s1281 = smul.addr %s1280, 4
        %s1282 = smul.addr %s1281, 8
        %s1283 = scalar_lea.vmem %s37, %s1282
        %p1284 = pneg %p498
        %p1285 = pneg %p495
        %p1286 = scmp.lt.s32.totalorder %s89, 1
        %s1287 = scalar_select %p1286, %s89, 1
        %s1288 = scalar_lea.vmem %s39, %s1287
        %p1289 = pneg %p524
        %p1290 = pneg %p521
        %p1291 = scmp.lt.s32.totalorder %s89, 1
        %s1292 = scalar_select %p1291, %s89, 1
        %s1293 = smul.addr %s1292, 4
        %s1294 = smul.addr %s1293, 8
        %s1295 = scalar_lea.vmem %s41, %s1294
        %p1296 = pneg %p550
        %p1297 = pneg %p547
        %p1298 = scmp.lt.s32.totalorder %s89, 1
        %s1299 = scalar_select %p1298, %s89, 1
        %s1300 = scalar_lea.vmem %s43, %s1299
        %p1301 = pneg %p576
        %p1302 = pneg %p573
        %p1303 = scmp.lt.s32.totalorder %s89, 1
        %s1304 = scalar_select %p1303, %s89, 1
        %s1305 = scalar_lea.vmem %s45, %s1304
        %p1306 = pneg %p602
        %p1307 = pneg %p599
        %p1308 = scmp.lt.s32.totalorder %s89, 1
        %s1309 = scalar_select %p1308, %s89, 1
        %s1310 = scalar_lea.vmem %s47, %s1309
        %p1311 = pneg %p628
        %p1312 = pneg %p625
        %p1313 = scmp.lt.s32.totalorder %s89, 1
        %s1314 = scalar_select %p1313, %s89, 1
        %s1315 = smul.addr %s1314, 12
        %s1316 = smul.addr %s1315, 8
        %s1317 = scalar_lea.vmem %s49, %s1316
        %p1318 = pneg %p654
        %p1319 = pneg %p651
        %p1320 = scmp.lt.s32.totalorder %s89, 1
        %s1321 = scalar_select %p1320, %s89, 1
        %s1322 = scalar_lea.vmem %s51, %s1321
        %p1323 = pneg %p680
        %p1324 = pneg %p677
        %p1325 = scmp.lt.s32.totalorder %s89, 1
        %s1326 = scalar_select %p1325, %s89, 1
        %s1327 = smul.addr %s1326, 4
        %s1328 = smul.addr %s1327, 8
        %s1329 = scalar_lea.vmem %s53, %s1328
        %p1330 = pneg %p706
        %p1331 = pneg %p703
        %p1332 = scmp.lt.s32.totalorder %s89, 1
        %s1333 = scalar_select %p1332, %s89, 1
        %s1334 = scalar_lea.vmem %s55, %s1333
        %p1335 = pneg %p732
        %p1336 = pneg %p729
        %p1337 = scmp.lt.s32.totalorder %s89, 1
        %s1338 = scalar_select %p1337, %s89, 1
        %s1339 = smul.addr %s1338, 4
        %s1340 = smul.addr %s1339, 8
        %s1341 = scalar_lea.vmem %s57, %s1340
        %p1342 = pneg %p758
        %p1343 = pneg %p755
        %p1344 = scmp.lt.s32.totalorder %s89, 1
        %s1345 = scalar_select %p1344, %s89, 1
        %s1346 = scalar_lea.vmem %s59, %s1345
        %p1347 = pneg %p784
        %p1348 = pneg %p781
        %p1349 = scmp.lt.s32.totalorder %s89, 1
        %s1350 = scalar_select %p1349, %s89, 1
        %s1351 = scalar_lea.vmem %s61, %s1350
        %p1352 = pneg %p810
        %p1353 = pneg %p807
        %p1354 = scmp.lt.s32.totalorder %s89, 1
        %s1355 = scalar_select %p1354, %s89, 1
        %s1356 = scalar_lea.vmem %s63, %s1355
        %p1357 = pneg %p836
        %p1358 = pneg %p833
        %p1359 = scmp.lt.s32.totalorder %s89, 1
        %s1360 = scalar_select %p1359, %s89, 1
        %s1361 = smul.addr %s1360, 8
        %s1362 = smul.addr %s1361, 8
        %s1363 = scalar_lea.vmem %s65, %s1362
        %p1364 = pneg %p862
        %p1365 = pneg %p859
        %p1366 = scmp.lt.s32.totalorder %s89, 1
        %s1367 = scalar_select %p1366, %s89, 1
        %s1368 = scalar_lea.vmem %s67, %s1367
        %p1369 = pneg %p888
        %p1370 = pneg %p885
        %p1371 = scmp.lt.s32.totalorder %s89, 1
        %s1372 = scalar_select %p1371, %s89, 1
        %s1373 = smul.addr %s1372, 4
        %s1374 = smul.addr %s1373, 8
        %s1375 = scalar_lea.vmem %s69, %s1374
        %p1376 = pneg %p914
        %p1377 = pneg %p911
        %p1378 = scmp.lt.s32.totalorder %s89, 1
        %s1379 = scalar_select %p1378, %s89, 1
        %s1380 = scalar_lea.vmem %s71, %s1379
        %p1381 = pneg %p940
        %p1382 = pneg %p937
        %p1383 = scmp.lt.s32.totalorder %s89, 1
        %s1384 = scalar_select %p1383, %s89, 1
        %s1385 = scalar_lea.vmem %s73, %s1384
        %p1386 = pneg %p966
        %p1387 = pneg %p963
        %p1388 = scmp.lt.s32.totalorder %s89, 1
        %s1389 = scalar_select %p1388, %s89, 1
        %s1390 = scalar_lea.vmem %s75, %s1389
        %p1391 = pneg %p992
        %p1392 = pneg %p989
        %p1393 = pneg %p1013
        %p1394 = pneg %p1010
        %p1395 = scmp.lt.s32.totalorder %s89, 1
        %s1396 = scalar_select %p1395, %s89, 1
        %s1397 = smul.addr %s1396, 8
        %s1398 = smul.addr %s1397, 8
        %s1399 = scalar_lea.vmem %s33, %s1398
        %p1400 = scmp.lt.s32.totalorder %s89, 1
        %s1401 = scalar_select %p1400, %s89, 1
        %s1402 = scalar_lea.vmem %s35, %s1401
        %p1403 = scmp.lt.s32.totalorder %s89, 1
        %s1404 = scalar_select %p1403, %s89, 1
        %s1405 = smul.addr %s1404, 4
        %s1406 = smul.addr %s1405, 8
        %s1407 = scalar_lea.vmem %s37, %s1406
        %p1408 = scmp.lt.s32.totalorder %s89, 1
        %s1409 = scalar_select %p1408, %s89, 1
        %s1410 = scalar_lea.vmem %s39, %s1409
        %p1411 = scmp.lt.s32.totalorder %s89, 1
        %s1412 = scalar_select %p1411, %s89, 1
        %s1413 = smul.addr %s1412, 4
        %s1414 = smul.addr %s1413, 8
        %s1415 = scalar_lea.vmem %s41, %s1414
        %p1416 = scmp.lt.s32.totalorder %s89, 1
        %s1417 = scalar_select %p1416, %s89, 1
        %s1418 = scalar_lea.vmem %s43, %s1417
        %p1419 = scmp.lt.s32.totalorder %s89, 1
        %s1420 = scalar_select %p1419, %s89, 1
        %s1421 = scalar_lea.vmem %s45, %s1420
        %p1422 = scmp.lt.s32.totalorder %s89, 1
        %s1423 = scalar_select %p1422, %s89, 1
        %s1424 = scalar_lea.vmem %s47, %s1423
        %p1425 = scmp.lt.s32.totalorder %s89, 1
        %s1426 = scalar_select %p1425, %s89, 1
        %s1427 = smul.addr %s1426, 12
        %s1428 = smul.addr %s1427, 8
        %s1429 = scalar_lea.vmem %s49, %s1428
        %p1430 = scmp.lt.s32.totalorder %s89, 1
        %s1431 = scalar_select %p1430, %s89, 1
        %s1432 = scalar_lea.vmem %s51, %s1431
        %p1433 = scmp.lt.s32.totalorder %s89, 1
        %s1434 = scalar_select %p1433, %s89, 1
        %s1435 = smul.addr %s1434, 4
        %s1436 = smul.addr %s1435, 8
        %s1437 = scalar_lea.vmem %s53, %s1436
        %p1438 = scmp.lt.s32.totalorder %s89, 1
        %s1439 = scalar_select %p1438, %s89, 1
        %s1440 = scalar_lea.vmem %s55, %s1439
        %p1441 = scmp.lt.s32.totalorder %s89, 1
        %s1442 = scalar_select %p1441, %s89, 1
        %s1443 = smul.addr %s1442, 4
        %s1444 = smul.addr %s1443, 8
        %s1445 = scalar_lea.vmem %s57, %s1444
        %p1446 = scmp.lt.s32.totalorder %s89, 1
        %s1447 = scalar_select %p1446, %s89, 1
        %s1448 = scalar_lea.vmem %s59, %s1447
        %p1449 = scmp.lt.s32.totalorder %s89, 1
        %s1450 = scalar_select %p1449, %s89, 1
        %s1451 = scalar_lea.vmem %s61, %s1450
        %p1452 = scmp.lt.s32.totalorder %s89, 1
        %s1453 = scalar_select %p1452, %s89, 1
        %s1454 = scalar_lea.vmem %s63, %s1453
        %p1455 = scmp.lt.s32.totalorder %s89, 1
        %s1456 = scalar_select %p1455, %s89, 1
        %s1457 = smul.addr %s1456, 8
        %s1458 = smul.addr %s1457, 8
        %s1459 = scalar_lea.vmem %s65, %s1458
        %p1460 = scmp.lt.s32.totalorder %s89, 1
        %s1461 = scalar_select %p1460, %s89, 1
        %s1462 = scalar_lea.vmem %s67, %s1461
        %p1463 = scmp.lt.s32.totalorder %s89, 1
        %s1464 = scalar_select %p1463, %s89, 1
        %s1465 = smul.addr %s1464, 4
        %s1466 = smul.addr %s1465, 8
        %s1467 = scalar_lea.vmem %s69, %s1466
        %p1468 = scmp.lt.s32.totalorder %s89, 1
        %s1469 = scalar_select %p1468, %s89, 1
        %s1470 = scalar_lea.vmem %s71, %s1469
        %p1471 = scmp.lt.s32.totalorder %s89, 1
        %s1472 = scalar_select %p1471, %s89, 1
        %s1473 = scalar_lea.vmem %s73, %s1472
        %p1474 = scmp.lt.s32.totalorder %s89, 1
        %s1475 = scalar_select %p1474, %s89, 1
        %s1476 = scalar_lea.vmem %s75, %s1475
        %p1477 = scmp.eq.s32.totalorder %s89, 0
        // Predicated region
        $region173: #{decoder_forward.1} parent=171 // pred_check
          %p1478 = pneg %p1477
        $region174: #{decoder_forward.1} parent=171 // pred_check_branch
          %1480 = sbr.rel (%p1478) target = $region176
        $region175: #{decoder_forward.1} parent=171 // pred_region
          %v1481 = vld [vmem:[%s1] sm:$0xff]
          %v1482 = vld [vmem:[%s1 + $0x8] sm:$0xff]
          %vm1483 = vcmask 261120
          %1484 = vst.msk [vmem:[#allocation2] sm:$0xff] %vm1483, %v1481
          %1485 = vst.msk [vmem:[#allocation2 + $0x8] sm:$0xff] %vm1483, %v1482
        $region176: #{decoder_forward.1} parent=171 // pred_fallthru
          _
        %v1486 = vld [vmem:[#allocation2] sm:$0xff]
        %v1487 = vld [vmem:[#allocation2 + $0x8] sm:$0xff]
        %v1488 = vld [vmem:[%s3] sm:$0xff]
        %v1489 = vld [vmem:[%s3 + $0x8] sm:$0xff]
        %v1490 = vadd.f32 %v1486, %v1488
        %v1491 = vadd.f32 %v1487, %v1489
        %v1492 = vld [vmem:[%s1399] sm:$0xff]
        %v1493 = vld [vmem:[%s1399 + $0x8] sm:$0xff]
        %v1494 = vld [vmem:[%s1399 + $0x10] sm:$0xff]
        %v1495 = vld [vmem:[%s1399 + $0x18] sm:$0xff]
        %v1496 = vld [vmem:[%s1399 + $0x20] sm:$0xff]
        %v1497 = vld [vmem:[%s1399 + $0x28] sm:$0xff]
        %v1498 = vld [vmem:[%s1399 + $0x30] sm:$0xff]
        %v1499 = vld [vmem:[%s1399 + $0x38] sm:$0xff]
        %v1500 = vld [vmem:[%s1402] sm:$0x1]
        %v1502 = vperm.slane %v1500, 0
        %vm1504 = vcmask 261120
        %v1506 = vsel %vm1504, %v1490, 0
        %v1509 = vsel %vm1504, %v1491, 0
        %v1512 = vsel %vm1504, %v1492, 0
        %v1515 = vsel %vm1504, %v1493, 0
        %v1518 = vsel %vm1504, %v1494, 0
        %v1521 = vsel %vm1504, %v1495, 0
        %v1524 = vsel %vm1504, %v1496, 0
        %v1527 = vsel %vm1504, %v1497, 0
        %v1530 = vsel %vm1504, %v1498, 0
        %v1533 = vsel %vm1504, %v1499, 0
        %1535 = vmatpush.xpose.msra.mxu0 0.0
        %1536 = vmatpush.xpose.msra.mxu0 0.0
        %1537 = vmatpush.xpose.msra.mxu0 0.0
        %1538 = vmatpush.xpose.msra.mxu0 0.0
        %1539 = vmatpush.xpose.msra.mxu0 0.0
        %1540 = vmatpush.xpose.msra.mxu0 0.0
        %1541 = vmatpush.xpose.msra.mxu0 0.0
        %1542 = vmatpush.xpose.msra.mxu0 0.0
        %1543 = vmatpush.xpose.msra.mxu0 %v1533
        %1544 = vmatpush.xpose.msra.mxu0 %v1530
        %1545 = vmatpush.xpose.msra.mxu0 %v1527
        %1546 = vmatpush.xpose.msra.mxu0 %v1524
        %1547 = vmatpush.xpose.msra.mxu0 %v1521
        %1548 = vmatpush.xpose.msra.mxu0 %v1518
        %1549 = vmatpush.xpose.msra.mxu0 %v1515
        %1550 = vmatpush.xpose.msra.mxu0 %v1512
        %1551 = vmatmul.f32.gmra.mxu0 %v1506
        %v1552 = vpop.f32.mrf.mxu0
        %v1553 = vadd.f32 %v1502, %v1552
        %1554 = vmatmul.f32.gmra.mxu0 %v1509
        %v1555 = vpop.f32.mrf.mxu0
        %v1556 = vadd.f32 %v1502, %v1555
        %1557 = vdwg.mxu0
        %v1558 = vld [vmem:[%s1407] sm:$0xff]
        %v1559 = vld [vmem:[%s1407 + $0x8] sm:$0xff]
        %v1560 = vld [vmem:[%s1407 + $0x10] sm:$0xff]
        %v1561 = vld [vmem:[%s1407 + $0x18] sm:$0xff]
        %v1562 = vld [vmem:[%s1410] sm:$0x1]
        %v1564 = vperm.slane %v1562, 0
        %v1567 = vsel %vm1504, %v1486, 0
        %v1570 = vsel %vm1504, %v1487, 0
        %v1573 = vsel %vm1504, %v1558, 0
        %v1576 = vsel %vm1504, %v1559, 0
        %v1579 = vsel %vm1504, %v1560, 0
        %v1582 = vsel %vm1504, %v1561, 0
        %1584 = vmatpush.xpose.msra.mxu0 0.0
        %1585 = vmatpush.xpose.msra.mxu0 0.0
        %1586 = vmatpush.xpose.msra.mxu0 0.0
        %1587 = vmatpush.xpose.msra.mxu0 0.0
        %1588 = vmatpush.xpose.msra.mxu0 0.0
        %1589 = vmatpush.xpose.msra.mxu0 0.0
        %1590 = vmatpush.xpose.msra.mxu0 0.0
        %1591 = vmatpush.xpose.msra.mxu0 0.0
        %1592 = vmatpush.xpose.msra.mxu0 0.0
        %1593 = vmatpush.xpose.msra.mxu0 0.0
        %1594 = vmatpush.xpose.msra.mxu0 0.0
        %1595 = vmatpush.xpose.msra.mxu0 0.0
        %1596 = vmatpush.xpose.msra.mxu0 %v1582
        %1597 = vmatpush.xpose.msra.mxu0 %v1579
        %1598 = vmatpush.xpose.msra.mxu0 %v1576
        %1599 = vmatpush.xpose.msra.mxu0 %v1573
        %1600 = vmatmul.f32.gmra.mxu0 %v1567
        %v1601 = vpop.f32.mrf.mxu0
        %v1602 = vadd.f32 %v1564, %v1601
        %1603 = vmatmul.f32.gmra.mxu0 %v1570
        %v1604 = vpop.f32.mrf.mxu0
        %v1605 = vadd.f32 %v1564, %v1604
        %1606 = vdwg.mxu0
        %v1607 = vmul.f32 %v1553, 0.35355338
        %v1608 = vmul.f32 %v1556, 0.35355338
        %v1609 = vld [vmem:[%s11] sm:$0xff]
        %v1610 = vld [vmem:[%s11 + $0x8] sm:$0xff]
        %v1611 = vld [vmem:[%s11 + $0x10] sm:$0xff]
        %v1612 = vld [vmem:[%s11 + $0x18] sm:$0xff]
        %v1613 = vld [vmem:[%s11 + $0x20] sm:$0xff]
        %v1614 = vld [vmem:[%s11 + $0x28] sm:$0xff]
        %v1615 = vld [vmem:[%s11 + $0x30] sm:$0xff]
        %v1616 = vld [vmem:[%s11 + $0x38] sm:$0xff]
        %1625 = vrot.lane.b32.xlu0 %v1609, 32
        %v1626 = vpop.permute.xlu0 %1625
        %1627 = vrot.lane.b32.xlu0 %v1610, 32
        %v1628 = vpop.permute.xlu0 %1627
        %1629 = vrot.lane.b32.xlu0 %v1611, 32
        %v1630 = vpop.permute.xlu0 %1629
        %1631 = vrot.lane.b32.xlu0 %v1612, 32
        %v1632 = vpop.permute.xlu0 %1631
        %1633 = vrot.lane.b32.xlu0 %v1613, 32
        %v1634 = vpop.permute.xlu0 %1633
        %1635 = vrot.lane.b32.xlu0 %v1614, 32
        %v1636 = vpop.permute.xlu0 %1635
        %1637 = vrot.lane.b32.xlu0 %v1615, 32
        %v1638 = vpop.permute.xlu0 %1637
        %1639 = vrot.lane.b32.xlu0 %v1616, 32
        %v1640 = vpop.permute.xlu0 %1639
        %v1649 = vmul.f32 %v1553, %v1626
        %v1650 = vmul.f32 %v1556, %v1628
        %v1651 = vmul.f32 %v1553, %v1630
        %v1652 = vmul.f32 %v1556, %v1632
        %v1653 = vmul.f32 %v1553, %v1634
        %v1654 = vmul.f32 %v1556, %v1636
        %v1655 = vmul.f32 %v1553, %v1638
        %v1656 = vmul.f32 %v1556, %v1640
        %v1657 = vmul.f32 %v1602, %v1609
        %v1658 = vmul.f32 %v1605, %v1610
        %v1659 = vmul.f32 %v1602, %v1611
        %v1660 = vmul.f32 %v1605, %v1612
        %v1661 = vmul.f32 %v1602, %v1613
        %v1662 = vmul.f32 %v1605, %v1614
        %v1663 = vmul.f32 %v1602, %v1615
        %v1664 = vmul.f32 %v1605, %v1616
        %1673 = vrot.lane.b32.xlu0 %v1649, 96
        %v1674 = vpop.permute.xlu0 %1673
        %1675 = vrot.lane.b32.xlu0 %v1650, 96
        %v1676 = vpop.permute.xlu0 %1675
        %1677 = vrot.lane.b32.xlu0 %v1651, 96
        %v1678 = vpop.permute.xlu0 %1677
        %1679 = vrot.lane.b32.xlu0 %v1652, 96
        %v1680 = vpop.permute.xlu0 %1679
        %1681 = vrot.lane.b32.xlu0 %v1653, 96
        %v1682 = vpop.permute.xlu0 %1681
        %1683 = vrot.lane.b32.xlu0 %v1654, 96
        %v1684 = vpop.permute.xlu0 %1683
        %1685 = vrot.lane.b32.xlu0 %v1655, 96
        %v1686 = vpop.permute.xlu0 %1685
        %1687 = vrot.lane.b32.xlu0 %v1656, 96
        %v1688 = vpop.permute.xlu0 %1687
        %v1690 = vsel %vm1504, %v1607, 0
        %v1693 = vsel %vm1504, %v1608, 0
        %v1695 = vsel %vm1504, %v1674, 0
        %v1697 = vsel %vm1504, %v1676, 0
        %v1699 = vsel %vm1504, %v1678, 0
        %v1701 = vsel %vm1504, %v1680, 0
        %v1703 = vsel %vm1504, %v1682, 0
        %v1705 = vsel %vm1504, %v1684, 0
        %v1707 = vsel %vm1504, %v1686, 0
        %v1709 = vsel %vm1504, %v1688, 0
        %1711 = vmatpush.xpose.msra.mxu0 0.0
        %1712 = vmatpush.xpose.msra.mxu0 0.0
        %1713 = vmatpush.xpose.msra.mxu0 0.0
        %1714 = vmatpush.xpose.msra.mxu0 0.0
        %1715 = vmatpush.xpose.msra.mxu0 0.0
        %1716 = vmatpush.xpose.msra.mxu0 0.0
        %1717 = vmatpush.xpose.msra.mxu0 0.0
        %1718 = vmatpush.xpose.msra.mxu0 0.0
        %1719 = vmatpush.xpose.msra.mxu0 %v1709
        %1720 = vmatpush.xpose.msra.mxu0 %v1707
        %1721 = vmatpush.xpose.msra.mxu0 %v1705
        %1722 = vmatpush.xpose.msra.mxu0 %v1703
        %1723 = vmatpush.xpose.msra.mxu0 %v1701
        %1724 = vmatpush.xpose.msra.mxu0 %v1699
        %1725 = vmatpush.xpose.msra.mxu0 %v1697
        %1726 = vmatpush.xpose.msra.mxu0 %v1695
        %1727 = vmatmul.f32.gmra.mxu0 %v1690
        %v1728 = vpop.f32.mrf.mxu0
        %v1729 = vadd.f32 0.0, %v1728
        %1730 = vmatmul.f32.gmra.mxu0 %v1693
        %v1731 = vpop.f32.mrf.mxu0
        %v1732 = vadd.f32 0.0, %v1731
        %1733 = vdwg.mxu0
        %v1734 = vld [vmem:[%s13] sm:$0xff]
        %v1735 = vld [vmem:[%s13 + $0x8] sm:$0xff]
        %v1736 = vld [vmem:[%s13 + $0x10] sm:$0xff]
        %v1737 = vld [vmem:[%s13 + $0x18] sm:$0xff]
        %v1738 = vld [vmem:[%s13 + $0x20] sm:$0xff]
        %v1739 = vld [vmem:[%s13 + $0x28] sm:$0xff]
        %v1740 = vld [vmem:[%s13 + $0x30] sm:$0xff]
        %v1741 = vld [vmem:[%s13 + $0x38] sm:$0xff]
        %vm1742 = vcmask 523264
        %v1743 = vsel %vm1742, %v1729, -inf
        %1744 = vmax.xlane.f32.xlu0 %v1743
        %v1745 = vpop.xlane.xlu0 %1744
        %v1746 = vsel %vm1742, %v1732, -inf
        %1747 = vmax.xlane.f32.xlu0 %v1746
        %v1748 = vpop.xlane.xlu0 %1747
        %v1749 = vsub.f32 %v1729, %v1745
        %v1750 = vsub.f32 %v1732, %v1748
        %v1751 = vmul.f32 %v1749, 1.442695
        %v1752 = vpow.pop %v1751
        %v1753 = vmul.f32 %v1750, 1.442695
        %v1754 = vpow.pop %v1753
        %v1756 = vsel %vm1742, %v1752, 0
        %v1759 = vsel %vm1742, %v1754, 0
        %1761 = vmatpush.msra.mxu0 0.0
        %1762 = vmatpush.msra.mxu0 0.0
        %1763 = vmatpush.msra.mxu0 0.0
        %1764 = vmatpush.msra.mxu0 0.0
        %1765 = vmatpush.msra.mxu0 0.0
        %1766 = vmatpush.msra.mxu0 0.0
        %1767 = vmatpush.msra.mxu0 0.0
        %1768 = vmatpush.msra.mxu0 0.0
        %1769 = vmatpush.msra.mxu0 %v1741
        %1770 = vmatpush.msra.mxu0 %v1740
        %1771 = vmatpush.msra.mxu0 %v1739
        %1772 = vmatpush.msra.mxu0 %v1738
        %1773 = vmatpush.msra.mxu0 %v1737
        %1774 = vmatpush.msra.mxu0 %v1736
        %1775 = vmatpush.msra.mxu0 %v1735
        %1776 = vmatpush.msra.mxu0 %v1734
        %1777 = vmatmul.f32.gmra.mxu0 %v1756
        %v1778 = vpop.f32.mrf.mxu0
        %v1779 = vadd.f32 1e-12, %v1778
        %1780 = vmatmul.f32.gmra.mxu0 %v1759
        %v1781 = vpop.f32.mrf.mxu0
        %v1782 = vadd.f32 1e-12, %v1781
        %1783 = vdwg.mxu0
        %v1784 = vrcp.pop %v1779
        %v1785 = vrcp.pop %v1782
        %v1786 = vmul.f32 %v1752, %v1784
        %v1787 = vmul.f32 %v1754, %v1785
        %v1788 = vld [vmem:[%s15] sm:$0xff]
        %v1789 = vld [vmem:[%s15 + $0x8] sm:$0xff]
        %v1790 = vmul.f32 %v1786, %v1788
        %v1791 = vmul.f32 %v1787, %v1789
        %v1793 = vsel %vm1742, %v1790, 0
        %v1796 = vsel %vm1742, %v1791, 0
        %1798 = vmatpush.msra.mxu0 0.0
        %1799 = vmatpush.msra.mxu0 0.0
        %1800 = vmatpush.msra.mxu0 0.0
        %1801 = vmatpush.msra.mxu0 0.0
        %1802 = vmatpush.msra.mxu0 0.0
        %1803 = vmatpush.msra.mxu0 0.0
        %1804 = vmatpush.msra.mxu0 0.0
        %1805 = vmatpush.msra.mxu0 0.0
        %1806 = vmatpush.msra.mxu0 %v1664
        %1807 = vmatpush.msra.mxu0 %v1663
        %1808 = vmatpush.msra.mxu0 %v1662
        %1809 = vmatpush.msra.mxu0 %v1661
        %1810 = vmatpush.msra.mxu0 %v1660
        %1811 = vmatpush.msra.mxu0 %v1659
        %1812 = vmatpush.msra.mxu0 %v1658
        %1813 = vmatpush.msra.mxu0 %v1657
        %1814 = vmatmul.f32.gmra.mxu0 %v1793
        %v1815 = vpop.f32.mrf.mxu0
        %v1816 = vadd.f32 0.0, %v1815
        %1817 = vmatmul.f32.gmra.mxu0 %v1796
        %v1818 = vpop.f32.mrf.mxu0
        %v1819 = vadd.f32 0.0, %v1818
        %1820 = vdwg.mxu0
        %v1821 = vld [vmem:[%s1415] sm:$0xff]
        %v1822 = vld [vmem:[%s1415 + $0x8] sm:$0xff]
        %v1823 = vld [vmem:[%s1415 + $0x10] sm:$0xff]
        %v1824 = vld [vmem:[%s1415 + $0x18] sm:$0xff]
        %v1825 = vld [vmem:[%s1418] sm:$0x1]
        %v1827 = vperm.slane %v1825, 0
        %v1830 = vsel %vm1504, %v1816, 0
        %v1833 = vsel %vm1504, %v1819, 0
        %v1836 = vsel %vm1504, %v1821, 0
        %v1839 = vsel %vm1504, %v1822, 0
        %v1842 = vsel %vm1504, %v1823, 0
        %v1845 = vsel %vm1504, %v1824, 0
        %1847 = vmatpush.xpose.msra.mxu0 0.0
        %1848 = vmatpush.xpose.msra.mxu0 0.0
        %1849 = vmatpush.xpose.msra.mxu0 0.0
        %1850 = vmatpush.xpose.msra.mxu0 0.0
        %1851 = vmatpush.xpose.msra.mxu0 0.0
        %1852 = vmatpush.xpose.msra.mxu0 0.0
        %1853 = vmatpush.xpose.msra.mxu0 0.0
        %1854 = vmatpush.xpose.msra.mxu0 0.0
        %1855 = vmatpush.xpose.msra.mxu0 0.0
        %1856 = vmatpush.xpose.msra.mxu0 0.0
        %1857 = vmatpush.xpose.msra.mxu0 0.0
        %1858 = vmatpush.xpose.msra.mxu0 0.0
        %1859 = vmatpush.xpose.msra.mxu0 %v1845
        %1860 = vmatpush.xpose.msra.mxu0 %v1842
        %1861 = vmatpush.xpose.msra.mxu0 %v1839
        %1862 = vmatpush.xpose.msra.mxu0 %v1836
        %1863 = vmatmul.f32.gmra.mxu0 %v1830
        %v1864 = vpop.f32.mrf.mxu0
        %v1865 = vadd.f32 %v1827, %v1864
        %1866 = vmatmul.f32.gmra.mxu0 %v1833
        %v1867 = vpop.f32.mrf.mxu0
        %v1868 = vadd.f32 %v1827, %v1867
        %1869 = vdwg.mxu0
        %v1870 = vadd.f32 %v1486, %v1865
        %v1871 = vadd.f32 %v1487, %v1868
        %v1872 = vld [vmem:[%s1421] sm:$0x1]
        %v1873 = vld [vmem:[%s1424] sm:$0x1]
        %v1874 = vsel %vm1504, %v1870, 0.0
        %1875 = vadd.xlane.f32.xlu0 %v1874
        %v1876 = vpop.xlane.xlu0 %1875
        %v1877 = vsel %vm1504, %v1871, 0.0
        %1878 = vadd.xlane.f32.xlu0 %v1877
        %v1879 = vpop.xlane.xlu0 %1878
        %v1880 = vrcp.pop 32.0
        %v1881 = vmul.f32 32.0, %v1880
        %v1882 = vsub.f32 1.0, %v1881
        %v1883 = vmul.f32 %v1880, %v1882
        %v1884 = vadd.f32 %v1880, %v1883
        %vm1885 = vweird.f32 %v1880
        %v1886 = vsel %vm1885, %v1880, %v1884
        %v1887 = vmul.f32 %v1876, %v1886
        %v1888 = vmul.f32 %v1879, %v1886
        %v1889 = vsub.f32 %v1870, %v1887
        %v1890 = vsub.f32 %v1871, %v1888
        %v1891 = vmul.f32 %v1889, %v1889
        %v1892 = vmul.f32 %v1890, %v1890
        %v1893 = vsel %vm1504, %v1891, 0.0
        %1894 = vadd.xlane.f32.xlu0 %v1893
        %v1895 = vpop.xlane.xlu0 %1894
        %v1896 = vsel %vm1504, %v1892, 0.0
        %1897 = vadd.xlane.f32.xlu0 %v1896
        %v1898 = vpop.xlane.xlu0 %1897
        %v1899 = vmul.f32 %v1895, %v1886
        %v1900 = vmul.f32 %v1898, %v1886
        %v1901 = vadd.f32 %v1899, 1e-05
        %v1902 = vadd.f32 %v1900, 1e-05
        %v1903 = vrsqrt.pop %v1901
        %v1904 = vmul.f32 %v1903, %v1901
        %v1905 = vmul.f32 %v1904, %v1903
        %v1906 = vmul.f32 0.5, %v1905
        %v1907 = vsub.f32 1.5, %v1906
        %v1908 = vmul.f32 %v1903, %v1907
        %vm1909 = vweird.f32 %v1901
        %vm1910 = vweird.f32 %v1903
        %vm1911 = vmor %vm1909, %vm1910
        %v1912 = vsel %vm1911, %v1903, %v1908
        %v1913 = vrsqrt.pop %v1902
        %v1914 = vmul.f32 %v1913, %v1902
        %v1915 = vmul.f32 %v1914, %v1913
        %v1916 = vmul.f32 0.5, %v1915
        %v1917 = vsub.f32 1.5, %v1916
        %v1918 = vmul.f32 %v1913, %v1917
        %vm1919 = vweird.f32 %v1902
        %vm1920 = vweird.f32 %v1913
        %vm1921 = vmor %vm1919, %vm1920
        %v1922 = vsel %vm1921, %v1913, %v1918
        %v1923 = vmul.f32 %v1889, %v1912
        %v1924 = vmul.f32 %v1890, %v1922
        %v1926 = vperm.slane %v1872, 0
        %v1928 = vmul.f32 %v1923, %v1926
        %v1929 = vmul.f32 %v1924, %v1926
        %v1931 = vperm.slane %v1873, 0
        %v1933 = vadd.f32 %v1928, %v1931
        %v1934 = vadd.f32 %v1929, %v1931
        %v1935 = vadd.f32 %v1933, %v1488
        %v1936 = vadd.f32 %v1934, %v1489
        %v1937 = vld [vmem:[%s1429] sm:$0xff]
        %v1938 = vld [vmem:[%s1429 + $0x8] sm:$0xff]
        %v1939 = vld [vmem:[%s1429 + $0x10] sm:$0xff]
        %v1940 = vld [vmem:[%s1429 + $0x18] sm:$0xff]
        %v1941 = vld [vmem:[%s1429 + $0x20] sm:$0xff]
        %v1942 = vld [vmem:[%s1429 + $0x28] sm:$0xff]
        %v1943 = vld [vmem:[%s1429 + $0x30] sm:$0xff]
        %v1944 = vld [vmem:[%s1429 + $0x38] sm:$0xff]
        %v1945 = vld [vmem:[%s1429 + $0x40] sm:$0xff]
        %v1946 = vld [vmem:[%s1429 + $0x48] sm:$0xff]
        %v1947 = vld [vmem:[%s1429 + $0x50] sm:$0xff]
        %v1948 = vld [vmem:[%s1429 + $0x58] sm:$0xff]
        %v1949 = vld [vmem:[%s1432] sm:$0x1]
        %v1951 = vperm.slane %v1949, 0
        %v1954 = vsel %vm1504, %v1935, 0
        %v1957 = vsel %vm1504, %v1936, 0
        %v1960 = vsel %vm1504, %v1937, 0
        %v1963 = vsel %vm1504, %v1938, 0
        %v1966 = vsel %vm1504, %v1939, 0
        %v1969 = vsel %vm1504, %v1940, 0
        %v1972 = vsel %vm1504, %v1941, 0
        %v1975 = vsel %vm1504, %v1942, 0
        %v1978 = vsel %vm1504, %v1943, 0
        %v1981 = vsel %vm1504, %v1944, 0
        %v1984 = vsel %vm1504, %v1945, 0
        %v1987 = vsel %vm1504, %v1946, 0
        %v1990 = vsel %vm1504, %v1947, 0
        %v1993 = vsel %vm1504, %v1948, 0
        %1995 = vmatpush.xpose.msra.mxu0 0.0
        %1996 = vmatpush.xpose.msra.mxu0 0.0
        %1997 = vmatpush.xpose.msra.mxu0 0.0
        %1998 = vmatpush.xpose.msra.mxu0 0.0
        %1999 = vmatpush.xpose.msra.mxu0 %v1993
        %2000 = vmatpush.xpose.msra.mxu0 %v1990
        %2001 = vmatpush.xpose.msra.mxu0 %v1987
        %2002 = vmatpush.xpose.msra.mxu0 %v1984
        %2003 = vmatpush.xpose.msra.mxu0 %v1981
        %2004 = vmatpush.xpose.msra.mxu0 %v1978
        %2005 = vmatpush.xpose.msra.mxu0 %v1975
        %2006 = vmatpush.xpose.msra.mxu0 %v1972
        %2007 = vmatpush.xpose.msra.mxu0 %v1969
        %2008 = vmatpush.xpose.msra.mxu0 %v1966
        %2009 = vmatpush.xpose.msra.mxu0 %v1963
        %2010 = vmatpush.xpose.msra.mxu0 %v1960
        %2011 = vmatmul.f32.gmra.mxu0 %v1954
        %v2012 = vpop.f32.mrf.mxu0
        %v2013 = vadd.f32 %v1951, %v2012
        %2014 = vmatmul.f32.gmra.mxu0 %v1957
        %v2015 = vpop.f32.mrf.mxu0
        %v2016 = vadd.f32 %v1951, %v2015
        %2017 = vdwg.mxu0
        %v2018 = vld [vmem:[%s9] sm:$0xff]
        %v2019 = vld [vmem:[%s9 + $0x8] sm:$0xff]
        %v2020 = vld [vmem:[%s9 + $0x10] sm:$0xff]
        %v2021 = vld [vmem:[%s9 + $0x18] sm:$0xff]
        %v2022 = vld [vmem:[%s9 + $0x20] sm:$0xff]
        %v2023 = vld [vmem:[%s9 + $0x28] sm:$0xff]
        %v2024 = vld [vmem:[%s9 + $0x30] sm:$0xff]
        %v2025 = vld [vmem:[%s9 + $0x38] sm:$0xff]
        %v2026 = vld [vmem:[%s9 + $0x40] sm:$0xff]
        %v2027 = vld [vmem:[%s9 + $0x48] sm:$0xff]
        %v2028 = vld [vmem:[%s9 + $0x50] sm:$0xff]
        %v2029 = vld [vmem:[%s9 + $0x58] sm:$0xff]
        %v2030 = vld [vmem:[%s9 + $0x60] sm:$0xff]
        %v2031 = vld [vmem:[%s9 + $0x68] sm:$0xff]
        %v2032 = vld [vmem:[%s9 + $0x70] sm:$0xff]
        %v2033 = vld [vmem:[%s9 + $0x78] sm:$0xff]
        %v2034 = vld [vmem:[%s9 + $0x80] sm:$0xff]
        %v2035 = vld [vmem:[%s9 + $0x88] sm:$0xff]
        %v2036 = vld [vmem:[%s9 + $0x90] sm:$0xff]
        %v2037 = vld [vmem:[%s9 + $0x98] sm:$0xff]
        %v2038 = vld [vmem:[%s1437] sm:$0xff]
        %v2039 = vld [vmem:[%s1437 + $0x8] sm:$0xff]
        %v2040 = vld [vmem:[%s1437 + $0x10] sm:$0xff]
        %v2041 = vld [vmem:[%s1437 + $0x18] sm:$0xff]
        %v2042 = vld [vmem:[%s1440] sm:$0x1]
        %v2044 = vperm.slane %v2042, 0
        %v2047 = vsel %vm1504, %v2018, 0
        %v2050 = vsel %vm1504, %v2019, 0
        %v2053 = vsel %vm1504, %v2020, 0
        %v2056 = vsel %vm1504, %v2021, 0
        %v2059 = vsel %vm1504, %v2022, 0
        %v2062 = vsel %vm1504, %v2023, 0
        %v2065 = vsel %vm1504, %v2024, 0
        %v2068 = vsel %vm1504, %v2025, 0
        %v2071 = vsel %vm1504, %v2026, 0
        %v2074 = vsel %vm1504, %v2027, 0
        %v2077 = vsel %vm1504, %v2028, 0
        %v2080 = vsel %vm1504, %v2029, 0
        %v2083 = vsel %vm1504, %v2030, 0
        %v2086 = vsel %vm1504, %v2031, 0
        %v2089 = vsel %vm1504, %v2032, 0
        %v2092 = vsel %vm1504, %v2033, 0
        %v2095 = vsel %vm1504, %v2034, 0
        %v2098 = vsel %vm1504, %v2035, 0
        %v2101 = vsel %vm1504, %v2036, 0
        %v2104 = vsel %vm1504, %v2037, 0
        %v2107 = vsel %vm1504, %v2038, 0
        %v2110 = vsel %vm1504, %v2039, 0
        %v2113 = vsel %vm1504, %v2040, 0
        %v2116 = vsel %vm1504, %v2041, 0
        %2118 = vmatpush.xpose.msra.mxu0 0.0
        %2119 = vmatpush.xpose.msra.mxu0 0.0
        %2120 = vmatpush.xpose.msra.mxu0 0.0
        %2121 = vmatpush.xpose.msra.mxu0 0.0
        %2122 = vmatpush.xpose.msra.mxu0 0.0
        %2123 = vmatpush.xpose.msra.mxu0 0.0
        %2124 = vmatpush.xpose.msra.mxu0 0.0
        %2125 = vmatpush.xpose.msra.mxu0 0.0
        %2126 = vmatpush.xpose.msra.mxu0 0.0
        %2127 = vmatpush.xpose.msra.mxu0 0.0
        %2128 = vmatpush.xpose.msra.mxu0 0.0
        %2129 = vmatpush.xpose.msra.mxu0 0.0
        %2130 = vmatpush.xpose.msra.mxu0 %v2116
        %2131 = vmatpush.xpose.msra.mxu0 %v2113
        %2132 = vmatpush.xpose.msra.mxu0 %v2110
        %2133 = vmatpush.xpose.msra.mxu0 %v2107
        %2134 = vmatmul.f32.gmra.mxu0 %v2047
        %v2135 = vpop.f32.mrf.mxu0
        %v2136 = vadd.f32 %v2044, %v2135
        %2137 = vmatmul.f32.gmra.mxu0 %v2050
        %v2138 = vpop.f32.mrf.mxu0
        %v2139 = vadd.f32 %v2044, %v2138
        %2140 = vmatmul.f32.gmra.mxu0 %v2053
        %v2141 = vpop.f32.mrf.mxu0
        %v2142 = vadd.f32 %v2044, %v2141
        %2143 = vmatmul.f32.gmra.mxu0 %v2056
        %v2144 = vpop.f32.mrf.mxu0
        %v2145 = vadd.f32 %v2044, %v2144
        %2146 = vmatmul.f32.gmra.mxu0 %v2059
        %v2147 = vpop.f32.mrf.mxu0
        %v2148 = vadd.f32 %v2044, %v2147
        %2149 = vmatmul.f32.gmra.mxu0 %v2062
        %v2150 = vpop.f32.mrf.mxu0
        %v2151 = vadd.f32 %v2044, %v2150
        %2152 = vmatmul.f32.gmra.mxu0 %v2065
        %v2153 = vpop.f32.mrf.mxu0
        %v2154 = vadd.f32 %v2044, %v2153
        %2155 = vmatmul.f32.gmra.mxu0 %v2068
        %v2156 = vpop.f32.mrf.mxu0
        %v2157 = vadd.f32 %v2044, %v2156
        %2158 = vmatmul.f32.gmra.mxu0 %v2071
        %v2159 = vpop.f32.mrf.mxu0
        %v2160 = vadd.f32 %v2044, %v2159
        %2161 = vmatmul.f32.gmra.mxu0 %v2074
        %v2162 = vpop.f32.mrf.mxu0
        %v2163 = vadd.f32 %v2044, %v2162
        %2164 = vmatmul.f32.gmra.mxu0 %v2077
        %v2165 = vpop.f32.mrf.mxu0
        %v2166 = vadd.f32 %v2044, %v2165
        %2167 = vmatmul.f32.gmra.mxu0 %v2080
        %v2168 = vpop.f32.mrf.mxu0
        %v2169 = vadd.f32 %v2044, %v2168
        %2170 = vmatmul.f32.gmra.mxu0 %v2083
        %v2171 = vpop.f32.mrf.mxu0
        %v2172 = vadd.f32 %v2044, %v2171
        %2173 = vmatmul.f32.gmra.mxu0 %v2086
        %v2174 = vpop.f32.mrf.mxu0
        %v2175 = vadd.f32 %v2044, %v2174
        %2176 = vmatmul.f32.gmra.mxu0 %v2089
        %v2177 = vpop.f32.mrf.mxu0
        %v2178 = vadd.f32 %v2044, %v2177
        %2179 = vmatmul.f32.gmra.mxu0 %v2092
        %v2180 = vpop.f32.mrf.mxu0
        %v2181 = vadd.f32 %v2044, %v2180
        %2182 = vmatmul.f32.gmra.mxu0 %v2095
        %v2183 = vpop.f32.mrf.mxu0
        %v2184 = vadd.f32 %v2044, %v2183
        %2185 = vmatmul.f32.gmra.mxu0 %v2098
        %v2186 = vpop.f32.mrf.mxu0
        %v2187 = vadd.f32 %v2044, %v2186
        %2188 = vmatmul.f32.gmra.mxu0 %v2101
        %v2189 = vpop.f32.mrf.mxu0
        %v2190 = vadd.f32 %v2044, %v2189
        %2191 = vmatmul.f32.gmra.mxu0 %v2104
        %v2192 = vpop.f32.mrf.mxu0
        %v2193 = vadd.f32 %v2044, %v2192
        %2194 = vdwg.mxu0
        %v2195 = vld [vmem:[%s5] sm:$0xff]
        %v2196 = vld [vmem:[%s5 + $0x8] sm:$0xff]
        %v2197 = vadd.f32 %v2195, %v2013
        %v2198 = vadd.f32 %v2196, %v2016
        %v2199 = vld [vmem:[%s7] sm:$0xff]
        %v2200 = vld [vmem:[%s7 + $0x8] sm:$0xff]
        %2203 = vrot.lane.b32.xlu0 %v2013, 96
        %v2204 = vpop.permute.xlu0 %2203
        %2205 = vrot.lane.b32.xlu0 %v2016, 96
        %v2206 = vpop.permute.xlu0 %2205
        %v2209 = vadd.f32 %v2199, %v2204
        %v2210 = vadd.f32 %v2200, %v2206
        %v2211 = vld [vmem:[%s17] sm:$0xff]
        %v2212 = vld [vmem:[%s17 + $0x8] sm:$0xff]
        %v2213 = vld [vmem:[%s17 + $0x10] sm:$0xff]
        %v2214 = vld [vmem:[%s17 + $0x18] sm:$0xff]
        %vm2215 = vcmask 785920
        %v2216 = vsel %vm2215, %v2013, -inf
        %2217 = vmax.xlane.f32.xlu0 %v2216
        %v2218 = vpop.xlane.xlu0 %2217
        %v2219 = vsel %vm2215, %v2016, -inf
        %2220 = vmax.xlane.f32.xlu0 %v2219
        %v2221 = vpop.xlane.xlu0 %2220
        %v2222 = vsub.f32 %v2013, %v2218
        %v2223 = vsub.f32 %v2016, %v2221
        %v2224 = vmul.f32 %v2222, 1.442695
        %v2225 = vpow.pop %v2224
        %v2226 = vmul.f32 %v2223, 1.442695
        %v2227 = vpow.pop %v2226
        %2230 = vrot.lane.b32.xlu0 %v2225, 64
        %v2231 = vpop.permute.xlu0 %2230
        %2232 = vrot.lane.b32.xlu0 %v2227, 64
        %v2233 = vpop.permute.xlu0 %2232
        %v2234 = vsel %vm1504, %v2231, 0
        %v2236 = vsel %vm1504, %v2233, 0
        %2238 = vmatpush.msra.mxu0 0.0
        %2239 = vmatpush.msra.mxu0 0.0
        %2240 = vmatpush.msra.mxu0 0.0
        %2241 = vmatpush.msra.mxu0 0.0
        %2242 = vmatpush.msra.mxu0 0.0
        %2243 = vmatpush.msra.mxu0 0.0
        %2244 = vmatpush.msra.mxu0 0.0
        %2245 = vmatpush.msra.mxu0 0.0
        %2246 = vmatpush.msra.mxu0 0.0
        %2247 = vmatpush.msra.mxu0 0.0
        %2248 = vmatpush.msra.mxu0 0.0
        %2249 = vmatpush.msra.mxu0 0.0
        %2250 = vmatpush.msra.mxu0 %v2214
        %2251 = vmatpush.msra.mxu0 %v2213
        %2252 = vmatpush.msra.mxu0 %v2212
        %2253 = vmatpush.msra.mxu0 %v2211
        %2254 = vmatmul.f32.gmra.mxu0 %v2234
        %v2255 = vpop.f32.mrf.mxu0
        %v2256 = vadd.f32 1e-12, %v2255
        %2257 = vmatmul.f32.gmra.mxu0 %v2236
        %v2258 = vpop.f32.mrf.mxu0
        %v2259 = vadd.f32 1e-12, %v2258
        %2260 = vdwg.mxu0
        %v2261 = vrcp.pop %v2256
        %v2262 = vrcp.pop %v2259
        %2265 = vrot.lane.b32.xlu0 %v2261, 64
        %v2266 = vpop.permute.xlu0 %2265
        %2267 = vrot.lane.b32.xlu0 %v2262, 64
        %v2268 = vpop.permute.xlu0 %2267
        %v2271 = vmul.f32 %v2225, %v2266
        %v2272 = vmul.f32 %v2227, %v2268
        %v2273 = vld [vmem:[%s19] sm:$0x1]
        %s2274 = scalar_lea.vmem %s19, 1
        %v2275 = vld [vmem:[%s2274] sm:$0x1]
        %s2276 = scalar_lea.vmem %s19, 2
        %v2277 = vld [vmem:[%s2276] sm:$0x1]
        %s2278 = scalar_lea.vmem %s19, 3
        %v2279 = vld [vmem:[%s2278] sm:$0x1]
        %v2280 = vld [vmem:[%s21] sm:$0xff]
        %v2281 = vld [vmem:[%s21 + $0x8] sm:$0xff]
        %v2282 = vld [vmem:[%s21 + $0x10] sm:$0xff]
        %v2283 = vld [vmem:[%s21 + $0x18] sm:$0xff]
        %v2284 = vld [vmem:[%s21 + $0x20] sm:$0xff]
        %v2285 = vld [vmem:[%s21 + $0x28] sm:$0xff]
        %v2286 = vld [vmem:[%s21 + $0x30] sm:$0xff]
        %v2287 = vld [vmem:[%s21 + $0x38] sm:$0xff]
        %v2288 = vld [vmem:[%s21 + $0x40] sm:$0xff]
        %v2289 = vld [vmem:[%s21 + $0x48] sm:$0xff]
        %v2290 = vld [vmem:[%s21 + $0x50] sm:$0xff]
        %v2291 = vld [vmem:[%s21 + $0x58] sm:$0xff]
        %v2292 = vld [vmem:[%s21 + $0x60] sm:$0xff]
        %v2293 = vld [vmem:[%s21 + $0x68] sm:$0xff]
        %v2294 = vld [vmem:[%s21 + $0x70] sm:$0xff]
        %v2295 = vld [vmem:[%s21 + $0x78] sm:$0xff]
        %v2296 = vld [vmem:[%s21 + $0x80] sm:$0xff]
        %v2297 = vld [vmem:[%s21 + $0x88] sm:$0xff]
        %v2298 = vld [vmem:[%s21 + $0x90] sm:$0xff]
        %v2299 = vld [vmem:[%s21 + $0x98] sm:$0xff]
        %v2300 = vld [vmem:[%s21 + $0xa0] sm:$0xff]
        %v2301 = vld [vmem:[%s21 + $0xa8] sm:$0xff]
        %v2302 = vld [vmem:[%s21 + $0xb0] sm:$0xff]
        %v2303 = vld [vmem:[%s21 + $0xb8] sm:$0xff]
        %v2304 = vld [vmem:[%s21 + $0xc0] sm:$0xff]
        %v2305 = vld [vmem:[%s21 + $0xc8] sm:$0xff]
        %v2306 = vld [vmem:[%s21 + $0xd0] sm:$0xff]
        %v2307 = vld [vmem:[%s21 + $0xd8] sm:$0xff]
        %v2308 = vld [vmem:[%s21 + $0xe0] sm:$0xff]
        %v2309 = vld [vmem:[%s21 + $0xe8] sm:$0xff]
        %v2310 = vld [vmem:[%s21 + $0xf0] sm:$0xff]
        %v2311 = vld [vmem:[%s21 + $0xf8] sm:$0xff]
        %v2313 = vsel %vm1504, %v2197, 0
        %v2316 = vsel %vm1504, %v2198, 0
        %2318 = vmatpush.msra.mxu0 0.0
        %2319 = vmatpush.msra.mxu0 0.0
        %2320 = vmatpush.msra.mxu0 0.0
        %2321 = vmatpush.msra.mxu0 0.0
        %2322 = vmatpush.msra.mxu0 0.0
        %2323 = vmatpush.msra.mxu0 0.0
        %2324 = vmatpush.msra.mxu0 0.0
        %2325 = vmatpush.msra.mxu0 0.0
        %2326 = vmatpush.msra.mxu0 0.0
        %2327 = vmatpush.msra.mxu0 0.0
        %2328 = vmatpush.msra.mxu0 0.0
        %2329 = vmatpush.msra.mxu0 0.0
        %2330 = vmatpush.msra.mxu0 %v2304
        %2331 = vmatpush.msra.mxu0 %v2296
        %2332 = vmatpush.msra.mxu0 %v2288
        %2333 = vmatpush.msra.mxu0 %v2280
        %2334 = vmatmul.f32.gmra.mxu0 %v2313
        %v2335 = vpop.f32.mrf.mxu0
        %v2336 = vadd.f32 0.0, %v2335
        %2337 = vmatmul.f32.gmra.mxu0 %v2316
        %v2338 = vpop.f32.mrf.mxu0
        %v2339 = vadd.f32 0.0, %v2338
        %2340 = vdwg.mxu0
        %2341 = vmatpush.msra.mxu0 0.0
        %2342 = vmatpush.msra.mxu0 0.0
        %2343 = vmatpush.msra.mxu0 0.0
        %2344 = vmatpush.msra.mxu0 0.0
        %2345 = vmatpush.msra.mxu0 0.0
        %2346 = vmatpush.msra.mxu0 0.0
        %2347 = vmatpush.msra.mxu0 0.0
        %2348 = vmatpush.msra.mxu0 0.0
        %2349 = vmatpush.msra.mxu0 0.0
        %2350 = vmatpush.msra.mxu0 0.0
        %2351 = vmatpush.msra.mxu0 0.0
        %2352 = vmatpush.msra.mxu0 0.0
        %2353 = vmatpush.msra.mxu0 %v2305
        %2354 = vmatpush.msra.mxu0 %v2297
        %2355 = vmatpush.msra.mxu0 %v2289
        %2356 = vmatpush.msra.mxu0 %v2281
        %2357 = vmatmul.f32.gmra.mxu0 %v2313
        %v2358 = vpop.f32.mrf.mxu0
        %v2359 = vadd.f32 0.0, %v2358
        %2360 = vmatmul.f32.gmra.mxu0 %v2316
        %v2361 = vpop.f32.mrf.mxu0
        %v2362 = vadd.f32 0.0, %v2361
        %2363 = vdwg.mxu0
        %2364 = vmatpush.msra.mxu0 0.0
        %2365 = vmatpush.msra.mxu0 0.0
        %2366 = vmatpush.msra.mxu0 0.0
        %2367 = vmatpush.msra.mxu0 0.0
        %2368 = vmatpush.msra.mxu0 0.0
        %2369 = vmatpush.msra.mxu0 0.0
        %2370 = vmatpush.msra.mxu0 0.0
        %2371 = vmatpush.msra.mxu0 0.0
        %2372 = vmatpush.msra.mxu0 0.0
        %2373 = vmatpush.msra.mxu0 0.0
        %2374 = vmatpush.msra.mxu0 0.0
        %2375 = vmatpush.msra.mxu0 0.0
        %2376 = vmatpush.msra.mxu0 %v2306
        %2377 = vmatpush.msra.mxu0 %v2298
        %2378 = vmatpush.msra.mxu0 %v2290
        %2379 = vmatpush.msra.mxu0 %v2282
        %2380 = vmatmul.f32.gmra.mxu0 %v2313
        %v2381 = vpop.f32.mrf.mxu0
        %v2382 = vadd.f32 0.0, %v2381
        %2383 = vmatmul.f32.gmra.mxu0 %v2316
        %v2384 = vpop.f32.mrf.mxu0
        %v2385 = vadd.f32 0.0, %v2384
        %2386 = vdwg.mxu0
        %2387 = vmatpush.msra.mxu0 0.0
        %2388 = vmatpush.msra.mxu0 0.0
        %2389 = vmatpush.msra.mxu0 0.0
        %2390 = vmatpush.msra.mxu0 0.0
        %2391 = vmatpush.msra.mxu0 0.0
        %2392 = vmatpush.msra.mxu0 0.0
        %2393 = vmatpush.msra.mxu0 0.0
        %2394 = vmatpush.msra.mxu0 0.0
        %2395 = vmatpush.msra.mxu0 0.0
        %2396 = vmatpush.msra.mxu0 0.0
        %2397 = vmatpush.msra.mxu0 0.0
        %2398 = vmatpush.msra.mxu0 0.0
        %2399 = vmatpush.msra.mxu0 %v2307
        %2400 = vmatpush.msra.mxu0 %v2299
        %2401 = vmatpush.msra.mxu0 %v2291
        %2402 = vmatpush.msra.mxu0 %v2283
        %2403 = vmatmul.f32.gmra.mxu0 %v2313
        %v2404 = vpop.f32.mrf.mxu0
        %v2405 = vadd.f32 0.0, %v2404
        %2406 = vmatmul.f32.gmra.mxu0 %v2316
        %v2407 = vpop.f32.mrf.mxu0
        %v2408 = vadd.f32 0.0, %v2407
        %2409 = vdwg.mxu0
        %2410 = vmatpush.msra.mxu0 0.0
        %2411 = vmatpush.msra.mxu0 0.0
        %2412 = vmatpush.msra.mxu0 0.0
        %2413 = vmatpush.msra.mxu0 0.0
        %2414 = vmatpush.msra.mxu0 0.0
        %2415 = vmatpush.msra.mxu0 0.0
        %2416 = vmatpush.msra.mxu0 0.0
        %2417 = vmatpush.msra.mxu0 0.0
        %2418 = vmatpush.msra.mxu0 0.0
        %2419 = vmatpush.msra.mxu0 0.0
        %2420 = vmatpush.msra.mxu0 0.0
        %2421 = vmatpush.msra.mxu0 0.0
        %2422 = vmatpush.msra.mxu0 %v2308
        %2423 = vmatpush.msra.mxu0 %v2300
        %2424 = vmatpush.msra.mxu0 %v2292
        %2425 = vmatpush.msra.mxu0 %v2284
        %2426 = vmatmul.f32.gmra.mxu0 %v2313
        %v2427 = vpop.f32.mrf.mxu0
        %v2428 = vadd.f32 0.0, %v2427
        %2429 = vmatmul.f32.gmra.mxu0 %v2316
        %v2430 = vpop.f32.mrf.mxu0
        %v2431 = vadd.f32 0.0, %v2430
        %2432 = vdwg.mxu0
        %2433 = vmatpush.msra.mxu0 0.0
        %2434 = vmatpush.msra.mxu0 0.0
        %2435 = vmatpush.msra.mxu0 0.0
        %2436 = vmatpush.msra.mxu0 0.0
        %2437 = vmatpush.msra.mxu0 0.0
        %2438 = vmatpush.msra.mxu0 0.0
        %2439 = vmatpush.msra.mxu0 0.0
        %2440 = vmatpush.msra.mxu0 0.0
        %2441 = vmatpush.msra.mxu0 0.0
        %2442 = vmatpush.msra.mxu0 0.0
        %2443 = vmatpush.msra.mxu0 0.0
        %2444 = vmatpush.msra.mxu0 0.0
        %2445 = vmatpush.msra.mxu0 %v2309
        %2446 = vmatpush.msra.mxu0 %v2301
        %2447 = vmatpush.msra.mxu0 %v2293
        %2448 = vmatpush.msra.mxu0 %v2285
        %2449 = vmatmul.f32.gmra.mxu0 %v2313
        %v2450 = vpop.f32.mrf.mxu0
        %v2451 = vadd.f32 0.0, %v2450
        %2452 = vmatmul.f32.gmra.mxu0 %v2316
        %v2453 = vpop.f32.mrf.mxu0
        %v2454 = vadd.f32 0.0, %v2453
        %2455 = vdwg.mxu0
        %2456 = vmatpush.msra.mxu0 0.0
        %2457 = vmatpush.msra.mxu0 0.0
        %2458 = vmatpush.msra.mxu0 0.0
        %2459 = vmatpush.msra.mxu0 0.0
        %2460 = vmatpush.msra.mxu0 0.0
        %2461 = vmatpush.msra.mxu0 0.0
        %2462 = vmatpush.msra.mxu0 0.0
        %2463 = vmatpush.msra.mxu0 0.0
        %2464 = vmatpush.msra.mxu0 0.0
        %2465 = vmatpush.msra.mxu0 0.0
        %2466 = vmatpush.msra.mxu0 0.0
        %2467 = vmatpush.msra.mxu0 0.0
        %2468 = vmatpush.msra.mxu0 %v2310
        %2469 = vmatpush.msra.mxu0 %v2302
        %2470 = vmatpush.msra.mxu0 %v2294
        %2471 = vmatpush.msra.mxu0 %v2286
        %2472 = vmatmul.f32.gmra.mxu0 %v2313
        %v2473 = vpop.f32.mrf.mxu0
        %v2474 = vadd.f32 0.0, %v2473
        %2475 = vmatmul.f32.gmra.mxu0 %v2316
        %v2476 = vpop.f32.mrf.mxu0
        %v2477 = vadd.f32 0.0, %v2476
        %2478 = vdwg.mxu0
        %2479 = vmatpush.msra.mxu0 0.0
        %2480 = vmatpush.msra.mxu0 0.0
        %2481 = vmatpush.msra.mxu0 0.0
        %2482 = vmatpush.msra.mxu0 0.0
        %2483 = vmatpush.msra.mxu0 0.0
        %2484 = vmatpush.msra.mxu0 0.0
        %2485 = vmatpush.msra.mxu0 0.0
        %2486 = vmatpush.msra.mxu0 0.0
        %2487 = vmatpush.msra.mxu0 0.0
        %2488 = vmatpush.msra.mxu0 0.0
        %2489 = vmatpush.msra.mxu0 0.0
        %2490 = vmatpush.msra.mxu0 0.0
        %2491 = vmatpush.msra.mxu0 %v2311
        %2492 = vmatpush.msra.mxu0 %v2303
        %2493 = vmatpush.msra.mxu0 %v2295
        %2494 = vmatpush.msra.mxu0 %v2287
        %2495 = vmatmul.f32.gmra.mxu0 %v2313
        %v2496 = vpop.f32.mrf.mxu0
        %v2497 = vadd.f32 0.0, %v2496
        %2498 = vmatmul.f32.gmra.mxu0 %v2316
        %v2499 = vpop.f32.mrf.mxu0
        %v2500 = vadd.f32 0.0, %v2499
        %2501 = vdwg.mxu0
        %v2503 = vsel %vm1504, %v2209, 0
        %v2506 = vsel %vm1504, %v2210, 0
        %2508 = vmatpush.msra.mxu0 0.0
        %2509 = vmatpush.msra.mxu0 0.0
        %2510 = vmatpush.msra.mxu0 0.0
        %2511 = vmatpush.msra.mxu0 0.0
        %2512 = vmatpush.msra.mxu0 0.0
        %2513 = vmatpush.msra.mxu0 0.0
        %2514 = vmatpush.msra.mxu0 0.0
        %2515 = vmatpush.msra.mxu0 0.0
        %2516 = vmatpush.msra.mxu0 0.0
        %2517 = vmatpush.msra.mxu0 0.0
        %2518 = vmatpush.msra.mxu0 0.0
        %2519 = vmatpush.msra.mxu0 0.0
        %2520 = vmatpush.msra.mxu0 %v2304
        %2521 = vmatpush.msra.mxu0 %v2296
        %2522 = vmatpush.msra.mxu0 %v2288
        %2523 = vmatpush.msra.mxu0 %v2280
        %2524 = vmatmul.f32.gmra.mxu0 %v2503
        %v2525 = vpop.f32.mrf.mxu0
        %v2526 = vadd.f32 0.0, %v2525
        %2527 = vmatmul.f32.gmra.mxu0 %v2506
        %v2528 = vpop.f32.mrf.mxu0
        %v2529 = vadd.f32 0.0, %v2528
        %2530 = vdwg.mxu0
        %2531 = vmatpush.msra.mxu0 0.0
        %2532 = vmatpush.msra.mxu0 0.0
        %2533 = vmatpush.msra.mxu0 0.0
        %2534 = vmatpush.msra.mxu0 0.0
        %2535 = vmatpush.msra.mxu0 0.0
        %2536 = vmatpush.msra.mxu0 0.0
        %2537 = vmatpush.msra.mxu0 0.0
        %2538 = vmatpush.msra.mxu0 0.0
        %2539 = vmatpush.msra.mxu0 0.0
        %2540 = vmatpush.msra.mxu0 0.0
        %2541 = vmatpush.msra.mxu0 0.0
        %2542 = vmatpush.msra.mxu0 0.0
        %2543 = vmatpush.msra.mxu0 %v2305
        %2544 = vmatpush.msra.mxu0 %v2297
        %2545 = vmatpush.msra.mxu0 %v2289
        %2546 = vmatpush.msra.mxu0 %v2281
        %2547 = vmatmul.f32.gmra.mxu0 %v2503
        %v2548 = vpop.f32.mrf.mxu0
        %v2549 = vadd.f32 0.0, %v2548
        %2550 = vmatmul.f32.gmra.mxu0 %v2506
        %v2551 = vpop.f32.mrf.mxu0
        %v2552 = vadd.f32 0.0, %v2551
        %2553 = vdwg.mxu0
        %2554 = vmatpush.msra.mxu0 0.0
        %2555 = vmatpush.msra.mxu0 0.0
        %2556 = vmatpush.msra.mxu0 0.0
        %2557 = vmatpush.msra.mxu0 0.0
        %2558 = vmatpush.msra.mxu0 0.0
        %2559 = vmatpush.msra.mxu0 0.0
        %2560 = vmatpush.msra.mxu0 0.0
        %2561 = vmatpush.msra.mxu0 0.0
        %2562 = vmatpush.msra.mxu0 0.0
        %2563 = vmatpush.msra.mxu0 0.0
        %2564 = vmatpush.msra.mxu0 0.0
        %2565 = vmatpush.msra.mxu0 0.0
        %2566 = vmatpush.msra.mxu0 %v2306
        %2567 = vmatpush.msra.mxu0 %v2298
        %2568 = vmatpush.msra.mxu0 %v2290
        %2569 = vmatpush.msra.mxu0 %v2282
        %2570 = vmatmul.f32.gmra.mxu0 %v2503
        %v2571 = vpop.f32.mrf.mxu0
        %v2572 = vadd.f32 0.0, %v2571
        %2573 = vmatmul.f32.gmra.mxu0 %v2506
        %v2574 = vpop.f32.mrf.mxu0
        %v2575 = vadd.f32 0.0, %v2574
        %2576 = vdwg.mxu0
        %2577 = vmatpush.msra.mxu0 0.0
        %2578 = vmatpush.msra.mxu0 0.0
        %2579 = vmatpush.msra.mxu0 0.0
        %2580 = vmatpush.msra.mxu0 0.0
        %2581 = vmatpush.msra.mxu0 0.0
        %2582 = vmatpush.msra.mxu0 0.0
        %2583 = vmatpush.msra.mxu0 0.0
        %2584 = vmatpush.msra.mxu0 0.0
        %2585 = vmatpush.msra.mxu0 0.0
        %2586 = vmatpush.msra.mxu0 0.0
        %2587 = vmatpush.msra.mxu0 0.0
        %2588 = vmatpush.msra.mxu0 0.0
        %2589 = vmatpush.msra.mxu0 %v2307
        %2590 = vmatpush.msra.mxu0 %v2299
        %2591 = vmatpush.msra.mxu0 %v2291
        %2592 = vmatpush.msra.mxu0 %v2283
        %2593 = vmatmul.f32.gmra.mxu0 %v2503
        %v2594 = vpop.f32.mrf.mxu0
        %v2595 = vadd.f32 0.0, %v2594
        %2596 = vmatmul.f32.gmra.mxu0 %v2506
        %v2597 = vpop.f32.mrf.mxu0
        %v2598 = vadd.f32 0.0, %v2597
        %2599 = vdwg.mxu0
        %2600 = vmatpush.msra.mxu0 0.0
        %2601 = vmatpush.msra.mxu0 0.0
        %2602 = vmatpush.msra.mxu0 0.0
        %2603 = vmatpush.msra.mxu0 0.0
        %2604 = vmatpush.msra.mxu0 0.0
        %2605 = vmatpush.msra.mxu0 0.0
        %2606 = vmatpush.msra.mxu0 0.0
        %2607 = vmatpush.msra.mxu0 0.0
        %2608 = vmatpush.msra.mxu0 0.0
        %2609 = vmatpush.msra.mxu0 0.0
        %2610 = vmatpush.msra.mxu0 0.0
        %2611 = vmatpush.msra.mxu0 0.0
        %2612 = vmatpush.msra.mxu0 %v2308
        %2613 = vmatpush.msra.mxu0 %v2300
        %2614 = vmatpush.msra.mxu0 %v2292
        %2615 = vmatpush.msra.mxu0 %v2284
        %2616 = vmatmul.f32.gmra.mxu0 %v2503
        %v2617 = vpop.f32.mrf.mxu0
        %v2618 = vadd.f32 0.0, %v2617
        %2619 = vmatmul.f32.gmra.mxu0 %v2506
        %v2620 = vpop.f32.mrf.mxu0
        %v2621 = vadd.f32 0.0, %v2620
        %2622 = vdwg.mxu0
        %2623 = vmatpush.msra.mxu0 0.0
        %2624 = vmatpush.msra.mxu0 0.0
        %2625 = vmatpush.msra.mxu0 0.0
        %2626 = vmatpush.msra.mxu0 0.0
        %2627 = vmatpush.msra.mxu0 0.0
        %2628 = vmatpush.msra.mxu0 0.0
        %2629 = vmatpush.msra.mxu0 0.0
        %2630 = vmatpush.msra.mxu0 0.0
        %2631 = vmatpush.msra.mxu0 0.0
        %2632 = vmatpush.msra.mxu0 0.0
        %2633 = vmatpush.msra.mxu0 0.0
        %2634 = vmatpush.msra.mxu0 0.0
        %2635 = vmatpush.msra.mxu0 %v2309
        %2636 = vmatpush.msra.mxu0 %v2301
        %2637 = vmatpush.msra.mxu0 %v2293
        %2638 = vmatpush.msra.mxu0 %v2285
        %2639 = vmatmul.f32.gmra.mxu0 %v2503
        %v2640 = vpop.f32.mrf.mxu0
        %v2641 = vadd.f32 0.0, %v2640
        %2642 = vmatmul.f32.gmra.mxu0 %v2506
        %v2643 = vpop.f32.mrf.mxu0
        %v2644 = vadd.f32 0.0, %v2643
        %2645 = vdwg.mxu0
        %2646 = vmatpush.msra.mxu0 0.0
        %2647 = vmatpush.msra.mxu0 0.0
        %2648 = vmatpush.msra.mxu0 0.0
        %2649 = vmatpush.msra.mxu0 0.0
        %2650 = vmatpush.msra.mxu0 0.0
        %2651 = vmatpush.msra.mxu0 0.0
        %2652 = vmatpush.msra.mxu0 0.0
        %2653 = vmatpush.msra.mxu0 0.0
        %2654 = vmatpush.msra.mxu0 0.0
        %2655 = vmatpush.msra.mxu0 0.0
        %2656 = vmatpush.msra.mxu0 0.0
        %2657 = vmatpush.msra.mxu0 0.0
        %2658 = vmatpush.msra.mxu0 %v2310
        %2659 = vmatpush.msra.mxu0 %v2302
        %2660 = vmatpush.msra.mxu0 %v2294
        %2661 = vmatpush.msra.mxu0 %v2286
        %2662 = vmatmul.f32.gmra.mxu0 %v2503
        %v2663 = vpop.f32.mrf.mxu0
        %v2664 = vadd.f32 0.0, %v2663
        %2665 = vmatmul.f32.gmra.mxu0 %v2506
        %v2666 = vpop.f32.mrf.mxu0
        %v2667 = vadd.f32 0.0, %v2666
        %2668 = vdwg.mxu0
        %2669 = vmatpush.msra.mxu0 0.0
        %2670 = vmatpush.msra.mxu0 0.0
        %2671 = vmatpush.msra.mxu0 0.0
        %2672 = vmatpush.msra.mxu0 0.0
        %2673 = vmatpush.msra.mxu0 0.0
        %2674 = vmatpush.msra.mxu0 0.0
        %2675 = vmatpush.msra.mxu0 0.0
        %2676 = vmatpush.msra.mxu0 0.0
        %2677 = vmatpush.msra.mxu0 0.0
        %2678 = vmatpush.msra.mxu0 0.0
        %2679 = vmatpush.msra.mxu0 0.0
        %2680 = vmatpush.msra.mxu0 0.0
        %2681 = vmatpush.msra.mxu0 %v2311
        %2682 = vmatpush.msra.mxu0 %v2303
        %2683 = vmatpush.msra.mxu0 %v2295
        %2684 = vmatpush.msra.mxu0 %v2287
        %2685 = vmatmul.f32.gmra.mxu0 %v2503
        %v2686 = vpop.f32.mrf.mxu0
        %v2687 = vadd.f32 0.0, %v2686
        %2688 = vmatmul.f32.gmra.mxu0 %v2506
        %v2689 = vpop.f32.mrf.mxu0
        %v2690 = vadd.f32 0.0, %v2689
        %2691 = vdwg.mxu0
        %2694 = vrot.lane.b32.xlu0 %v2271, 64
        %v2695 = vpop.permute.xlu0 %2694
        %2696 = vrot.lane.b32.xlu0 %v2272, 64
        %v2697 = vpop.permute.xlu0 %2696
        %v2698 = vsel %vm1504, %v2695, 0
        %v2700 = vsel %vm1504, %v2697, 0
        %2702 = vmatpush.msra.mxu0 0.0
        %2703 = vmatpush.msra.mxu0 0.0
        %2704 = vmatpush.msra.mxu0 0.0
        %2705 = vmatpush.msra.mxu0 0.0
        %2706 = vmatpush.msra.mxu0 0.0
        %2707 = vmatpush.msra.mxu0 0.0
        %2708 = vmatpush.msra.mxu0 0.0
        %2709 = vmatpush.msra.mxu0 0.0
        %2710 = vmatpush.msra.mxu0 0.0
        %2711 = vmatpush.msra.mxu0 0.0
        %2712 = vmatpush.msra.mxu0 0.0
        %2713 = vmatpush.msra.mxu0 0.0
        %2714 = vmatpush.msra.mxu0 %v2304
        %2715 = vmatpush.msra.mxu0 %v2296
        %2716 = vmatpush.msra.mxu0 %v2288
        %2717 = vmatpush.msra.mxu0 %v2280
        %2718 = vmatmul.f32.gmra.mxu0 %v2698
        %v2719 = vpop.f32.mrf.mxu0
        %v2720 = vadd.f32 0.0, %v2719
        %2721 = vmatmul.f32.gmra.mxu0 %v2700
        %v2722 = vpop.f32.mrf.mxu0
        %v2723 = vadd.f32 0.0, %v2722
        %2724 = vdwg.mxu0
        %2725 = vmatpush.msra.mxu0 0.0
        %2726 = vmatpush.msra.mxu0 0.0
        %2727 = vmatpush.msra.mxu0 0.0
        %2728 = vmatpush.msra.mxu0 0.0
        %2729 = vmatpush.msra.mxu0 0.0
        %2730 = vmatpush.msra.mxu0 0.0
        %2731 = vmatpush.msra.mxu0 0.0
        %2732 = vmatpush.msra.mxu0 0.0
        %2733 = vmatpush.msra.mxu0 0.0
        %2734 = vmatpush.msra.mxu0 0.0
        %2735 = vmatpush.msra.mxu0 0.0
        %2736 = vmatpush.msra.mxu0 0.0
        %2737 = vmatpush.msra.mxu0 %v2305
        %2738 = vmatpush.msra.mxu0 %v2297
        %2739 = vmatpush.msra.mxu0 %v2289
        %2740 = vmatpush.msra.mxu0 %v2281
        %2741 = vmatmul.f32.gmra.mxu0 %v2698
        %v2742 = vpop.f32.mrf.mxu0
        %v2743 = vadd.f32 0.0, %v2742
        %2744 = vmatmul.f32.gmra.mxu0 %v2700
        %v2745 = vpop.f32.mrf.mxu0
        %v2746 = vadd.f32 0.0, %v2745
        %2747 = vdwg.mxu0
        %2748 = vmatpush.msra.mxu0 0.0
        %2749 = vmatpush.msra.mxu0 0.0
        %2750 = vmatpush.msra.mxu0 0.0
        %2751 = vmatpush.msra.mxu0 0.0
        %2752 = vmatpush.msra.mxu0 0.0
        %2753 = vmatpush.msra.mxu0 0.0
        %2754 = vmatpush.msra.mxu0 0.0
        %2755 = vmatpush.msra.mxu0 0.0
        %2756 = vmatpush.msra.mxu0 0.0
        %2757 = vmatpush.msra.mxu0 0.0
        %2758 = vmatpush.msra.mxu0 0.0
        %2759 = vmatpush.msra.mxu0 0.0
        %2760 = vmatpush.msra.mxu0 %v2306
        %2761 = vmatpush.msra.mxu0 %v2298
        %2762 = vmatpush.msra.mxu0 %v2290
        %2763 = vmatpush.msra.mxu0 %v2282
        %2764 = vmatmul.f32.gmra.mxu0 %v2698
        %v2765 = vpop.f32.mrf.mxu0
        %v2766 = vadd.f32 0.0, %v2765
        %2767 = vmatmul.f32.gmra.mxu0 %v2700
        %v2768 = vpop.f32.mrf.mxu0
        %v2769 = vadd.f32 0.0, %v2768
        %2770 = vdwg.mxu0
        %2771 = vmatpush.msra.mxu0 0.0
        %2772 = vmatpush.msra.mxu0 0.0
        %2773 = vmatpush.msra.mxu0 0.0
        %2774 = vmatpush.msra.mxu0 0.0
        %2775 = vmatpush.msra.mxu0 0.0
        %2776 = vmatpush.msra.mxu0 0.0
        %2777 = vmatpush.msra.mxu0 0.0
        %2778 = vmatpush.msra.mxu0 0.0
        %2779 = vmatpush.msra.mxu0 0.0
        %2780 = vmatpush.msra.mxu0 0.0
        %2781 = vmatpush.msra.mxu0 0.0
        %2782 = vmatpush.msra.mxu0 0.0
        %2783 = vmatpush.msra.mxu0 %v2307
        %2784 = vmatpush.msra.mxu0 %v2299
        %2785 = vmatpush.msra.mxu0 %v2291
        %2786 = vmatpush.msra.mxu0 %v2283
        %2787 = vmatmul.f32.gmra.mxu0 %v2698
        %v2788 = vpop.f32.mrf.mxu0
        %v2789 = vadd.f32 0.0, %v2788
        %2790 = vmatmul.f32.gmra.mxu0 %v2700
        %v2791 = vpop.f32.mrf.mxu0
        %v2792 = vadd.f32 0.0, %v2791
        %2793 = vdwg.mxu0
        %2794 = vmatpush.msra.mxu0 0.0
        %2795 = vmatpush.msra.mxu0 0.0
        %2796 = vmatpush.msra.mxu0 0.0
        %2797 = vmatpush.msra.mxu0 0.0
        %2798 = vmatpush.msra.mxu0 0.0
        %2799 = vmatpush.msra.mxu0 0.0
        %2800 = vmatpush.msra.mxu0 0.0
        %2801 = vmatpush.msra.mxu0 0.0
        %2802 = vmatpush.msra.mxu0 0.0
        %2803 = vmatpush.msra.mxu0 0.0
        %2804 = vmatpush.msra.mxu0 0.0
        %2805 = vmatpush.msra.mxu0 0.0
        %2806 = vmatpush.msra.mxu0 %v2308
        %2807 = vmatpush.msra.mxu0 %v2300
        %2808 = vmatpush.msra.mxu0 %v2292
        %2809 = vmatpush.msra.mxu0 %v2284
        %2810 = vmatmul.f32.gmra.mxu0 %v2698
        %v2811 = vpop.f32.mrf.mxu0
        %v2812 = vadd.f32 0.0, %v2811
        %2813 = vmatmul.f32.gmra.mxu0 %v2700
        %v2814 = vpop.f32.mrf.mxu0
        %v2815 = vadd.f32 0.0, %v2814
        %2816 = vdwg.mxu0
        %2817 = vmatpush.msra.mxu0 0.0
        %2818 = vmatpush.msra.mxu0 0.0
        %2819 = vmatpush.msra.mxu0 0.0
        %2820 = vmatpush.msra.mxu0 0.0
        %2821 = vmatpush.msra.mxu0 0.0
        %2822 = vmatpush.msra.mxu0 0.0
        %2823 = vmatpush.msra.mxu0 0.0
        %2824 = vmatpush.msra.mxu0 0.0
        %2825 = vmatpush.msra.mxu0 0.0
        %2826 = vmatpush.msra.mxu0 0.0
        %2827 = vmatpush.msra.mxu0 0.0
        %2828 = vmatpush.msra.mxu0 0.0
        %2829 = vmatpush.msra.mxu0 %v2309
        %2830 = vmatpush.msra.mxu0 %v2301
        %2831 = vmatpush.msra.mxu0 %v2293
        %2832 = vmatpush.msra.mxu0 %v2285
        %2833 = vmatmul.f32.gmra.mxu0 %v2698
        %v2834 = vpop.f32.mrf.mxu0
        %v2835 = vadd.f32 0.0, %v2834
        %2836 = vmatmul.f32.gmra.mxu0 %v2700
        %v2837 = vpop.f32.mrf.mxu0
        %v2838 = vadd.f32 0.0, %v2837
        %2839 = vdwg.mxu0
        %2840 = vmatpush.msra.mxu0 0.0
        %2841 = vmatpush.msra.mxu0 0.0
        %2842 = vmatpush.msra.mxu0 0.0
        %2843 = vmatpush.msra.mxu0 0.0
        %2844 = vmatpush.msra.mxu0 0.0
        %2845 = vmatpush.msra.mxu0 0.0
        %2846 = vmatpush.msra.mxu0 0.0
        %2847 = vmatpush.msra.mxu0 0.0
        %2848 = vmatpush.msra.mxu0 0.0
        %2849 = vmatpush.msra.mxu0 0.0
        %2850 = vmatpush.msra.mxu0 0.0
        %2851 = vmatpush.msra.mxu0 0.0
        %2852 = vmatpush.msra.mxu0 %v2310
        %2853 = vmatpush.msra.mxu0 %v2302
        %2854 = vmatpush.msra.mxu0 %v2294
        %2855 = vmatpush.msra.mxu0 %v2286
        %2856 = vmatmul.f32.gmra.mxu0 %v2698
        %v2857 = vpop.f32.mrf.mxu0
        %v2858 = vadd.f32 0.0, %v2857
        %2859 = vmatmul.f32.gmra.mxu0 %v2700
        %v2860 = vpop.f32.mrf.mxu0
        %v2861 = vadd.f32 0.0, %v2860
        %2862 = vdwg.mxu0
        %2863 = vmatpush.msra.mxu0 0.0
        %2864 = vmatpush.msra.mxu0 0.0
        %2865 = vmatpush.msra.mxu0 0.0
        %2866 = vmatpush.msra.mxu0 0.0
        %2867 = vmatpush.msra.mxu0 0.0
        %2868 = vmatpush.msra.mxu0 0.0
        %2869 = vmatpush.msra.mxu0 0.0
        %2870 = vmatpush.msra.mxu0 0.0
        %2871 = vmatpush.msra.mxu0 0.0
        %2872 = vmatpush.msra.mxu0 0.0
        %2873 = vmatpush.msra.mxu0 0.0
        %2874 = vmatpush.msra.mxu0 0.0
        %2875 = vmatpush.msra.mxu0 %v2311
        %2876 = vmatpush.msra.mxu0 %v2303
        %2877 = vmatpush.msra.mxu0 %v2295
        %2878 = vmatpush.msra.mxu0 %v2287
        %2879 = vmatmul.f32.gmra.mxu0 %v2698
        %v2880 = vpop.f32.mrf.mxu0
        %v2881 = vadd.f32 0.0, %v2880
        %2882 = vmatmul.f32.gmra.mxu0 %v2700
        %v2883 = vpop.f32.mrf.mxu0
        %v2884 = vadd.f32 0.0, %v2883
        %2885 = vdwg.mxu0
        %v2886 = vld [vmem:[%s23] sm:$0xff]
        %v2888 = vperm.slane %v2886, 0
        %v2889 = vperm.slane %v2886, 1
        %v2890 = vperm.slane %v2886, 2
        %v2891 = vperm.slane %v2886, 3
        %v2892 = vperm.slane %v2886, 4
        %v2893 = vperm.slane %v2886, 5
        %v2894 = vperm.slane %v2886, 6
        %v2895 = vperm.slane %v2886, 7
        %v2904 = vsub.f32 %v2888, %v2336
        %v2905 = vsub.f32 %v2889, %v2359
        %v2906 = vsub.f32 %v2890, %v2382
        %v2907 = vsub.f32 %v2891, %v2405
        %v2908 = vsub.f32 %v2892, %v2428
        %v2909 = vsub.f32 %v2893, %v2451
        %v2910 = vsub.f32 %v2894, %v2474
        %v2911 = vsub.f32 %v2895, %v2497
        %v2912 = vsub.f32 %v2888, %v2339
        %v2913 = vsub.f32 %v2889, %v2362
        %v2914 = vsub.f32 %v2890, %v2385
        %v2915 = vsub.f32 %v2891, %v2408
        %v2916 = vsub.f32 %v2892, %v2431
        %v2917 = vsub.f32 %v2893, %v2454
        %v2918 = vsub.f32 %v2894, %v2477
        %v2919 = vsub.f32 %v2895, %v2500
        %v2920 = vand.u32 2147483647, %v2904
        %v2921 = vand.u32 2147483647, %v2905
        %v2922 = vand.u32 2147483647, %v2906
        %v2923 = vand.u32 2147483647, %v2907
        %v2924 = vand.u32 2147483647, %v2908
        %v2925 = vand.u32 2147483647, %v2909
        %v2926 = vand.u32 2147483647, %v2910
        %v2927 = vand.u32 2147483647, %v2911
        %v2928 = vand.u32 2147483647, %v2912
        %v2929 = vand.u32 2147483647, %v2913
        %v2930 = vand.u32 2147483647, %v2914
        %v2931 = vand.u32 2147483647, %v2915
        %v2932 = vand.u32 2147483647, %v2916
        %v2933 = vand.u32 2147483647, %v2917
        %v2934 = vand.u32 2147483647, %v2918
        %v2935 = vand.u32 2147483647, %v2919
        %v2936 = vsub.f32 1.0, %v2920
        %v2937 = vsub.f32 1.0, %v2921
        %v2938 = vsub.f32 1.0, %v2922
        %v2939 = vsub.f32 1.0, %v2923
        %v2940 = vsub.f32 1.0, %v2924
        %v2941 = vsub.f32 1.0, %v2925
        %v2942 = vsub.f32 1.0, %v2926
        %v2943 = vsub.f32 1.0, %v2927
        %v2944 = vsub.f32 1.0, %v2928
        %v2945 = vsub.f32 1.0, %v2929
        %v2946 = vsub.f32 1.0, %v2930
        %v2947 = vsub.f32 1.0, %v2931
        %v2948 = vsub.f32 1.0, %v2932
        %v2949 = vsub.f32 1.0, %v2933
        %v2950 = vsub.f32 1.0, %v2934
        %v2951 = vsub.f32 1.0, %v2935
        %v2952 = vmax.f32 %v2936, 0.0
        %v2953 = vmax.f32 %v2937, 0.0
        %v2954 = vmax.f32 %v2938, 0.0
        %v2955 = vmax.f32 %v2939, 0.0
        %v2956 = vmax.f32 %v2940, 0.0
        %v2957 = vmax.f32 %v2941, 0.0
        %v2958 = vmax.f32 %v2942, 0.0
        %v2959 = vmax.f32 %v2943, 0.0
        %v2960 = vmax.f32 %v2944, 0.0
        %v2961 = vmax.f32 %v2945, 0.0
        %v2962 = vmax.f32 %v2946, 0.0
        %v2963 = vmax.f32 %v2947, 0.0
        %v2964 = vmax.f32 %v2948, 0.0
        %v2965 = vmax.f32 %v2949, 0.0
        %v2966 = vmax.f32 %v2950, 0.0
        %v2967 = vmax.f32 %v2951, 0.0
        %v2968 = vld [vmem:[%s25] sm:$0xff]
        %v2970 = vperm.slane %v2968, 0
        %v2971 = vperm.slane %v2968, 1
        %v2972 = vperm.slane %v2968, 2
        %v2973 = vperm.slane %v2968, 3
        %v2974 = vperm.slane %v2968, 4
        %v2975 = vperm.slane %v2968, 5
        %v2976 = vperm.slane %v2968, 6
        %v2977 = vperm.slane %v2968, 7
        %v2986 = vsub.f32 %v2970, %v2526
        %v2987 = vsub.f32 %v2971, %v2549
        %v2988 = vsub.f32 %v2972, %v2572
        %v2989 = vsub.f32 %v2973, %v2595
        %v2990 = vsub.f32 %v2974, %v2618
        %v2991 = vsub.f32 %v2975, %v2641
        %v2992 = vsub.f32 %v2976, %v2664
        %v2993 = vsub.f32 %v2977, %v2687
        %v2994 = vsub.f32 %v2970, %v2529
        %v2995 = vsub.f32 %v2971, %v2552
        %v2996 = vsub.f32 %v2972, %v2575
        %v2997 = vsub.f32 %v2973, %v2598
        %v2998 = vsub.f32 %v2974, %v2621
        %v2999 = vsub.f32 %v2975, %v2644
        %v3000 = vsub.f32 %v2976, %v2667
        %v3001 = vsub.f32 %v2977, %v2690
        %v3002 = vand.u32 2147483647, %v2986
        %v3003 = vand.u32 2147483647, %v2987
        %v3004 = vand.u32 2147483647, %v2988
        %v3005 = vand.u32 2147483647, %v2989
        %v3006 = vand.u32 2147483647, %v2990
        %v3007 = vand.u32 2147483647, %v2991
        %v3008 = vand.u32 2147483647, %v2992
        %v3009 = vand.u32 2147483647, %v2993
        %v3010 = vand.u32 2147483647, %v2994
        %v3011 = vand.u32 2147483647, %v2995
        %v3012 = vand.u32 2147483647, %v2996
        %v3013 = vand.u32 2147483647, %v2997
        %v3014 = vand.u32 2147483647, %v2998
        %v3015 = vand.u32 2147483647, %v2999
        %v3016 = vand.u32 2147483647, %v3000
        %v3017 = vand.u32 2147483647, %v3001
        %v3018 = vsub.f32 1.0, %v3002
        %v3019 = vsub.f32 1.0, %v3003
        %v3020 = vsub.f32 1.0, %v3004
        %v3021 = vsub.f32 1.0, %v3005
        %v3022 = vsub.f32 1.0, %v3006
        %v3023 = vsub.f32 1.0, %v3007
        %v3024 = vsub.f32 1.0, %v3008
        %v3025 = vsub.f32 1.0, %v3009
        %v3026 = vsub.f32 1.0, %v3010
        %v3027 = vsub.f32 1.0, %v3011
        %v3028 = vsub.f32 1.0, %v3012
        %v3029 = vsub.f32 1.0, %v3013
        %v3030 = vsub.f32 1.0, %v3014
        %v3031 = vsub.f32 1.0, %v3015
        %v3032 = vsub.f32 1.0, %v3016
        %v3033 = vsub.f32 1.0, %v3017
        %v3034 = vmax.f32 %v3018, 0.0
        %v3035 = vmax.f32 %v3019, 0.0
        %v3036 = vmax.f32 %v3020, 0.0
        %v3037 = vmax.f32 %v3021, 0.0
        %v3038 = vmax.f32 %v3022, 0.0
        %v3039 = vmax.f32 %v3023, 0.0
        %v3040 = vmax.f32 %v3024, 0.0
        %v3041 = vmax.f32 %v3025, 0.0
        %v3042 = vmax.f32 %v3026, 0.0
        %v3043 = vmax.f32 %v3027, 0.0
        %v3044 = vmax.f32 %v3028, 0.0
        %v3045 = vmax.f32 %v3029, 0.0
        %v3046 = vmax.f32 %v3030, 0.0
        %v3047 = vmax.f32 %v3031, 0.0
        %v3048 = vmax.f32 %v3032, 0.0
        %v3049 = vmax.f32 %v3033, 0.0
        %v3050 = vmul.f32 %v2952, %v3034
        %v3051 = vmul.f32 %v2953, %v3035
        %v3052 = vmul.f32 %v2954, %v3036
        %v3053 = vmul.f32 %v2955, %v3037
        %v3054 = vmul.f32 %v2956, %v3038
        %v3055 = vmul.f32 %v2957, %v3039
        %v3056 = vmul.f32 %v2958, %v3040
        %v3057 = vmul.f32 %v2959, %v3041
        %v3058 = vmul.f32 %v2960, %v3042
        %v3059 = vmul.f32 %v2961, %v3043
        %v3060 = vmul.f32 %v2962, %v3044
        %v3061 = vmul.f32 %v2963, %v3045
        %v3062 = vmul.f32 %v2964, %v3046
        %v3063 = vmul.f32 %v2965, %v3047
        %v3064 = vmul.f32 %v2966, %v3048
        %v3065 = vmul.f32 %v2967, %v3049
        %v3066 = vmul.f32 %v3050, %v2720
        %v3067 = vmul.f32 %v3051, %v2743
        %v3068 = vmul.f32 %v3052, %v2766
        %v3069 = vmul.f32 %v3053, %v2789
        %v3070 = vmul.f32 %v3054, %v2812
        %v3071 = vmul.f32 %v3055, %v2835
        %v3072 = vmul.f32 %v3056, %v2858
        %v3073 = vmul.f32 %v3057, %v2881
        %v3074 = vmul.f32 %v3058, %v2723
        %v3075 = vmul.f32 %v3059, %v2746
        %v3076 = vmul.f32 %v3060, %v2769
        %v3077 = vmul.f32 %v3061, %v2792
        %v3078 = vmul.f32 %v3062, %v2815
        %v3079 = vmul.f32 %v3063, %v2838
        %v3080 = vmul.f32 %v3064, %v2861
        %v3081 = vmul.f32 %v3065, %v2884
        %3082 = vmatpush.msra.mxu0 %v2157
        %3083 = vmatpush.msra.mxu0 %v2154
        %3084 = vmatpush.msra.mxu0 %v2151
        %3085 = vmatpush.msra.mxu0 %v2148
        %3086 = vmatpush.msra.mxu0 %v2145
        %3087 = vmatpush.msra.mxu0 %v2142
        %3088 = vmatpush.msra.mxu0 %v2139
        %3089 = vmatpush.msra.mxu0 %v2136
        %3090 = vmatpush.msra.mxu0 %v2157
        %3091 = vmatpush.msra.mxu0 %v2154
        %3092 = vmatpush.msra.mxu0 %v2151
        %3093 = vmatpush.msra.mxu0 %v2148
        %3094 = vmatpush.msra.mxu0 %v2145
        %3095 = vmatpush.msra.mxu0 %v2142
        %3096 = vmatpush.msra.mxu0 %v2139
        %3097 = vmatpush.msra.mxu0 %v2136
        %3098 = vmatmul.f32.gmra.mxu0 %v3066
        %v3099 = vpop.f32.mrf.mxu0
        %v3100 = vadd.f32 0.0, %v3099
        %3101 = vdwg.mxu0
        %3102 = vmatpush.msra.mxu0 %v2157
        %3103 = vmatpush.msra.mxu0 %v2154
        %3104 = vmatpush.msra.mxu0 %v2151
        %3105 = vmatpush.msra.mxu0 %v2148
        %3106 = vmatpush.msra.mxu0 %v2145
        %3107 = vmatpush.msra.mxu0 %v2142
        %3108 = vmatpush.msra.mxu0 %v2139
        %3109 = vmatpush.msra.mxu0 %v2136
        %3110 = vmatpush.msra.mxu0 %v2157
        %3111 = vmatpush.msra.mxu0 %v2154
        %3112 = vmatpush.msra.mxu0 %v2151
        %3113 = vmatpush.msra.mxu0 %v2148
        %3114 = vmatpush.msra.mxu0 %v2145
        %3115 = vmatpush.msra.mxu0 %v2142
        %3116 = vmatpush.msra.mxu0 %v2139
        %3117 = vmatpush.msra.mxu0 %v2136
        %3118 = vmatmul.f32.gmra.mxu0 %v3067
        %v3119 = vpop.f32.mrf.mxu0
        %v3120 = vadd.f32 %v3100, %v3119
        %3121 = vdwg.mxu0
        %v3123 = vperm.slane %v2273, 0
        %v3125 = vmul.f32 %v3120, %v3123
        %v3126 = vadd.f32 %v3125, 0.0
        %3127 = vmatpush.msra.mxu0 %v2157
        %3128 = vmatpush.msra.mxu0 %v2154
        %3129 = vmatpush.msra.mxu0 %v2151
        %3130 = vmatpush.msra.mxu0 %v2148
        %3131 = vmatpush.msra.mxu0 %v2145
        %3132 = vmatpush.msra.mxu0 %v2142
        %3133 = vmatpush.msra.mxu0 %v2139
        %3134 = vmatpush.msra.mxu0 %v2136
        %3135 = vmatpush.msra.mxu0 %v2157
        %3136 = vmatpush.msra.mxu0 %v2154
        %3137 = vmatpush.msra.mxu0 %v2151
        %3138 = vmatpush.msra.mxu0 %v2148
        %3139 = vmatpush.msra.mxu0 %v2145
        %3140 = vmatpush.msra.mxu0 %v2142
        %3141 = vmatpush.msra.mxu0 %v2139
        %3142 = vmatpush.msra.mxu0 %v2136
        %3143 = vmatmul.f32.gmra.mxu0 %v3068
        %v3144 = vpop.f32.mrf.mxu0
        %v3145 = vadd.f32 0.0, %v3144
        %3146 = vdwg.mxu0
        %3147 = vmatpush.msra.mxu0 %v2157
        %3148 = vmatpush.msra.mxu0 %v2154
        %3149 = vmatpush.msra.mxu0 %v2151
        %3150 = vmatpush.msra.mxu0 %v2148
        %3151 = vmatpush.msra.mxu0 %v2145
        %3152 = vmatpush.msra.mxu0 %v2142
        %3153 = vmatpush.msra.mxu0 %v2139
        %3154 = vmatpush.msra.mxu0 %v2136
        %3155 = vmatpush.msra.mxu0 %v2157
        %3156 = vmatpush.msra.mxu0 %v2154
        %3157 = vmatpush.msra.mxu0 %v2151
        %3158 = vmatpush.msra.mxu0 %v2148
        %3159 = vmatpush.msra.mxu0 %v2145
        %3160 = vmatpush.msra.mxu0 %v2142
        %3161 = vmatpush.msra.mxu0 %v2139
        %3162 = vmatpush.msra.mxu0 %v2136
        %3163 = vmatmul.f32.gmra.mxu0 %v3069
        %v3164 = vpop.f32.mrf.mxu0
        %v3165 = vadd.f32 %v3145, %v3164
        %3166 = vdwg.mxu0
        %v3168 = vperm.slane %v2275, 0
        %v3170 = vmul.f32 %v3165, %v3168
        %v3171 = vadd.f32 %v3126, %v3170
        %3172 = vmatpush.msra.mxu0 %v2157
        %3173 = vmatpush.msra.mxu0 %v2154
        %3174 = vmatpush.msra.mxu0 %v2151
        %3175 = vmatpush.msra.mxu0 %v2148
        %3176 = vmatpush.msra.mxu0 %v2145
        %3177 = vmatpush.msra.mxu0 %v2142
        %3178 = vmatpush.msra.mxu0 %v2139
        %3179 = vmatpush.msra.mxu0 %v2136
        %3180 = vmatpush.msra.mxu0 %v2157
        %3181 = vmatpush.msra.mxu0 %v2154
        %3182 = vmatpush.msra.mxu0 %v2151
        %3183 = vmatpush.msra.mxu0 %v2148
        %3184 = vmatpush.msra.mxu0 %v2145
        %3185 = vmatpush.msra.mxu0 %v2142
        %3186 = vmatpush.msra.mxu0 %v2139
        %3187 = vmatpush.msra.mxu0 %v2136
        %3188 = vmatmul.f32.gmra.mxu0 %v3070
        %v3189 = vpop.f32.mrf.mxu0
        %v3190 = vadd.f32 0.0, %v3189
        %3191 = vdwg.mxu0
        %3192 = vmatpush.msra.mxu0 %v2157
        %3193 = vmatpush.msra.mxu0 %v2154
        %3194 = vmatpush.msra.mxu0 %v2151
        %3195 = vmatpush.msra.mxu0 %v2148
        %3196 = vmatpush.msra.mxu0 %v2145
        %3197 = vmatpush.msra.mxu0 %v2142
        %3198 = vmatpush.msra.mxu0 %v2139
        %3199 = vmatpush.msra.mxu0 %v2136
        %3200 = vmatpush.msra.mxu0 %v2157
        %3201 = vmatpush.msra.mxu0 %v2154
        %3202 = vmatpush.msra.mxu0 %v2151
        %3203 = vmatpush.msra.mxu0 %v2148
        %3204 = vmatpush.msra.mxu0 %v2145
        %3205 = vmatpush.msra.mxu0 %v2142
        %3206 = vmatpush.msra.mxu0 %v2139
        %3207 = vmatpush.msra.mxu0 %v2136
        %3208 = vmatmul.f32.gmra.mxu0 %v3071
        %v3209 = vpop.f32.mrf.mxu0
        %v3210 = vadd.f32 %v3190, %v3209
        %3211 = vdwg.mxu0
        %v3213 = vperm.slane %v2277, 0
        %v3215 = vmul.f32 %v3210, %v3213
        %v3216 = vadd.f32 %v3171, %v3215
        %3217 = vmatpush.msra.mxu0 %v2157
        %3218 = vmatpush.msra.mxu0 %v2154
        %3219 = vmatpush.msra.mxu0 %v2151
        %3220 = vmatpush.msra.mxu0 %v2148
        %3221 = vmatpush.msra.mxu0 %v2145
        %3222 = vmatpush.msra.mxu0 %v2142
        %3223 = vmatpush.msra.mxu0 %v2139
        %3224 = vmatpush.msra.mxu0 %v2136
        %3225 = vmatpush.msra.mxu0 %v2157
        %3226 = vmatpush.msra.mxu0 %v2154
        %3227 = vmatpush.msra.mxu0 %v2151
        %3228 = vmatpush.msra.mxu0 %v2148
        %3229 = vmatpush.msra.mxu0 %v2145
        %3230 = vmatpush.msra.mxu0 %v2142
        %3231 = vmatpush.msra.mxu0 %v2139
        %3232 = vmatpush.msra.mxu0 %v2136
        %3233 = vmatmul.f32.gmra.mxu0 %v3072
        %v3234 = vpop.f32.mrf.mxu0
        %v3235 = vadd.f32 0.0, %v3234
        %3236 = vdwg.mxu0
        %3237 = vmatpush.msra.mxu0 %v2157
        %3238 = vmatpush.msra.mxu0 %v2154
        %3239 = vmatpush.msra.mxu0 %v2151
        %3240 = vmatpush.msra.mxu0 %v2148
        %3241 = vmatpush.msra.mxu0 %v2145
        %3242 = vmatpush.msra.mxu0 %v2142
        %3243 = vmatpush.msra.mxu0 %v2139
        %3244 = vmatpush.msra.mxu0 %v2136
        %3245 = vmatpush.msra.mxu0 %v2157
        %3246 = vmatpush.msra.mxu0 %v2154
        %3247 = vmatpush.msra.mxu0 %v2151
        %3248 = vmatpush.msra.mxu0 %v2148
        %3249 = vmatpush.msra.mxu0 %v2145
        %3250 = vmatpush.msra.mxu0 %v2142
        %3251 = vmatpush.msra.mxu0 %v2139
        %3252 = vmatpush.msra.mxu0 %v2136
        %3253 = vmatmul.f32.gmra.mxu0 %v3073
        %v3254 = vpop.f32.mrf.mxu0
        %v3255 = vadd.f32 %v3235, %v3254
        %3256 = vdwg.mxu0
        %v3258 = vperm.slane %v2279, 0
        %v3260 = vmul.f32 %v3255, %v3258
        %v3261 = vadd.f32 %v3216, %v3260
        %3262 = vmatpush.msra.mxu0 %v2187
        %3263 = vmatpush.msra.mxu0 %v2184
        %3264 = vmatpush.msra.mxu0 %v2181
        %3265 = vmatpush.msra.mxu0 %v2178
        %3266 = vmatpush.msra.mxu0 %v2175
        %3267 = vmatpush.msra.mxu0 %v2172
        %3268 = vmatpush.msra.mxu0 %v2169
        %3269 = vmatpush.msra.mxu0 %v2166
        %3270 = vmatpush.msra.mxu0 %v2187
        %3271 = vmatpush.msra.mxu0 %v2184
        %3272 = vmatpush.msra.mxu0 %v2181
        %3273 = vmatpush.msra.mxu0 %v2178
        %3274 = vmatpush.msra.mxu0 %v2175
        %3275 = vmatpush.msra.mxu0 %v2172
        %3276 = vmatpush.msra.mxu0 %v2169
        %3277 = vmatpush.msra.mxu0 %v2166
        %3278 = vmatmul.f32.gmra.mxu0 %v3074
        %v3279 = vpop.f32.mrf.mxu0
        %v3280 = vadd.f32 0.0, %v3279
        %3281 = vdwg.mxu0
        %3282 = vmatpush.msra.mxu0 %v2187
        %3283 = vmatpush.msra.mxu0 %v2184
        %3284 = vmatpush.msra.mxu0 %v2181
        %3285 = vmatpush.msra.mxu0 %v2178
        %3286 = vmatpush.msra.mxu0 %v2175
        %3287 = vmatpush.msra.mxu0 %v2172
        %3288 = vmatpush.msra.mxu0 %v2169
        %3289 = vmatpush.msra.mxu0 %v2166
        %3290 = vmatpush.msra.mxu0 %v2187
        %3291 = vmatpush.msra.mxu0 %v2184
        %3292 = vmatpush.msra.mxu0 %v2181
        %3293 = vmatpush.msra.mxu0 %v2178
        %3294 = vmatpush.msra.mxu0 %v2175
        %3295 = vmatpush.msra.mxu0 %v2172
        %3296 = vmatpush.msra.mxu0 %v2169
        %3297 = vmatpush.msra.mxu0 %v2166
        %3298 = vmatmul.f32.gmra.mxu0 %v3075
        %v3299 = vpop.f32.mrf.mxu0
        %v3300 = vadd.f32 %v3280, %v3299
        %3301 = vdwg.mxu0
        %v3302 = vmul.f32 %v3300, %v3123
        %v3303 = vadd.f32 %v3302, 0.0
        %3304 = vmatpush.msra.mxu0 %v2187
        %3305 = vmatpush.msra.mxu0 %v2184
        %3306 = vmatpush.msra.mxu0 %v2181
        %3307 = vmatpush.msra.mxu0 %v2178
        %3308 = vmatpush.msra.mxu0 %v2175
        %3309 = vmatpush.msra.mxu0 %v2172
        %3310 = vmatpush.msra.mxu0 %v2169
        %3311 = vmatpush.msra.mxu0 %v2166
        %3312 = vmatpush.msra.mxu0 %v2187
        %3313 = vmatpush.msra.mxu0 %v2184
        %3314 = vmatpush.msra.mxu0 %v2181
        %3315 = vmatpush.msra.mxu0 %v2178
        %3316 = vmatpush.msra.mxu0 %v2175
        %3317 = vmatpush.msra.mxu0 %v2172
        %3318 = vmatpush.msra.mxu0 %v2169
        %3319 = vmatpush.msra.mxu0 %v2166
        %3320 = vmatmul.f32.gmra.mxu0 %v3076
        %v3321 = vpop.f32.mrf.mxu0
        %v3322 = vadd.f32 0.0, %v3321
        %3323 = vdwg.mxu0
        %3324 = vmatpush.msra.mxu0 %v2187
        %3325 = vmatpush.msra.mxu0 %v2184
        %3326 = vmatpush.msra.mxu0 %v2181
        %3327 = vmatpush.msra.mxu0 %v2178
        %3328 = vmatpush.msra.mxu0 %v2175
        %3329 = vmatpush.msra.mxu0 %v2172
        %3330 = vmatpush.msra.mxu0 %v2169
        %3331 = vmatpush.msra.mxu0 %v2166
        %3332 = vmatpush.msra.mxu0 %v2187
        %3333 = vmatpush.msra.mxu0 %v2184
        %3334 = vmatpush.msra.mxu0 %v2181
        %3335 = vmatpush.msra.mxu0 %v2178
        %3336 = vmatpush.msra.mxu0 %v2175
        %3337 = vmatpush.msra.mxu0 %v2172
        %3338 = vmatpush.msra.mxu0 %v2169
        %3339 = vmatpush.msra.mxu0 %v2166
        %3340 = vmatmul.f32.gmra.mxu0 %v3077
        %v3341 = vpop.f32.mrf.mxu0
        %v3342 = vadd.f32 %v3322, %v3341
        %3343 = vdwg.mxu0
        %v3344 = vmul.f32 %v3342, %v3168
        %v3345 = vadd.f32 %v3303, %v3344
        %3346 = vmatpush.msra.mxu0 %v2187
        %3347 = vmatpush.msra.mxu0 %v2184
        %3348 = vmatpush.msra.mxu0 %v2181
        %3349 = vmatpush.msra.mxu0 %v2178
        %3350 = vmatpush.msra.mxu0 %v2175
        %3351 = vmatpush.msra.mxu0 %v2172
        %3352 = vmatpush.msra.mxu0 %v2169
        %3353 = vmatpush.msra.mxu0 %v2166
        %3354 = vmatpush.msra.mxu0 %v2187
        %3355 = vmatpush.msra.mxu0 %v2184
        %3356 = vmatpush.msra.mxu0 %v2181
        %3357 = vmatpush.msra.mxu0 %v2178
        %3358 = vmatpush.msra.mxu0 %v2175
        %3359 = vmatpush.msra.mxu0 %v2172
        %3360 = vmatpush.msra.mxu0 %v2169
        %3361 = vmatpush.msra.mxu0 %v2166
        %3362 = vmatmul.f32.gmra.mxu0 %v3078
        %v3363 = vpop.f32.mrf.mxu0
        %v3364 = vadd.f32 0.0, %v3363
        %3365 = vdwg.mxu0
        %3366 = vmatpush.msra.mxu0 %v2187
        %3367 = vmatpush.msra.mxu0 %v2184
        %3368 = vmatpush.msra.mxu0 %v2181
        %3369 = vmatpush.msra.mxu0 %v2178
        %3370 = vmatpush.msra.mxu0 %v2175
        %3371 = vmatpush.msra.mxu0 %v2172
        %3372 = vmatpush.msra.mxu0 %v2169
        %3373 = vmatpush.msra.mxu0 %v2166
        %3374 = vmatpush.msra.mxu0 %v2187
        %3375 = vmatpush.msra.mxu0 %v2184
        %3376 = vmatpush.msra.mxu0 %v2181
        %3377 = vmatpush.msra.mxu0 %v2178
        %3378 = vmatpush.msra.mxu0 %v2175
        %3379 = vmatpush.msra.mxu0 %v2172
        %3380 = vmatpush.msra.mxu0 %v2169
        %3381 = vmatpush.msra.mxu0 %v2166
        %3382 = vmatmul.f32.gmra.mxu0 %v3079
        %v3383 = vpop.f32.mrf.mxu0
        %v3384 = vadd.f32 %v3364, %v3383
        %3385 = vdwg.mxu0
        %v3386 = vmul.f32 %v3384, %v3213
        %v3387 = vadd.f32 %v3345, %v3386
        %3388 = vmatpush.msra.mxu0 %v2187
        %3389 = vmatpush.msra.mxu0 %v2184
        %3390 = vmatpush.msra.mxu0 %v2181
        %3391 = vmatpush.msra.mxu0 %v2178
        %3392 = vmatpush.msra.mxu0 %v2175
        %3393 = vmatpush.msra.mxu0 %v2172
        %3394 = vmatpush.msra.mxu0 %v2169
        %3395 = vmatpush.msra.mxu0 %v2166
        %3396 = vmatpush.msra.mxu0 %v2187
        %3397 = vmatpush.msra.mxu0 %v2184
        %3398 = vmatpush.msra.mxu0 %v2181
        %3399 = vmatpush.msra.mxu0 %v2178
        %3400 = vmatpush.msra.mxu0 %v2175
        %3401 = vmatpush.msra.mxu0 %v2172
        %3402 = vmatpush.msra.mxu0 %v2169
        %3403 = vmatpush.msra.mxu0 %v2166
        %3404 = vmatmul.f32.gmra.mxu0 %v3080
        %v3405 = vpop.f32.mrf.mxu0
        %v3406 = vadd.f32 0.0, %v3405
        %3407 = vdwg.mxu0
        %3408 = vmatpush.msra.mxu0 %v2187
        %3409 = vmatpush.msra.mxu0 %v2184
        %3410 = vmatpush.msra.mxu0 %v2181
        %3411 = vmatpush.msra.mxu0 %v2178
        %3412 = vmatpush.msra.mxu0 %v2175
        %3413 = vmatpush.msra.mxu0 %v2172
        %3414 = vmatpush.msra.mxu0 %v2169
        %3415 = vmatpush.msra.mxu0 %v2166
        %3416 = vmatpush.msra.mxu0 %v2187
        %3417 = vmatpush.msra.mxu0 %v2184
        %3418 = vmatpush.msra.mxu0 %v2181
        %3419 = vmatpush.msra.mxu0 %v2178
        %3420 = vmatpush.msra.mxu0 %v2175
        %3421 = vmatpush.msra.mxu0 %v2172
        %3422 = vmatpush.msra.mxu0 %v2169
        %3423 = vmatpush.msra.mxu0 %v2166
        %3424 = vmatmul.f32.gmra.mxu0 %v3081
        %v3425 = vpop.f32.mrf.mxu0
        %v3426 = vadd.f32 %v3406, %v3425
        %3427 = vdwg.mxu0
        %v3428 = vmul.f32 %v3426, %v3258
        %v3429 = vadd.f32 %v3387, %v3428
        %v3430 = vld [vmem:[%s27] sm:$0xff]
        %v3431 = vld [vmem:[%s27 + $0x8] sm:$0xff]
        %v3432 = vld [vmem:[%s27 + $0x10] sm:$0xff]
        %v3433 = vld [vmem:[%s27 + $0x18] sm:$0xff]
        %v3434 = vld [vmem:[%s27 + $0x20] sm:$0xff]
        %v3435 = vld [vmem:[%s27 + $0x28] sm:$0xff]
        %v3436 = vld [vmem:[%s27 + $0x30] sm:$0xff]
        %v3437 = vld [vmem:[%s27 + $0x38] sm:$0xff]
        %3438 = vmatpush.msra.mxu0 0.0
        %3439 = vmatpush.msra.mxu0 0.0
        %3440 = vmatpush.msra.mxu0 0.0
        %3441 = vmatpush.msra.mxu0 0.0
        %3442 = vmatpush.msra.mxu0 0.0
        %3443 = vmatpush.msra.mxu0 0.0
        %3444 = vmatpush.msra.mxu0 0.0
        %3445 = vmatpush.msra.mxu0 0.0
        %3446 = vmatpush.msra.mxu0 0.0
        %3447 = vmatpush.msra.mxu0 0.0
        %3448 = vmatpush.msra.mxu0 0.0
        %3449 = vmatpush.msra.mxu0 0.0
        %3450 = vmatpush.msra.mxu0 %v3436
        %3451 = vmatpush.msra.mxu0 %v3434
        %3452 = vmatpush.msra.mxu0 %v3432
        %3453 = vmatpush.msra.mxu0 %v3430
        %3454 = vmatmul.f32.gmra.mxu0 %v2313
        %v3455 = vpop.f32.mrf.mxu0
        %v3456 = vadd.f32 0.0, %v3455
        %3457 = vmatmul.f32.gmra.mxu0 %v2316
        %v3458 = vpop.f32.mrf.mxu0
        %v3459 = vadd.f32 0.0, %v3458
        %3460 = vdwg.mxu0
        %3461 = vmatpush.msra.mxu0 0.0
        %3462 = vmatpush.msra.mxu0 0.0
        %3463 = vmatpush.msra.mxu0 0.0
        %3464 = vmatpush.msra.mxu0 0.0
        %3465 = vmatpush.msra.mxu0 0.0
        %3466 = vmatpush.msra.mxu0 0.0
        %3467 = vmatpush.msra.mxu0 0.0
        %3468 = vmatpush.msra.mxu0 0.0
        %3469 = vmatpush.msra.mxu0 0.0
        %3470 = vmatpush.msra.mxu0 0.0
        %3471 = vmatpush.msra.mxu0 0.0
        %3472 = vmatpush.msra.mxu0 0.0
        %3473 = vmatpush.msra.mxu0 %v3437
        %3474 = vmatpush.msra.mxu0 %v3435
        %3475 = vmatpush.msra.mxu0 %v3433
        %3476 = vmatpush.msra.mxu0 %v3431
        %3477 = vmatmul.f32.gmra.mxu0 %v2313
        %v3478 = vpop.f32.mrf.mxu0
        %v3479 = vadd.f32 0.0, %v3478
        %3480 = vmatmul.f32.gmra.mxu0 %v2316
        %v3481 = vpop.f32.mrf.mxu0
        %v3482 = vadd.f32 0.0, %v3481
        %3483 = vdwg.mxu0
        %3484 = vmatpush.msra.mxu0 0.0
        %3485 = vmatpush.msra.mxu0 0.0
        %3486 = vmatpush.msra.mxu0 0.0
        %3487 = vmatpush.msra.mxu0 0.0
        %3488 = vmatpush.msra.mxu0 0.0
        %3489 = vmatpush.msra.mxu0 0.0
        %3490 = vmatpush.msra.mxu0 0.0
        %3491 = vmatpush.msra.mxu0 0.0
        %3492 = vmatpush.msra.mxu0 0.0
        %3493 = vmatpush.msra.mxu0 0.0
        %3494 = vmatpush.msra.mxu0 0.0
        %3495 = vmatpush.msra.mxu0 0.0
        %3496 = vmatpush.msra.mxu0 %v3436
        %3497 = vmatpush.msra.mxu0 %v3434
        %3498 = vmatpush.msra.mxu0 %v3432
        %3499 = vmatpush.msra.mxu0 %v3430
        %3500 = vmatmul.f32.gmra.mxu0 %v2503
        %v3501 = vpop.f32.mrf.mxu0
        %v3502 = vadd.f32 0.0, %v3501
        %3503 = vmatmul.f32.gmra.mxu0 %v2506
        %v3504 = vpop.f32.mrf.mxu0
        %v3505 = vadd.f32 0.0, %v3504
        %3506 = vdwg.mxu0
        %3507 = vmatpush.msra.mxu0 0.0
        %3508 = vmatpush.msra.mxu0 0.0
        %3509 = vmatpush.msra.mxu0 0.0
        %3510 = vmatpush.msra.mxu0 0.0
        %3511 = vmatpush.msra.mxu0 0.0
        %3512 = vmatpush.msra.mxu0 0.0
        %3513 = vmatpush.msra.mxu0 0.0
        %3514 = vmatpush.msra.mxu0 0.0
        %3515 = vmatpush.msra.mxu0 0.0
        %3516 = vmatpush.msra.mxu0 0.0
        %3517 = vmatpush.msra.mxu0 0.0
        %3518 = vmatpush.msra.mxu0 0.0
        %3519 = vmatpush.msra.mxu0 %v3437
        %3520 = vmatpush.msra.mxu0 %v3435
        %3521 = vmatpush.msra.mxu0 %v3433
        %3522 = vmatpush.msra.mxu0 %v3431
        %3523 = vmatmul.f32.gmra.mxu0 %v2503
        %v3524 = vpop.f32.mrf.mxu0
        %v3525 = vadd.f32 0.0, %v3524
        %3526 = vmatmul.f32.gmra.mxu0 %v2506
        %v3527 = vpop.f32.mrf.mxu0
        %v3528 = vadd.f32 0.0, %v3527
        %3529 = vdwg.mxu0
        %3530 = vmatpush.msra.mxu0 0.0
        %3531 = vmatpush.msra.mxu0 0.0
        %3532 = vmatpush.msra.mxu0 0.0
        %3533 = vmatpush.msra.mxu0 0.0
        %3534 = vmatpush.msra.mxu0 0.0
        %3535 = vmatpush.msra.mxu0 0.0
        %3536 = vmatpush.msra.mxu0 0.0
        %3537 = vmatpush.msra.mxu0 0.0
        %3538 = vmatpush.msra.mxu0 0.0
        %3539 = vmatpush.msra.mxu0 0.0
        %3540 = vmatpush.msra.mxu0 0.0
        %3541 = vmatpush.msra.mxu0 0.0
        %3542 = vmatpush.msra.mxu0 %v3436
        %3543 = vmatpush.msra.mxu0 %v3434
        %3544 = vmatpush.msra.mxu0 %v3432
        %3545 = vmatpush.msra.mxu0 %v3430
        %3546 = vmatmul.f32.gmra.mxu0 %v2698
        %v3547 = vpop.f32.mrf.mxu0
        %v3548 = vadd.f32 0.0, %v3547
        %3549 = vmatmul.f32.gmra.mxu0 %v2700
        %v3550 = vpop.f32.mrf.mxu0
        %v3551 = vadd.f32 0.0, %v3550
        %3552 = vdwg.mxu0
        %3553 = vmatpush.msra.mxu0 0.0
        %3554 = vmatpush.msra.mxu0 0.0
        %3555 = vmatpush.msra.mxu0 0.0
        %3556 = vmatpush.msra.mxu0 0.0
        %3557 = vmatpush.msra.mxu0 0.0
        %3558 = vmatpush.msra.mxu0 0.0
        %3559 = vmatpush.msra.mxu0 0.0
        %3560 = vmatpush.msra.mxu0 0.0
        %3561 = vmatpush.msra.mxu0 0.0
        %3562 = vmatpush.msra.mxu0 0.0
        %3563 = vmatpush.msra.mxu0 0.0
        %3564 = vmatpush.msra.mxu0 0.0
        %3565 = vmatpush.msra.mxu0 %v3437
        %3566 = vmatpush.msra.mxu0 %v3435
        %3567 = vmatpush.msra.mxu0 %v3433
        %3568 = vmatpush.msra.mxu0 %v3431
        %3569 = vmatmul.f32.gmra.mxu0 %v2698
        %v3570 = vpop.f32.mrf.mxu0
        %v3571 = vadd.f32 0.0, %v3570
        %3572 = vmatmul.f32.gmra.mxu0 %v2700
        %v3573 = vpop.f32.mrf.mxu0
        %v3574 = vadd.f32 0.0, %v3573
        %3575 = vdwg.mxu0
        %v3576 = vld [vmem:[%s29] sm:$0x3]
        %v3578 = vperm.slane %v3576, 0
        %v3579 = vperm.slane %v3576, 1
        %v3582 = vsub.f32 %v3578, %v3456
        %v3583 = vsub.f32 %v3579, %v3479
        %v3584 = vsub.f32 %v3578, %v3459
        %v3585 = vsub.f32 %v3579, %v3482
        %v3586 = vand.u32 2147483647, %v3582
        %v3587 = vand.u32 2147483647, %v3583
        %v3588 = vand.u32 2147483647, %v3584
        %v3589 = vand.u32 2147483647, %v3585
        %v3590 = vsub.f32 1.0, %v3586
        %v3591 = vsub.f32 1.0, %v3587
        %v3592 = vsub.f32 1.0, %v3588
        %v3593 = vsub.f32 1.0, %v3589
        %v3594 = vmax.f32 %v3590, 0.0
        %v3595 = vmax.f32 %v3591, 0.0
        %v3596 = vmax.f32 %v3592, 0.0
        %v3597 = vmax.f32 %v3593, 0.0
        %v3598 = vld [vmem:[%s31] sm:$0x3]
        %v3600 = vperm.slane %v3598, 0
        %v3601 = vperm.slane %v3598, 1
        %v3604 = vsub.f32 %v3600, %v3502
        %v3605 = vsub.f32 %v3601, %v3525
        %v3606 = vsub.f32 %v3600, %v3505
        %v3607 = vsub.f32 %v3601, %v3528
        %v3608 = vand.u32 2147483647, %v3604
        %v3609 = vand.u32 2147483647, %v3605
        %v3610 = vand.u32 2147483647, %v3606
        %v3611 = vand.u32 2147483647, %v3607
        %v3612 = vsub.f32 1.0, %v3608
        %v3613 = vsub.f32 1.0, %v3609
        %v3614 = vsub.f32 1.0, %v3610
        %v3615 = vsub.f32 1.0, %v3611
        %v3616 = vmax.f32 %v3612, 0.0
        %v3617 = vmax.f32 %v3613, 0.0
        %v3618 = vmax.f32 %v3614, 0.0
        %v3619 = vmax.f32 %v3615, 0.0
        %v3620 = vmul.f32 %v3594, %v3616
        %v3621 = vmul.f32 %v3595, %v3617
        %v3622 = vmul.f32 %v3596, %v3618
        %v3623 = vmul.f32 %v3597, %v3619
        %v3624 = vmul.f32 %v3620, %v3548
        %v3625 = vmul.f32 %v3621, %v3571
        %v3626 = vmul.f32 %v3622, %v3551
        %v3627 = vmul.f32 %v3623, %v3574
        %v3629 = vsel %vm1742, %v3624, 0
        %3631 = vmatpush.msra.mxu0 0.0
        %3632 = vmatpush.msra.mxu0 0.0
        %3633 = vmatpush.msra.mxu0 0.0
        %3634 = vmatpush.msra.mxu0 0.0
        %3635 = vmatpush.msra.mxu0 0.0
        %3636 = vmatpush.msra.mxu0 0.0
        %3637 = vmatpush.msra.mxu0 0.0
        %3638 = vmatpush.msra.mxu0 0.0
        %3639 = vmatpush.msra.mxu0 %v2163
        %3640 = vmatpush.msra.mxu0 %v2160
        %3641 = vmatpush.msra.mxu0 %v2163
        %3642 = vmatpush.msra.mxu0 %v2160
        %3643 = vmatpush.msra.mxu0 %v2163
        %3644 = vmatpush.msra.mxu0 %v2160
        %3645 = vmatpush.msra.mxu0 %v2163
        %3646 = vmatpush.msra.mxu0 %v2160
        %3647 = vmatmul.f32.gmra.mxu0 %v3629
        %v3648 = vpop.f32.mrf.mxu0
        %v3649 = vadd.f32 0.0, %v3648
        %3650 = vdwg.mxu0
        %v3651 = vmul.f32 %v3649, %v3123
        %v3652 = vadd.f32 %v3261, %v3651
        %3653 = vrot.lane.b32.xlu0 %v3624, 64
        %v3654 = vpop.permute.xlu0 %3653
        %v3655 = vsel %vm1742, %v3654, 0
        %3657 = vmatpush.msra.mxu0 0.0
        %3658 = vmatpush.msra.mxu0 0.0
        %3659 = vmatpush.msra.mxu0 0.0
        %3660 = vmatpush.msra.mxu0 0.0
        %3661 = vmatpush.msra.mxu0 0.0
        %3662 = vmatpush.msra.mxu0 0.0
        %3663 = vmatpush.msra.mxu0 0.0
        %3664 = vmatpush.msra.mxu0 0.0
        %3665 = vmatpush.msra.mxu0 %v2163
        %3666 = vmatpush.msra.mxu0 %v2160
        %3667 = vmatpush.msra.mxu0 %v2163
        %3668 = vmatpush.msra.mxu0 %v2160
        %3669 = vmatpush.msra.mxu0 %v2163
        %3670 = vmatpush.msra.mxu0 %v2160
        %3671 = vmatpush.msra.mxu0 %v2163
        %3672 = vmatpush.msra.mxu0 %v2160
        %3673 = vmatmul.f32.gmra.mxu0 %v3655
        %v3674 = vpop.f32.mrf.mxu0
        %v3675 = vadd.f32 0.0, %v3674
        %3676 = vdwg.mxu0
        %v3677 = vmul.f32 %v3675, %v3168
        %v3678 = vadd.f32 %v3652, %v3677
        %v3680 = vsel %vm1742, %v3625, 0
        %3682 = vmatpush.msra.mxu0 0.0
        %3683 = vmatpush.msra.mxu0 0.0
        %3684 = vmatpush.msra.mxu0 0.0
        %3685 = vmatpush.msra.mxu0 0.0
        %3686 = vmatpush.msra.mxu0 0.0
        %3687 = vmatpush.msra.mxu0 0.0
        %3688 = vmatpush.msra.mxu0 0.0
        %3689 = vmatpush.msra.mxu0 0.0
        %3690 = vmatpush.msra.mxu0 %v2163
        %3691 = vmatpush.msra.mxu0 %v2160
        %3692 = vmatpush.msra.mxu0 %v2163
        %3693 = vmatpush.msra.mxu0 %v2160
        %3694 = vmatpush.msra.mxu0 %v2163
        %3695 = vmatpush.msra.mxu0 %v2160
        %3696 = vmatpush.msra.mxu0 %v2163
        %3697 = vmatpush.msra.mxu0 %v2160
        %3698 = vmatmul.f32.gmra.mxu0 %v3680
        %v3699 = vpop.f32.mrf.mxu0
        %v3700 = vadd.f32 0.0, %v3699
        %3701 = vdwg.mxu0
        %v3702 = vmul.f32 %v3700, %v3213
        %v3703 = vadd.f32 %v3678, %v3702
        %3704 = vrot.lane.b32.xlu0 %v3625, 64
        %v3705 = vpop.permute.xlu0 %3704
        %v3706 = vsel %vm1742, %v3705, 0
        %3708 = vmatpush.msra.mxu0 0.0
        %3709 = vmatpush.msra.mxu0 0.0
        %3710 = vmatpush.msra.mxu0 0.0
        %3711 = vmatpush.msra.mxu0 0.0
        %3712 = vmatpush.msra.mxu0 0.0
        %3713 = vmatpush.msra.mxu0 0.0
        %3714 = vmatpush.msra.mxu0 0.0
        %3715 = vmatpush.msra.mxu0 0.0
        %3716 = vmatpush.msra.mxu0 %v2163
        %3717 = vmatpush.msra.mxu0 %v2160
        %3718 = vmatpush.msra.mxu0 %v2163
        %3719 = vmatpush.msra.mxu0 %v2160
        %3720 = vmatpush.msra.mxu0 %v2163
        %3721 = vmatpush.msra.mxu0 %v2160
        %3722 = vmatpush.msra.mxu0 %v2163
        %3723 = vmatpush.msra.mxu0 %v2160
        %3724 = vmatmul.f32.gmra.mxu0 %v3706
        %v3725 = vpop.f32.mrf.mxu0
        %v3726 = vadd.f32 0.0, %v3725
        %3727 = vdwg.mxu0
        %v3728 = vmul.f32 %v3726, %v3258
        %v3729 = vadd.f32 %v3703, %v3728
        %v3731 = vsel %vm1742, %v3626, 0
        %3733 = vmatpush.msra.mxu0 0.0
        %3734 = vmatpush.msra.mxu0 0.0
        %3735 = vmatpush.msra.mxu0 0.0
        %3736 = vmatpush.msra.mxu0 0.0
        %3737 = vmatpush.msra.mxu0 0.0
        %3738 = vmatpush.msra.mxu0 0.0
        %3739 = vmatpush.msra.mxu0 0.0
        %3740 = vmatpush.msra.mxu0 0.0
        %3741 = vmatpush.msra.mxu0 %v2193
        %3742 = vmatpush.msra.mxu0 %v2190
        %3743 = vmatpush.msra.mxu0 %v2193
        %3744 = vmatpush.msra.mxu0 %v2190
        %3745 = vmatpush.msra.mxu0 %v2193
        %3746 = vmatpush.msra.mxu0 %v2190
        %3747 = vmatpush.msra.mxu0 %v2193
        %3748 = vmatpush.msra.mxu0 %v2190
        %3749 = vmatmul.f32.gmra.mxu0 %v3731
        %v3750 = vpop.f32.mrf.mxu0
        %v3751 = vadd.f32 0.0, %v3750
        %3752 = vdwg.mxu0
        %v3753 = vmul.f32 %v3751, %v3123
        %v3754 = vadd.f32 %v3429, %v3753
        %3755 = vrot.lane.b32.xlu0 %v3626, 64
        %v3756 = vpop.permute.xlu0 %3755
        %v3757 = vsel %vm1742, %v3756, 0
        %3759 = vmatpush.msra.mxu0 0.0
        %3760 = vmatpush.msra.mxu0 0.0
        %3761 = vmatpush.msra.mxu0 0.0
        %3762 = vmatpush.msra.mxu0 0.0
        %3763 = vmatpush.msra.mxu0 0.0
        %3764 = vmatpush.msra.mxu0 0.0
        %3765 = vmatpush.msra.mxu0 0.0
        %3766 = vmatpush.msra.mxu0 0.0
        %3767 = vmatpush.msra.mxu0 %v2193
        %3768 = vmatpush.msra.mxu0 %v2190
        %3769 = vmatpush.msra.mxu0 %v2193
        %3770 = vmatpush.msra.mxu0 %v2190
        %3771 = vmatpush.msra.mxu0 %v2193
        %3772 = vmatpush.msra.mxu0 %v2190
        %3773 = vmatpush.msra.mxu0 %v2193
        %3774 = vmatpush.msra.mxu0 %v2190
        %3775 = vmatmul.f32.gmra.mxu0 %v3757
        %v3776 = vpop.f32.mrf.mxu0
        %v3777 = vadd.f32 0.0, %v3776
        %3778 = vdwg.mxu0
        %v3779 = vmul.f32 %v3777, %v3168
        %v3780 = vadd.f32 %v3754, %v3779
        %v3782 = vsel %vm1742, %v3627, 0
        %3784 = vmatpush.msra.mxu0 0.0
        %3785 = vmatpush.msra.mxu0 0.0
        %3786 = vmatpush.msra.mxu0 0.0
        %3787 = vmatpush.msra.mxu0 0.0
        %3788 = vmatpush.msra.mxu0 0.0
        %3789 = vmatpush.msra.mxu0 0.0
        %3790 = vmatpush.msra.mxu0 0.0
        %3791 = vmatpush.msra.mxu0 0.0
        %3792 = vmatpush.msra.mxu0 %v2193
        %3793 = vmatpush.msra.mxu0 %v2190
        %3794 = vmatpush.msra.mxu0 %v2193
        %3795 = vmatpush.msra.mxu0 %v2190
        %3796 = vmatpush.msra.mxu0 %v2193
        %3797 = vmatpush.msra.mxu0 %v2190
        %3798 = vmatpush.msra.mxu0 %v2193
        %3799 = vmatpush.msra.mxu0 %v2190
        %3800 = vmatmul.f32.gmra.mxu0 %v3782
        %v3801 = vpop.f32.mrf.mxu0
        %v3802 = vadd.f32 0.0, %v3801
        %3803 = vdwg.mxu0
        %v3804 = vmul.f32 %v3802, %v3213
        %v3805 = vadd.f32 %v3780, %v3804
        %3806 = vrot.lane.b32.xlu0 %v3627, 64
        %v3807 = vpop.permute.xlu0 %3806
        %v3808 = vsel %vm1742, %v3807, 0
        %3810 = vmatpush.msra.mxu0 0.0
        %3811 = vmatpush.msra.mxu0 0.0
        %3812 = vmatpush.msra.mxu0 0.0
        %3813 = vmatpush.msra.mxu0 0.0
        %3814 = vmatpush.msra.mxu0 0.0
        %3815 = vmatpush.msra.mxu0 0.0
        %3816 = vmatpush.msra.mxu0 0.0
        %3817 = vmatpush.msra.mxu0 0.0
        %3818 = vmatpush.msra.mxu0 %v2193
        %3819 = vmatpush.msra.mxu0 %v2190
        %3820 = vmatpush.msra.mxu0 %v2193
        %3821 = vmatpush.msra.mxu0 %v2190
        %3822 = vmatpush.msra.mxu0 %v2193
        %3823 = vmatpush.msra.mxu0 %v2190
        %3824 = vmatpush.msra.mxu0 %v2193
        %3825 = vmatpush.msra.mxu0 %v2190
        %3826 = vmatmul.f32.gmra.mxu0 %v3808
        %v3827 = vpop.f32.mrf.mxu0
        %v3828 = vadd.f32 0.0, %v3827
        %3829 = vdwg.mxu0
        %v3830 = vmul.f32 %v3828, %v3258
        %v3831 = vadd.f32 %v3805, %v3830
        %3832 = vst.msk [vmem:[#allocation3] sm:$0xff] %vm1504, %v3729
        %3833 = vst.msk [vmem:[#allocation3 + $0x8] sm:$0xff] %vm1504, %v3831
        %v3834 = vld [vmem:[#allocation3] sm:$0xff]
        %v3835 = vld [vmem:[#allocation3 + $0x8] sm:$0xff]
        %v3836 = vld [vmem:[%s1445] sm:$0xff]
        %v3837 = vld [vmem:[%s1445 + $0x8] sm:$0xff]
        %v3838 = vld [vmem:[%s1445 + $0x10] sm:$0xff]
        %v3839 = vld [vmem:[%s1445 + $0x18] sm:$0xff]
        %v3840 = vld [vmem:[%s1448] sm:$0x1]
        %v3842 = vperm.slane %v3840, 0
        %v3845 = vsel %vm1504, %v3834, 0
        %v3848 = vsel %vm1504, %v3835, 0
        %v3851 = vsel %vm1504, %v3836, 0
        %v3854 = vsel %vm1504, %v3837, 0
        %v3857 = vsel %vm1504, %v3838, 0
        %v3860 = vsel %vm1504, %v3839, 0
        %3862 = vmatpush.xpose.msra.mxu0 0.0
        %3863 = vmatpush.xpose.msra.mxu0 0.0
        %3864 = vmatpush.xpose.msra.mxu0 0.0
        %3865 = vmatpush.xpose.msra.mxu0 0.0
        %3866 = vmatpush.xpose.msra.mxu0 0.0
        %3867 = vmatpush.xpose.msra.mxu0 0.0
        %3868 = vmatpush.xpose.msra.mxu0 0.0
        %3869 = vmatpush.xpose.msra.mxu0 0.0
        %3870 = vmatpush.xpose.msra.mxu0 0.0
        %3871 = vmatpush.xpose.msra.mxu0 0.0
        %3872 = vmatpush.xpose.msra.mxu0 0.0
        %3873 = vmatpush.xpose.msra.mxu0 0.0
        %3874 = vmatpush.xpose.msra.mxu0 %v3860
        %3875 = vmatpush.xpose.msra.mxu0 %v3857
        %3876 = vmatpush.xpose.msra.mxu0 %v3854
        %3877 = vmatpush.xpose.msra.mxu0 %v3851
        %3878 = vmatmul.f32.gmra.mxu0 %v3845
        %v3879 = vpop.f32.mrf.mxu0
        %v3880 = vadd.f32 %v3842, %v3879
        %3881 = vmatmul.f32.gmra.mxu0 %v3848
        %v3882 = vpop.f32.mrf.mxu0
        %v3883 = vadd.f32 %v3842, %v3882
        %3884 = vdwg.mxu0
        %v3885 = vadd.f32 %v1933, %v3880
        %v3886 = vadd.f32 %v1934, %v3883
        %v3887 = vld [vmem:[%s1451] sm:$0x1]
        %v3888 = vld [vmem:[%s1454] sm:$0x1]
        %v3889 = vsel %vm1504, %v3885, 0.0
        %3890 = vadd.xlane.f32.xlu0 %v3889
        %v3891 = vpop.xlane.xlu0 %3890
        %v3892 = vsel %vm1504, %v3886, 0.0
        %3893 = vadd.xlane.f32.xlu0 %v3892
        %v3894 = vpop.xlane.xlu0 %3893
        %v3895 = vmul.f32 %v3891, %v1886
        %v3896 = vmul.f32 %v3894, %v1886
        %v3897 = vsub.f32 %v3885, %v3895
        %v3898 = vsub.f32 %v3886, %v3896
        %v3899 = vmul.f32 %v3897, %v3897
        %v3900 = vmul.f32 %v3898, %v3898
        %v3901 = vsel %vm1504, %v3899, 0.0
        %3902 = vadd.xlane.f32.xlu0 %v3901
        %v3903 = vpop.xlane.xlu0 %3902
        %v3904 = vsel %vm1504, %v3900, 0.0
        %3905 = vadd.xlane.f32.xlu0 %v3904
        %v3906 = vpop.xlane.xlu0 %3905
        %v3907 = vmul.f32 %v3903, %v1886
        %v3908 = vmul.f32 %v3906, %v1886
        %v3909 = vadd.f32 %v3907, 1e-05
        %v3910 = vadd.f32 %v3908, 1e-05
        %v3911 = vrsqrt.pop %v3909
        %v3912 = vmul.f32 %v3911, %v3909
        %v3913 = vmul.f32 %v3912, %v3911
        %v3914 = vmul.f32 0.5, %v3913
        %v3915 = vsub.f32 1.5, %v3914
        %v3916 = vmul.f32 %v3911, %v3915
        %vm3917 = vweird.f32 %v3909
        %vm3918 = vweird.f32 %v3911
        %vm3919 = vmor %vm3917, %vm3918
        %v3920 = vsel %vm3919, %v3911, %v3916
        %v3921 = vrsqrt.pop %v3910
        %v3922 = vmul.f32 %v3921, %v3910
        %v3923 = vmul.f32 %v3922, %v3921
        %v3924 = vmul.f32 0.5, %v3923
        %v3925 = vsub.f32 1.5, %v3924
        %v3926 = vmul.f32 %v3921, %v3925
        %vm3927 = vweird.f32 %v3910
        %vm3928 = vweird.f32 %v3921
        %vm3929 = vmor %vm3927, %vm3928
        %v3930 = vsel %vm3929, %v3921, %v3926
        %v3931 = vmul.f32 %v3897, %v3920
        %v3932 = vmul.f32 %v3898, %v3930
        %v3934 = vperm.slane %v3887, 0
        %v3936 = vmul.f32 %v3931, %v3934
        %v3937 = vmul.f32 %v3932, %v3934
        %v3939 = vperm.slane %v3888, 0
        %v3941 = vadd.f32 %v3936, %v3939
        %v3942 = vadd.f32 %v3937, %v3939
        %v3943 = vld [vmem:[%s1459] sm:$0xff]
        %v3944 = vld [vmem:[%s1459 + $0x8] sm:$0xff]
        %v3945 = vld [vmem:[%s1459 + $0x10] sm:$0xff]
        %v3946 = vld [vmem:[%s1459 + $0x18] sm:$0xff]
        %v3947 = vld [vmem:[%s1459 + $0x20] sm:$0xff]
        %v3948 = vld [vmem:[%s1459 + $0x28] sm:$0xff]
        %v3949 = vld [vmem:[%s1459 + $0x30] sm:$0xff]
        %v3950 = vld [vmem:[%s1459 + $0x38] sm:$0xff]
        %v3951 = vld [vmem:[%s1462] sm:$0x1]
        %v3953 = vperm.slane %v3951, 0
        %v3956 = vsel %vm1504, %v3941, 0
        %v3959 = vsel %vm1504, %v3942, 0
        %v3962 = vsel %vm1504, %v3943, 0
        %v3965 = vsel %vm1504, %v3944, 0
        %v3968 = vsel %vm1504, %v3945, 0
        %v3971 = vsel %vm1504, %v3946, 0
        %v3974 = vsel %vm1504, %v3947, 0
        %v3977 = vsel %vm1504, %v3948, 0
        %v3980 = vsel %vm1504, %v3949, 0
        %v3983 = vsel %vm1504, %v3950, 0
        %3985 = vmatpush.xpose.msra.mxu0 0.0
        %3986 = vmatpush.xpose.msra.mxu0 0.0
        %3987 = vmatpush.xpose.msra.mxu0 0.0
        %3988 = vmatpush.xpose.msra.mxu0 0.0
        %3989 = vmatpush.xpose.msra.mxu0 0.0
        %3990 = vmatpush.xpose.msra.mxu0 0.0
        %3991 = vmatpush.xpose.msra.mxu0 0.0
        %3992 = vmatpush.xpose.msra.mxu0 0.0
        %3993 = vmatpush.xpose.msra.mxu0 %v3983
        %3994 = vmatpush.xpose.msra.mxu0 %v3980
        %3995 = vmatpush.xpose.msra.mxu0 %v3977
        %3996 = vmatpush.xpose.msra.mxu0 %v3974
        %3997 = vmatpush.xpose.msra.mxu0 %v3971
        %3998 = vmatpush.xpose.msra.mxu0 %v3968
        %3999 = vmatpush.xpose.msra.mxu0 %v3965
        %4000 = vmatpush.xpose.msra.mxu0 %v3962
        %4001 = vmatmul.f32.gmra.mxu0 %v3956
        %v4002 = vpop.f32.mrf.mxu0
        %v4003 = vadd.f32 %v3953, %v4002
        %4004 = vmatmul.f32.gmra.mxu0 %v3959
        %v4005 = vpop.f32.mrf.mxu0
        %v4006 = vadd.f32 %v3953, %v4005
        %4007 = vdwg.mxu0
        %v4008 = vmax.f32 %v4003, 0.0
        %v4009 = vmax.f32 %v4006, 0.0
        %v4010 = vld [vmem:[%s1467] sm:$0xff]
        %v4011 = vld [vmem:[%s1467 + $0x8] sm:$0xff]
        %v4012 = vld [vmem:[%s1467 + $0x10] sm:$0xff]
        %v4013 = vld [vmem:[%s1467 + $0x18] sm:$0xff]
        %v4014 = vld [vmem:[%s1470] sm:$0x1]
        %v4016 = vperm.slane %v4014, 0
        %v4019 = vsel %vm1742, %v4008, 0
        %v4022 = vsel %vm1742, %v4009, 0
        %v4025 = vsel %vm1742, %v4010, 0
        %v4028 = vsel %vm1742, %v4011, 0
        %v4031 = vsel %vm1742, %v4012, 0
        %v4034 = vsel %vm1742, %v4013, 0
        %4036 = vmatpush.xpose.msra.mxu0 0.0
        %4037 = vmatpush.xpose.msra.mxu0 0.0
        %4038 = vmatpush.xpose.msra.mxu0 0.0
        %4039 = vmatpush.xpose.msra.mxu0 0.0
        %4040 = vmatpush.xpose.msra.mxu0 0.0
        %4041 = vmatpush.xpose.msra.mxu0 0.0
        %4042 = vmatpush.xpose.msra.mxu0 0.0
        %4043 = vmatpush.xpose.msra.mxu0 0.0
        %4044 = vmatpush.xpose.msra.mxu0 0.0
        %4045 = vmatpush.xpose.msra.mxu0 0.0
        %4046 = vmatpush.xpose.msra.mxu0 0.0
        %4047 = vmatpush.xpose.msra.mxu0 0.0
        %4048 = vmatpush.xpose.msra.mxu0 %v4034
        %4049 = vmatpush.xpose.msra.mxu0 %v4031
        %4050 = vmatpush.xpose.msra.mxu0 %v4028
        %4051 = vmatpush.xpose.msra.mxu0 %v4025
        %4052 = vmatmul.f32.gmra.mxu0 %v4019
        %v4053 = vpop.f32.mrf.mxu0
        %v4054 = vadd.f32 %v4016, %v4053
        %4055 = vmatmul.f32.gmra.mxu0 %v4022
        %v4056 = vpop.f32.mrf.mxu0
        %v4057 = vadd.f32 %v4016, %v4056
        %4058 = vdwg.mxu0
        %v4059 = vadd.f32 %v3941, %v4054
        %v4060 = vadd.f32 %v3942, %v4057
        %v4061 = vld [vmem:[%s1473] sm:$0x1]
        %v4062 = vld [vmem:[%s1476] sm:$0x1]
        %v4063 = vsel %vm1504, %v4059, 0.0
        %4064 = vadd.xlane.f32.xlu0 %v4063
        %v4065 = vpop.xlane.xlu0 %4064
        %v4066 = vsel %vm1504, %v4060, 0.0
        %4067 = vadd.xlane.f32.xlu0 %v4066
        %v4068 = vpop.xlane.xlu0 %4067
        %v4069 = vmul.f32 %v4065, %v1886
        %v4070 = vmul.f32 %v4068, %v1886
        %v4071 = vsub.f32 %v4059, %v4069
        %v4072 = vsub.f32 %v4060, %v4070
        %v4073 = vmul.f32 %v4071, %v4071
        %v4074 = vmul.f32 %v4072, %v4072
        %v4075 = vsel %vm1504, %v4073, 0.0
        %4076 = vadd.xlane.f32.xlu0 %v4075
        %v4077 = vpop.xlane.xlu0 %4076
        %v4078 = vsel %vm1504, %v4074, 0.0
        %4079 = vadd.xlane.f32.xlu0 %v4078
        %v4080 = vpop.xlane.xlu0 %4079
        %v4081 = vmul.f32 %v4077, %v1886
        %v4082 = vmul.f32 %v4080, %v1886
        %v4083 = vadd.f32 %v4081, 1e-05
        %v4084 = vadd.f32 %v4082, 1e-05
        %v4085 = vrsqrt.pop %v4083
        %v4086 = vmul.f32 %v4085, %v4083
        %v4087 = vmul.f32 %v4086, %v4085
        %v4088 = vmul.f32 0.5, %v4087
        %v4089 = vsub.f32 1.5, %v4088
        %v4090 = vmul.f32 %v4085, %v4089
        %vm4091 = vweird.f32 %v4083
        %vm4092 = vweird.f32 %v4085
        %vm4093 = vmor %vm4091, %vm4092
        %v4094 = vsel %vm4093, %v4085, %v4090
        %v4095 = vrsqrt.pop %v4084
        %v4096 = vmul.f32 %v4095, %v4084
        %v4097 = vmul.f32 %v4096, %v4095
        %v4098 = vmul.f32 0.5, %v4097
        %v4099 = vsub.f32 1.5, %v4098
        %v4100 = vmul.f32 %v4095, %v4099
        %vm4101 = vweird.f32 %v4084
        %vm4102 = vweird.f32 %v4095
        %vm4103 = vmor %vm4101, %vm4102
        %v4104 = vsel %vm4103, %v4095, %v4100
        %v4105 = vmul.f32 %v4071, %v4094
        %v4106 = vmul.f32 %v4072, %v4104
        %v4108 = vperm.slane %v4061, 0
        %v4110 = vmul.f32 %v4105, %v4108
        %v4111 = vmul.f32 %v4106, %v4108
        %v4113 = vperm.slane %v4062, 0
        %v4115 = vadd.f32 %v4110, %v4113
        %v4116 = vadd.f32 %v4111, %v4113
        %4117 = vst.msk [vmem:[#allocation2] sm:$0xff] %vm1504, %v4115
        %4118 = vst.msk [vmem:[#allocation2 + $0x8] sm:$0xff] %vm1504, %v4116
        %4119 = vst.msk [vmem:[#allocation4] sm:$0xff] %vm1504, %v4115
        %4120 = vst.msk [vmem:[#allocation4 + $0x8] sm:$0xff] %vm1504, %v4116
        // Predicated region
        $region177: #{decoder_forward.1} parent=171 // pred_check
          %p4121 = pneg %p1010
        $region178: #{decoder_forward.1} parent=171 // pred_check_branch
          %4123 = sbr.rel (%p4121) target = $region180
        $region179: #{decoder_forward.1} parent=171 // pred_region
          %4125 = vsyncadd [#allocation5], 0
          %s4126 = sshll.u32 [#allocation4], 4
          %s4127 = int_to_ptr.vmem [resolvable:$true] %s4126
          %s4128 = sshll.u32 %s77, 4
          %s4129 = int_to_ptr.hbm [resolvable:$true] %s4128
          %4134 = dma.vmem_to_hbm [thread:$0]  %s4127, 256, %s4129, [#allocation5], 128, 128, 8
        $region180: #{decoder_forward.1} parent=171 // pred_fallthru
          _
        // Predicated region
        $region181: #{decoder_forward.1} parent=171 // pred_check
          %p4135 = pneg %p1010
        $region182: #{decoder_forward.1} parent=171 // pred_check_branch
          %4137 = sbr.rel (%p4135) target = $region184
        $region183: #{decoder_forward.1} parent=171 // pred_region
          %4139 = dma.done [#allocation5], 256
        $region184: #{decoder_forward.1} parent=171 // pred_fallthru
          _
      $region172: #{decoder_forward.1} parent=5 // pred_fallthru
        _
      %p4140 = scmp.le.s32.totalorder 2, %s84
      // Predicated region
      $region185: #{decoder_forward.1} parent=5 // pred_check
        %p4141 = pneg %p4140
      $region186: #{decoder_forward.1} parent=5 // pred_check_branch
        %4143 = sbr.rel (%p4141) target = $region188
      $region187: #{decoder_forward.1} parent=5 // pred_region
        %s4144 = ssub.s32 %s84, 2
      $region188: #{decoder_forward.1} parent=5 // pred_fallthru
        _
    $region6: #{decoder_forward.1} parent=1 // loop_footer
      %s88 = sadd.s32 1, %s84
    $region7: #{decoder_forward.1} parent=1 // loop_footer_branch
      %83 = sbr.rel target = $region3
    $region8: #{decoder_forward.1} parent=1 // loop_exit
      _
    %4145 = vsyncpa [#allocation5], 1
    %s4146 = scalar_lea.sflag [#allocation5], 1
    %4147 = vsyncpa %s4146, 1

</llo_original>
